<compile_context>
chip_gen: v7x
topology: tpu7x:2x2x1
jax: 0.10.0
libtpu: 0.0.40
codegen_flags: <defaults>
</compile_context>

<pallas_src>
import jax
import jax.numpy as jnp
from jax.experimental import pallas as pl
from jax.experimental.pallas import tpu as pltpu

GENE_NUM = 512
PATHWAY_NUM = 1358        # required by fc = Linear(1358, 100) in the reference
PATHWAY_PAD = 1408        # 11 * 128 lanes
ATTN_HIDDEN = 128
FC_OUT = 100
NUM_CLASSES = 2


def _round_up(n, m):
    return (n + m - 1) // m * m


def mymodel_kernel(x_ref,
                   wfused_ref, dense_b_ref,
                   a1x_ref, a1b_ref,
                   a2w_ref, a2b_ref,
                   fcw_ref, fcb_ref,
                   out_ref, attn_ref):
    f32 = jnp.float32
    bf16 = jnp.bfloat16

    x = x_ref[...].astype(bf16)                                   # (Bt, G)

    # h = dense(x @ cm.T): connection matrix folded into the dense weight.
    h = jnp.dot(x, wfused_ref[...],
                preferred_element_type=f32) + dense_b_ref[...]    # (Bt, Pp)

    # Attention branch fed directly from x (first attention layer folded
    # through the dense fold) -> independent of the big matmul above.
    a = jnp.dot(x, a1x_ref[...],
                preferred_element_type=f32) + a1b_ref[...]        # (Bt, 128)
    a = jnp.tanh(a).astype(bf16)
    s = jnp.dot(a, a2w_ref[...],
                preferred_element_type=f32) + a2b_ref[...]        # (Bt, Pp)

    # Softmax over pathway axis; padded columns carry a -1e30 bias -> exp==0,
    # so the normalization matches the unpadded softmax exactly.
    s_max = jnp.max(s, axis=-1, keepdims=True)
    e = jnp.exp(s - s_max)
    inv = pl.reciprocal(jnp.sum(e, axis=-1, keepdims=True), approx=True)
    attn = e * inv
    attn_ref[...] = attn

    # weighted pathways -> Conv1d(1,1,3,pad=1) + fc + classifier all folded
    # into one (Pp, 2) matmul.
    w = (attn * h).astype(bf16)
    out_ref[...] = jnp.dot(w, fcw_ref[...],
                           preferred_element_type=f32) + fcb_ref[...]


def mymodel_forward(x, params):
    B, G = x.shape
    assert G == GENE_NUM
    Bt = min(128, _round_up(max(B, 1), 8))
    B_pad = _round_up(B, Bt)
    if B_pad != B:
        x = jnp.pad(x, ((0, B_pad - B), (0, 0)))
    grid = (B_pad // Bt,)

    def const(shape):
        return pl.BlockSpec(shape, lambda i: (0, 0))   # weights: resident, DMA once

    inputs = (
        x,
        params["w_fused"], params["dense_b"],          # (G, Pp) bf16, (1, Pp) f32
        params["a1x"], params["a1_b"],                 # (G, 128) bf16, (1, 128) f32
        params["a2_w"], params["a2_b"],                # (128, Pp) bf16, (1, Pp) f32
        params["fc_cls_w"], params["fc_cls_b"],        # (Pp, 2) bf16, (1, 2) f32
    )
    in_specs = [
        pl.BlockSpec((Bt, GENE_NUM), lambda i: (i, 0)),
        const((GENE_NUM, PATHWAY_PAD)), const((1, PATHWAY_PAD)),
        const((GENE_NUM, ATTN_HIDDEN)), const((1, ATTN_HIDDEN)),
        const((ATTN_HIDDEN, PATHWAY_PAD)), const((1, PATHWAY_PAD)),
        const((PATHWAY_PAD, NUM_CLASSES)), const((1, NUM_CLASSES)),
    ]
    out_specs = (
        pl.BlockSpec((Bt, NUM_CLASSES), lambda i: (i, 0)),
        pl.BlockSpec((Bt, PATHWAY_PAD), lambda i: (i, 0)),
    )
    out_shape = (
        jax.ShapeDtypeStruct((B_pad, NUM_CLASSES), jnp.float32),
        jax.ShapeDtypeStruct((B_pad, PATHWAY_PAD), jnp.float32),
    )

    # Small, HBM/latency-bound custom call: advertise bytes/flops to XLA.
    flops = 2 * B_pad * (GENE_NUM * PATHWAY_PAD
                         + GENE_NUM * ATTN_HIDDEN
                         + ATTN_HIDDEN * PATHWAY_PAD
                         + PATHWAY_PAD * NUM_CLASSES)
    transcendentals = B_pad * (ATTN_HIDDEN + PATHWAY_PAD + 1)
    bytes_accessed = (sum(int(a.size) * a.dtype.itemsize for a in inputs)
                      + B_pad * (NUM_CLASSES + PATHWAY_PAD) * 4)

    logits, attn = pl.pallas_call(
        mymodel_kernel,
        out_shape=out_shape,
        grid=grid,
        in_specs=in_specs,
        out_specs=out_specs,
        compiler_params=pltpu.CompilerParams(
            dimension_semantics=("parallel",),
            vmem_limit_bytes=32 * 1024 * 1024),
        cost_estimate=pl.CostEstimate(flops=flops,
                                      transcendentals=transcendentals,
                                      bytes_accessed=bytes_accessed),
    )(*inputs)

    return logits[:B], attn[:B, :PATHWAY_NUM]


def _linear_init(key, fan_in, fan_out):
    """PyTorch nn.Linear default init: U(-1/sqrt(fan_in), 1/sqrt(fan_in))."""
    kw, kb = jax.random.split(key)
    bound = 1.0 / jnp.sqrt(jnp.float32(fan_in))
    w = jax.random.uniform(kw, (fan_out, fan_in), jnp.float32, -bound, bound)
    b = jax.random.uniform(kb, (fan_out,), jnp.float32, -bound, bound)
    return w, b


def make_raw_params(key):
    keys = jax.random.split(key, 7)
    cm = jax.random.bernoulli(keys[0], 0.1,
                              (PATHWAY_NUM, GENE_NUM)).astype(jnp.float32)
    dense_w, dense_b = _linear_init(keys[1], PATHWAY_NUM, PATHWAY_NUM)
    a1_w, a1_b = _linear_init(keys[2], PATHWAY_NUM, ATTN_HIDDEN)
    a2_w, a2_b = _linear_init(keys[3], ATTN_HIDDEN, PATHWAY_NUM)
    fc_w, fc_b = _linear_init(keys[4], PATHWAY_NUM, FC_OUT)
    cls_w, cls_b = _linear_init(keys[5], FC_OUT, NUM_CLASSES)
    kcw, kcb = jax.random.split(keys[6])
    cbound = 1.0 / jnp.sqrt(jnp.float32(3))
    conv_w = jax.random.uniform(kcw, (3,), jnp.float32, -cbound, cbound)
    conv_b = jax.random.uniform(kcb, (1,), jnp.float32, -cbound, cbound)
    return dict(cm=cm, dense_w=dense_w, dense_b=dense_b, a1_w=a1_w, a1_b=a1_b,
                a2_w=a2_w, a2_b=a2_b, fc_w=fc_w, fc_b=fc_b,
                cls_w=cls_w, cls_b=cls_b, conv_w=conv_w, conv_b=conv_b)


def fold_params(raw):
    """Load-time algebraic folds + pathway-axis padding (kernel is HBM-bound)."""
    f32, bf16 = jnp.float32, jnp.bfloat16
    pad_p = PATHWAY_PAD - PATHWAY_NUM

    # (1) connection matrix folded into dense: h = x @ (cm.T @ dense_w.T) + b
    w_fused = raw["cm"].T @ raw["dense_w"].T                        # (G, P)

    # (2) first attention layer folded through the dense fold (depends on x only)
    a1x = w_fused @ raw["a1_w"].T                                   # (G, 128)
    a1_b_eff = raw["dense_b"] @ raw["a1_w"].T + raw["a1_b"]         # (128,)

    # (3) Conv1d(1,1,3,pad=1) folded into fc (cross-correlation, zero pad):
    #     eff[j,:] = cw1*fc_w_t[j,:] + cw0*fc_w_t[j+1,:] + cw2*fc_w_t[j-1,:]
    cw, cb = raw["conv_w"], raw["conv_b"]
    fc_w_t = raw["fc_w"].T                                          # (P, 100)
    z = jnp.zeros((1, FC_OUT), f32)
    up = jnp.concatenate([fc_w_t[1:], z], axis=0)                   # fc_w_t[j+1]
    down = jnp.concatenate([z, fc_w_t[:-1]], axis=0)                # fc_w_t[j-1]
    fc_w_eff = cw[1] * fc_w_t + cw[0] * up + cw[2] * down
    fc_b_eff = raw["fc_b"] + cb[0] * jnp.sum(fc_w_t, axis=0)

    # (4) classifier folded into fc (purely linear chain, no nonlinearity)
    fc_cls_w = fc_w_eff @ raw["cls_w"].T                            # (P, 2)
    fc_cls_b = fc_b_eff @ raw["cls_w"].T + raw["cls_b"]             # (2,)

    # pad pathway axis 1358 -> 1408 lanes; padded softmax logits get -1e30 bias
    w_fused_p = jnp.pad(w_fused, ((0, 0), (0, pad_p)))
    dense_b_p = jnp.pad(raw["dense_b"], (0, pad_p))
    a2_w_p = jnp.pad(raw["a2_w"].T, ((0, 0), (0, pad_p)))
    a2_b_p = jnp.pad(raw["a2_b"], (0, pad_p), constant_values=-1e30)
    fc_cls_w_p = jnp.pad(fc_cls_w, ((0, pad_p), (0, 0)))

    return {
        "w_fused": w_fused_p.astype(bf16),
        "dense_b": dense_b_p.reshape(1, PATHWAY_PAD).astype(f32),
        "a1x": a1x.astype(bf16),
        "a1_b": a1_b_eff.reshape(1, ATTN_HIDDEN).astype(f32),
        "a2_w": a2_w_p.astype(bf16),
        "a2_b": a2_b_p.reshape(1, PATHWAY_PAD).astype(f32),
        "fc_cls_w": fc_cls_w_p.astype(bf16),
        "fc_cls_b": fc_cls_b.reshape(1, NUM_CLASSES).astype(f32),
    }


def reference_forward(x, raw):
    """Pure-JAX f32 re-implementation of the PyTorch forward (unfolded)."""
    h = x @ raw["cm"].T
    h = h @ raw["dense_w"].T + raw["dense_b"]
    a = jnp.tanh(h @ raw["a1_w"].T + raw["a1_b"]) @ raw["a2_w"].T + raw["a2_b"]
    attn = jax.nn.softmax(a, axis=1)
    w = attn * h
    wp = jnp.pad(w, ((0, 0), (1, 1)))
    conv = (raw["conv_w"][0] * wp[:, :-2] + raw["conv_w"][1] * wp[:, 1:-1]
            + raw["conv_w"][2] * wp[:, 2:] + raw["conv_b"][0])
    fc = conv @ raw["fc_w"].T + raw["fc_b"]
    logits = fc @ raw["cls_w"].T + raw["cls_b"]
    return logits, attn


if __name__ == "__main__":
    key = jax.random.PRNGKey(0)
    k_params, k_x = jax.random.split(key)
    raw = make_raw_params(k_params)
    params = fold_params(raw)

    batch = 2
    x = jax.random.normal(k_x, (batch, GENE_NUM), jnp.float32)

    logits, attn = mymodel_forward(x, params)
    logits, attn = jax.block_until_ready((logits, attn))

    assert logits.shape == (batch, NUM_CLASSES)
    assert attn.shape == (batch, PATHWAY_NUM)
    assert bool(jnp.all(jnp.isfinite(logits)))
    # softmax rows should sum to ~1 (approx reciprocal + bf16 weights)
    assert bool(jnp.all(jnp.abs(jnp.sum(attn, axis=1) - 1.0) < 3e-3))

    # compare against the unfolded f32 reference (loose: weights are bf16)
    ref_logits, ref_attn = reference_forward(x, raw)
    assert bool(jnp.max(jnp.abs(attn - ref_attn)) < 3e-2)
    assert bool(jnp.max(jnp.abs(logits - ref_logits)) < 1e-1)

    print("KERNEL_OK")
</pallas_src>

<mosaic_0001>
module attributes {stable_mosaic.version = 11 : i64} {
  func.func @mymodel_kernel(%arg0: i32, %arg1: memref<8x512xf32, #tpu.memory_space<vmem>>, %arg2: memref<512x1408xbf16, #tpu.memory_space<vmem>>, %arg3: memref<1x1408xf32, #tpu.memory_space<vmem>>, %arg4: memref<512x128xbf16, #tpu.memory_space<vmem>>, %arg5: memref<1x128xf32, #tpu.memory_space<vmem>>, %arg6: memref<128x1408xbf16, #tpu.memory_space<vmem>>, %arg7: memref<1x1408xf32, #tpu.memory_space<vmem>>, %arg8: memref<1408x2xbf16, #tpu.memory_space<vmem>>, %arg9: memref<1x2xf32, #tpu.memory_space<vmem>>, %arg10: memref<8x2xf32, #tpu.memory_space<vmem>>, %arg11: memref<8x1408xf32, #tpu.memory_space<vmem>>) attributes {dimension_semantics = [#tpu.dimension_semantics<parallel>], iteration_bounds = array<i64: 1>, scalar_prefetch = 0 : i64, scratch_operands = 0 : i64, tpu.core_type = #tpu.core_type<tc>, window_params = [{transform_indices = @transform_0, window_bounds = array<i64: 8, 512>}, {pipeline_mode = #tpu.pipeline_mode<synchronous>, transform_indices = @transform_1, window_bounds = array<i64: 512, 1408>}, {pipeline_mode = #tpu.pipeline_mode<synchronous>, transform_indices = @transform_2, window_bounds = array<i64: 1, 1408>}, {pipeline_mode = #tpu.pipeline_mode<synchronous>, transform_indices = @transform_3, window_bounds = array<i64: 512, 128>}, {pipeline_mode = #tpu.pipeline_mode<synchronous>, transform_indices = @transform_4, window_bounds = array<i64: 1, 128>}, {pipeline_mode = #tpu.pipeline_mode<synchronous>, transform_indices = @transform_5, window_bounds = array<i64: 128, 1408>}, {pipeline_mode = #tpu.pipeline_mode<synchronous>, transform_indices = @transform_6, window_bounds = array<i64: 1, 1408>}, {pipeline_mode = #tpu.pipeline_mode<synchronous>, transform_indices = @transform_7, window_bounds = array<i64: 1408, 2>}, {pipeline_mode = #tpu.pipeline_mode<synchronous>, transform_indices = @transform_8, window_bounds = array<i64: 1, 2>}, {transform_indices = @transform_9, window_bounds = array<i64: 8, 2>}, {transform_indices = @transform_10, window_bounds = array<i64: 8, 1408>}]} {
    %c0 = arith.constant 0 : index
    %c0_0 = arith.constant 0 : index
    %0 = vector.load %arg1[%c0, %c0_0] : memref<8x512xf32, #tpu.memory_space<vmem>>, vector<8x512xf32>
    %1 = arith.truncf %0 : vector<8x512xf32> to vector<8x512xbf16>
    %c0_1 = arith.constant 0 : index
    %c0_2 = arith.constant 0 : index
    %2 = vector.load %arg2[%c0_1, %c0_2] : memref<512x1408xbf16, #tpu.memory_space<vmem>>, vector<512x1408xbf16>
    %cst = arith.constant dense<0.000000e+00> : vector<8x1408xf32>
    %3 = tpu.matmul %1, %2, %cst {dimension_numbers = #tpu.dot_dimension_numbers<[1], [0], [0], [1], [0, 0, 1, 1], [], []>} : vector<8x512xbf16>, vector<512x1408xbf16>, vector<8x1408xf32> -> vector<8x1408xf32>
    %c0_3 = arith.constant 0 : index
    %c0_4 = arith.constant 0 : index
    %4 = vector.load %arg3[%c0_3, %c0_4] : memref<1x1408xf32, #tpu.memory_space<vmem>>, vector<1x1408xf32>
    %5 = vector.broadcast %4 : vector<1x1408xf32> to vector<8x1408xf32>
    %6 = arith.addf %3, %5 : vector<8x1408xf32>
    %c0_5 = arith.constant 0 : index
    %c0_6 = arith.constant 0 : index
    %7 = vector.load %arg4[%c0_5, %c0_6] : memref<512x128xbf16, #tpu.memory_space<vmem>>, vector<512x128xbf16>
    %cst_7 = arith.constant dense<0.000000e+00> : vector<8x128xf32>
    %8 = tpu.matmul %1, %7, %cst_7 {dimension_numbers = #tpu.dot_dimension_numbers<[1], [0], [0], [1], [0, 0, 1, 1], [], []>} : vector<8x512xbf16>, vector<512x128xbf16>, vector<8x128xf32> -> vector<8x128xf32>
    %c0_8 = arith.constant 0 : index
    %c0_9 = arith.constant 0 : index
    %9 = vector.load %arg5[%c0_8, %c0_9] : memref<1x128xf32, #tpu.memory_space<vmem>>, vector<1x128xf32>
    %10 = vector.broadcast %9 : vector<1x128xf32> to vector<8x128xf32>
    %11 = arith.addf %8, %10 : vector<8x128xf32>
    %12 = math.tanh %11 : vector<8x128xf32>
    %13 = arith.truncf %12 : vector<8x128xf32> to vector<8x128xbf16>
    %c0_10 = arith.constant 0 : index
    %c0_11 = arith.constant 0 : index
    %14 = vector.load %arg6[%c0_10, %c0_11] : memref<128x1408xbf16, #tpu.memory_space<vmem>>, vector<128x1408xbf16>
    %cst_12 = arith.constant dense<0.000000e+00> : vector<8x1408xf32>
    %15 = tpu.matmul %13, %14, %cst_12 {dimension_numbers = #tpu.dot_dimension_numbers<[1], [0], [0], [1], [0, 0, 1, 1], [], []>} : vector<8x128xbf16>, vector<128x1408xbf16>, vector<8x1408xf32> -> vector<8x1408xf32>
    %c0_13 = arith.constant 0 : index
    %c0_14 = arith.constant 0 : index
    %16 = vector.load %arg7[%c0_13, %c0_14] : memref<1x1408xf32, #tpu.memory_space<vmem>>, vector<1x1408xf32>
    %17 = vector.broadcast %16 : vector<1x1408xf32> to vector<8x1408xf32>
    %18 = arith.addf %15, %17 : vector<8x1408xf32>
    %cst_15 = arith.constant dense<0xFF800000> : vector<8xf32>
    %19 = vector.multi_reduction <maximumf>, %18, %cst_15 [1] : vector<8x1408xf32> to vector<8xf32>
    %20 = vector.shape_cast %19 : vector<8xf32> to vector<8x1xf32>
    %21 = vector.broadcast %20 : vector<8x1xf32> to vector<8x1408xf32>
    %22 = arith.subf %18, %21 : vector<8x1408xf32>
    %23 = math.exp %22 : vector<8x1408xf32>
    %cst_16 = arith.constant dense<0.000000e+00> : vector<8xf32>
    %24 = vector.multi_reduction <add>, %23, %cst_16 [1] : vector<8x1408xf32> to vector<8xf32>
    %25 = vector.shape_cast %24 : vector<8xf32> to vector<8x1xf32>
    %26 = tpu.reciprocal %25 {approx = true} : vector<8x1xf32> -> vector<8x1xf32>
    %27 = vector.broadcast %26 : vector<8x1xf32> to vector<8x1408xf32>
    %28 = arith.mulf %23, %27 : vector<8x1408xf32>
    %c0_17 = arith.constant 0 : index
    %c0_18 = arith.constant 0 : index
    %29 = vector.load %arg11[%c0_17, %c0_18] : memref<8x1408xf32, #tpu.memory_space<vmem>>, vector<8x1408xf32>
    tpu.vector_store %arg11[%c0_17, %c0_18], %28 {strides = array<i32>} : memref<8x1408xf32, #tpu.memory_space<vmem>>, vector<8x1408xf32>,
    %30 = arith.mulf %28, %6 : vector<8x1408xf32>
    %31 = arith.truncf %30 : vector<8x1408xf32> to vector<8x1408xbf16>
    %c0_19 = arith.constant 0 : index
    %c0_20 = arith.constant 0 : index
    %32 = vector.load %arg8[%c0_19, %c0_20] : memref<1408x2xbf16, #tpu.memory_space<vmem>>, vector<1408x2xbf16>
    %cst_21 = arith.constant dense<0.000000e+00> : vector<8x2xf32>
    %33 = tpu.matmul %31, %32, %cst_21 {dimension_numbers = #tpu.dot_dimension_numbers<[1], [0], [0], [1], [0, 0, 1, 1], [], []>} : vector<8x1408xbf16>, vector<1408x2xbf16>, vector<8x2xf32> -> vector<8x2xf32>
    %c0_22 = arith.constant 0 : index
    %c0_23 = arith.constant 0 : index
    %34 = vector.load %arg9[%c0_22, %c0_23] : memref<1x2xf32, #tpu.memory_space<vmem>>, vector<1x2xf32>
    %35 = vector.broadcast %34 : vector<1x2xf32> to vector<8x2xf32>
    %36 = arith.addf %33, %35 : vector<8x2xf32>
    %c0_24 = arith.constant 0 : index
    %c0_25 = arith.constant 0 : index
    %37 = vector.load %arg10[%c0_24, %c0_25] : memref<8x2xf32, #tpu.memory_space<vmem>>, vector<8x2xf32>
    tpu.vector_store %arg10[%c0_24, %c0_25], %36 {strides = array<i32>} : memref<8x2xf32, #tpu.memory_space<vmem>>, vector<8x2xf32>,
    return
  }
  func.func @transform_0(%arg0: i32) -> (i32, i32) {
    %c0_i32 = arith.constant 0 : i32
    %c0_i32_0 = arith.constant 0 : i32
    return %arg0, %c0_i32 : i32, i32
  }
  func.func @transform_1(%arg0: i32) -> (i32, i32) {
    %c0_i32 = arith.constant 0 : i32
    %c0_i32_0 = arith.constant 0 : i32
    %c0_i32_1 = arith.constant 0 : i32
    return %c0_i32, %c0_i32_0 : i32, i32
  }
  func.func @transform_2(%arg0: i32) -> (i32, i32) {
    %c0_i32 = arith.constant 0 : i32
    %c0_i32_0 = arith.constant 0 : i32
    %c0_i32_1 = arith.constant 0 : i32
    return %c0_i32, %c0_i32_0 : i32, i32
  }
  func.func @transform_3(%arg0: i32) -> (i32, i32) {
    %c0_i32 = arith.constant 0 : i32
    %c0_i32_0 = arith.constant 0 : i32
    %c0_i32_1 = arith.constant 0 : i32
    return %c0_i32, %c0_i32_0 : i32, i32
  }
  func.func @transform_4(%arg0: i32) -> (i32, i32) {
    %c0_i32 = arith.constant 0 : i32
    %c0_i32_0 = arith.constant 0 : i32
    %c0_i32_1 = arith.constant 0 : i32
    return %c0_i32, %c0_i32_0 : i32, i32
  }
  func.func @transform_5(%arg0: i32) -> (i32, i32) {
    %c0_i32 = arith.constant 0 : i32
    %c0_i32_0 = arith.constant 0 : i32
    %c0_i32_1 = arith.constant 0 : i32
    return %c0_i32, %c0_i32_0 : i32, i32
  }
  func.func @transform_6(%arg0: i32) -> (i32, i32) {
    %c0_i32 = arith.constant 0 : i32
    %c0_i32_0 = arith.constant 0 : i32
    %c0_i32_1 = arith.constant 0 : i32
    return %c0_i32, %c0_i32_0 : i32, i32
  }
  func.func @transform_7(%arg0: i32) -> (i32, i32) {
    %c0_i32 = arith.constant 0 : i32
    %c0_i32_0 = arith.constant 0 : i32
    %c0_i32_1 = arith.constant 0 : i32
    return %c0_i32, %c0_i32_0 : i32, i32
  }
  func.func @transform_8(%arg0: i32) -> (i32, i32) {
    %c0_i32 = arith.constant 0 : i32
    %c0_i32_0 = arith.constant 0 : i32
    %c0_i32_1 = arith.constant 0 : i32
    return %c0_i32, %c0_i32_0 : i32, i32
  }
  func.func @transform_9(%arg0: i32) -> (i32, i32) {
    %c0_i32 = arith.constant 0 : i32
    %c0_i32_0 = arith.constant 0 : i32
    return %arg0, %c0_i32 : i32, i32
  }
  func.func @transform_10(%arg0: i32) -> (i32, i32) {
    %c0_i32 = arith.constant 0 : i32
    %c0_i32_0 = arith.constant 0 : i32
    return %arg0, %c0_i32 : i32, i32
  }
}

</mosaic_0001>

<llo_original>
// kernel: tpu_custom_call.1
$region0: #{tpu_custom_call.1}
  #allocation0 [shape = 'u32[]', space=smem, size = 0x4, offset = 0x4, fixed_abs, tag = 'smem constant byte address 0x4 - core index']
  #allocation1 [shape = 'u32[144,128]{1,0:T(1,128)}', space=vmem, size = 0x12000, scoped, tag = 'internal scratch']
  %s0 = inlined_call_operand.hbm [shape: f32[8,512], index: 0, kind: input, shape index: {}]
  %s1 = inlined_call_operand.hbm [shape: bf16[512,1408], index: 1, kind: input, shape index: {}]
  %s2 = inlined_call_operand.hbm [shape: f32[1,1408], index: 2, kind: input, shape index: {}]
  %s3 = inlined_call_operand.hbm [shape: bf16[512,128], index: 3, kind: input, shape index: {}]
  %s4 = inlined_call_operand.hbm [shape: f32[1,128], index: 4, kind: input, shape index: {}]
  %s5 = inlined_call_operand.hbm [shape: bf16[128,1408], index: 5, kind: input, shape index: {}]
  %s6 = inlined_call_operand.hbm [shape: f32[1,1408], index: 6, kind: input, shape index: {}]
  %s7 = inlined_call_operand.vmem [shape: bf16[1408,2], index: 7, kind: input, shape index: {}]
  %s8 = inlined_call_operand.hbm [shape: f32[1,2], index: 8, kind: input, shape index: {}]
  %s9 = inlined_call_operand.vmem [shape: f32[8,2], index: 9, kind: output, shape index: {0}]
  %s10 = inlined_call_operand.hbm [shape: f32[8,1408], index: 10, kind: output, shape index: {1}]
  %11 = xla_tuple %s9, %s10
  %s12 = sld [smem:[#allocation0]]
  $region86: #{tpu_custom_call.1} parent=0
    _
  %s14 = ssub.s32 1, %s12
  %s15 = scalar_select 0, %s14, %s12
  $region1: #{tpu_custom_call.1} parent=0
    #allocation2 [shape = 'u8[16384]{0}', space=vmem, size = 0x4000, scoped, tag = 'input window, operand 0, single buffered']
    #allocation3 [shape = 's32[1]{0}', space=sflag, size = 0x4, scoped, tag = 'scoped memory for tpu_custom_call.1']
    #allocation4 [shape = 's32[1]{0}', space=sflag, size = 0x4, scoped, tag = 'scoped memory for tpu_custom_call.1']
    #allocation5 [shape = 'u8[1441792]{0}', space=vmem, size = 0x160000, scoped, tag = 'input window, operand 1, single buffered']
    #allocation6 [shape = 's32[1]{0}', space=sflag, size = 0x4, scoped, tag = 'scoped memory for tpu_custom_call.1']
    #allocation7 [shape = 'u8[5632]{0}', space=vmem, size = 0x1800, scoped, tag = 'input window, operand 2, single buffered']
    #allocation8 [shape = 'u8[131072]{0}', space=vmem, size = 0x20000, scoped, tag = 'input window, operand 3, single buffered']
    #allocation9 [shape = 's32[1]{0}', space=sflag, size = 0x4, scoped, tag = 'scoped memory for tpu_custom_call.1']
    #allocation10 [shape = 'u8[512]{0}', space=vmem, size = 0x400, scoped, tag = 'input window, operand 4, single buffered']
    #allocation11 [shape = 'u8[360448]{0}', space=vmem, size = 0x58000, scoped, tag = 'input window, operand 5, single buffered']
    #allocation12 [shape = 's32[1]{0}', space=sflag, size = 0x4, scoped, tag = 'scoped memory for tpu_custom_call.1']
    #allocation13 [shape = 'u8[5632]{0}', space=vmem, size = 0x1800, scoped, tag = 'input window, operand 6, single buffered']
    #allocation14 [shape = 'u8[512]{0}', space=vmem, size = 0x400, scoped, tag = 'input window, operand 8, single buffered']
    #allocation15 [shape = 's32[1]{0}', space=sflag, size = 0x4, scoped, tag = 'scoped memory for tpu_custom_call.1']
    #allocation16 [shape = 'u8[45056]{0}', space=vmem, size = 0xb000, scoped, tag = 'output window, operand 1, single buffered']
    %16 = vsyncpa [#allocation3], 0
    %17 = vsyncpa [#allocation6], 0
    %18 = vsyncpa [#allocation9], 0
    %19 = vsyncpa [#allocation12], 0
    %20 = vsyncpa [#allocation15], 0
    %21 = vsyncpa [#allocation4], 0
    // Predicated region
    $region2: #{tpu_custom_call.1} parent=1 // pred_check
      _
    $region3: #{tpu_custom_call.1} parent=1 // pred_check_branch
      %23 = sbr.rel (0) target = $region5
    $region4: #{tpu_custom_call.1} parent=1 // pred_region
      %s25 = ssub.s32 512, 512
      %26 = vsyncadd [#allocation3], %s25
      %s28 = sshll.u32 [#allocation2], 4
      %s29 = int_to_ptr.vmem [resolvable:$true] %s28
      %31 = dma.hbm_to_vmem [thread:$0]  %s0, 512, %s29, [#allocation3]
    $region5: #{tpu_custom_call.1} parent=1 // pred_fallthru
      _
    // Predicated region
    $region6: #{tpu_custom_call.1} parent=1 // pred_check
      _
    $region7: #{tpu_custom_call.1} parent=1 // pred_check_branch
      %33 = sbr.rel (0) target = $region9
    $region8: #{tpu_custom_call.1} parent=1 // pred_region
      %s35 = ssub.s32 45056, 45056
      %36 = vsyncadd [#allocation6], %s35
      %s37 = sshll.u32 [#allocation5], 4
      %s38 = int_to_ptr.vmem [resolvable:$true] %s37
      %43 = dma.hbm_to_vmem [thread:$0]  %s1, 45056, %s38, [#allocation6], 704, 704, 44
    $region9: #{tpu_custom_call.1} parent=1 // pred_fallthru
      _
    // Predicated region
    $region10: #{tpu_custom_call.1} parent=1 // pred_check
      _
    $region11: #{tpu_custom_call.1} parent=1 // pred_check_branch
      %45 = sbr.rel (0) target = $region13
    $region12: #{tpu_custom_call.1} parent=1 // pred_region
      %s47 = ssub.s32 176, 176
      %48 = vsyncadd [#allocation6], %s47
      %s50 = sshll.u32 [#allocation7], 4
      %s51 = int_to_ptr.vmem [resolvable:$true] %s50
      %53 = dma.hbm_to_vmem [thread:$0]  %s2, 176, %s51, [#allocation6]
    $region13: #{tpu_custom_call.1} parent=1 // pred_fallthru
      _
    // Predicated region
    $region14: #{tpu_custom_call.1} parent=1 // pred_check
      _
    $region15: #{tpu_custom_call.1} parent=1 // pred_check_branch
      %55 = sbr.rel (0) target = $region17
    $region16: #{tpu_custom_call.1} parent=1 // pred_region
      %s57 = ssub.s32 4096, 4096
      %58 = vsyncadd [#allocation9], %s57
      %s59 = sshll.u32 [#allocation8], 4
      %s60 = int_to_ptr.vmem [resolvable:$true] %s59
      %65 = dma.hbm_to_vmem [thread:$0]  %s3, 4096, %s60, [#allocation9], 64, 64, 4
    $region17: #{tpu_custom_call.1} parent=1 // pred_fallthru
      _
    // Predicated region
    $region18: #{tpu_custom_call.1} parent=1 // pred_check
      _
    $region19: #{tpu_custom_call.1} parent=1 // pred_check_branch
      %67 = sbr.rel (0) target = $region21
    $region20: #{tpu_custom_call.1} parent=1 // pred_region
      %s69 = ssub.s32 16, 16
      %70 = vsyncadd [#allocation9], %s69
      %s72 = sshll.u32 [#allocation10], 4
      %s73 = int_to_ptr.vmem [resolvable:$true] %s72
      %75 = dma.hbm_to_vmem [thread:$0]  %s4, 16, %s73, [#allocation9]
    $region21: #{tpu_custom_call.1} parent=1 // pred_fallthru
      _
    // Predicated region
    $region22: #{tpu_custom_call.1} parent=1 // pred_check
      _
    $region23: #{tpu_custom_call.1} parent=1 // pred_check_branch
      %77 = sbr.rel (0) target = $region25
    $region24: #{tpu_custom_call.1} parent=1 // pred_region
      %s79 = ssub.s32 11264, 11264
      %80 = vsyncadd [#allocation12], %s79
      %s81 = sshll.u32 [#allocation11], 4
      %s82 = int_to_ptr.vmem [resolvable:$true] %s81
      %87 = dma.hbm_to_vmem [thread:$0]  %s5, 11264, %s82, [#allocation12], 704, 704, 44
    $region25: #{tpu_custom_call.1} parent=1 // pred_fallthru
      _
    // Predicated region
    $region26: #{tpu_custom_call.1} parent=1 // pred_check
      _
    $region27: #{tpu_custom_call.1} parent=1 // pred_check_branch
      %89 = sbr.rel (0) target = $region29
    $region28: #{tpu_custom_call.1} parent=1 // pred_region
      %s91 = ssub.s32 176, 176
      %92 = vsyncadd [#allocation12], %s91
      %s94 = sshll.u32 [#allocation13], 4
      %s95 = int_to_ptr.vmem [resolvable:$true] %s94
      %97 = dma.hbm_to_vmem [thread:$0]  %s6, 176, %s95, [#allocation12]
    $region29: #{tpu_custom_call.1} parent=1 // pred_fallthru
      _
    // Predicated region
    $region30: #{tpu_custom_call.1} parent=1 // pred_check
      _
    $region31: #{tpu_custom_call.1} parent=1 // pred_check_branch
      %99 = sbr.rel (0) target = $region33
    $region32: #{tpu_custom_call.1} parent=1 // pred_region
      _
    $region33: #{tpu_custom_call.1} parent=1 // pred_fallthru
      _
    // Predicated region
    $region34: #{tpu_custom_call.1} parent=1 // pred_check
      _
    $region35: #{tpu_custom_call.1} parent=1 // pred_check_branch
      %101 = sbr.rel (0) target = $region37
    $region36: #{tpu_custom_call.1} parent=1 // pred_region
      %s103 = ssub.s32 16, 16
      %104 = vsyncadd [#allocation15], %s103
      %s106 = sshll.u32 [#allocation14], 4
      %s107 = int_to_ptr.vmem [resolvable:$true] %s106
      %109 = dma.hbm_to_vmem [thread:$0]  %s8, 16, %s107, [#allocation15]
    $region37: #{tpu_custom_call.1} parent=1 // pred_fallthru
      _
    // Predicated region
    $region38: #{tpu_custom_call.1} parent=1 // pred_check
      _
    $region39: #{tpu_custom_call.1} parent=1 // pred_check_branch
      %111 = sbr.rel (0) target = $region41
    $region40: #{tpu_custom_call.1} parent=1 // pred_region
      %112 = dma.done [#allocation3], 512
    $region41: #{tpu_custom_call.1} parent=1 // pred_fallthru
      _
    // Predicated region
    $region42: #{tpu_custom_call.1} parent=1 // pred_check
      _
    $region43: #{tpu_custom_call.1} parent=1 // pred_check_branch
      %114 = sbr.rel (0) target = $region45
    $region44: #{tpu_custom_call.1} parent=1 // pred_region
      %115 = dma.done [#allocation6], 45056
    $region45: #{tpu_custom_call.1} parent=1 // pred_fallthru
      _
    // Predicated region
    $region46: #{tpu_custom_call.1} parent=1 // pred_check
      _
    $region47: #{tpu_custom_call.1} parent=1 // pred_check_branch
      %117 = sbr.rel (0) target = $region49
    $region48: #{tpu_custom_call.1} parent=1 // pred_region
      %118 = dma.done [#allocation6], 176
    $region49: #{tpu_custom_call.1} parent=1 // pred_fallthru
      _
    // Predicated region
    $region50: #{tpu_custom_call.1} parent=1 // pred_check
      _
    $region51: #{tpu_custom_call.1} parent=1 // pred_check_branch
      %120 = sbr.rel (0) target = $region53
    $region52: #{tpu_custom_call.1} parent=1 // pred_region
      %121 = dma.done [#allocation9], 4096
    $region53: #{tpu_custom_call.1} parent=1 // pred_fallthru
      _
    // Predicated region
    $region54: #{tpu_custom_call.1} parent=1 // pred_check
      _
    $region55: #{tpu_custom_call.1} parent=1 // pred_check_branch
      %123 = sbr.rel (0) target = $region57
    $region56: #{tpu_custom_call.1} parent=1 // pred_region
      %124 = dma.done [#allocation9], 16
    $region57: #{tpu_custom_call.1} parent=1 // pred_fallthru
      _
    // Predicated region
    $region58: #{tpu_custom_call.1} parent=1 // pred_check
      _
    $region59: #{tpu_custom_call.1} parent=1 // pred_check_branch
      %126 = sbr.rel (0) target = $region61
    $region60: #{tpu_custom_call.1} parent=1 // pred_region
      %127 = dma.done [#allocation12], 11264
    $region61: #{tpu_custom_call.1} parent=1 // pred_fallthru
      _
    // Predicated region
    $region62: #{tpu_custom_call.1} parent=1 // pred_check
      _
    $region63: #{tpu_custom_call.1} parent=1 // pred_check_branch
      %129 = sbr.rel (0) target = $region65
    $region64: #{tpu_custom_call.1} parent=1 // pred_region
      %130 = dma.done [#allocation12], 176
    $region65: #{tpu_custom_call.1} parent=1 // pred_fallthru
      _
    // Predicated region
    $region66: #{tpu_custom_call.1} parent=1 // pred_check
      _
    $region67: #{tpu_custom_call.1} parent=1 // pred_check_branch
      %132 = sbr.rel (0) target = $region69
    $region68: #{tpu_custom_call.1} parent=1 // pred_region
      %133 = dma.done [#allocation15], 16
    $region69: #{tpu_custom_call.1} parent=1 // pred_fallthru
      _
    %v135 = vld [vmem:[#allocation2] sm:$0xff]
    %v136 = vld [vmem:[#allocation2 + $0x8] sm:$0xff]
    %v137 = vld [vmem:[#allocation2 + $0x10] sm:$0xff]
    %v138 = vld [vmem:[#allocation2 + $0x18] sm:$0xff]
    %v139 = vpack.c.bf16 %v135, %v135
    %v140 = vpack.c.bf16 %v136, %v136
    %v141 = vpack.c.bf16 %v137, %v137
    %v142 = vpack.c.bf16 %v138, %v138
    %v143 = vld [vmem:[#allocation5] sm:$0xff]
    %v144 = vld [vmem:[#allocation5 + $0x8] sm:$0xff]
    %v145 = vld [vmem:[#allocation5 + $0x10] sm:$0xff]
    %v146 = vld [vmem:[#allocation5 + $0x18] sm:$0xff]
    %v147 = vld [vmem:[#allocation5 + $0x20] sm:$0xff]
    %v148 = vld [vmem:[#allocation5 + $0x28] sm:$0xf]
    %v149 = vld [vmem:[#allocation5 + $0x2c] sm:$0xff]
    %v150 = vld [vmem:[#allocation5 + $0x34] sm:$0xff]
    %v151 = vld [vmem:[#allocation5 + $0x3c] sm:$0xff]
    %v152 = vld [vmem:[#allocation5 + $0x44] sm:$0xff]
    %v153 = vld [vmem:[#allocation5 + $0x4c] sm:$0xff]
    %v154 = vld [vmem:[#allocation5 + $0x54] sm:$0xf]
    %v155 = vld [vmem:[#allocation5 + $0x58] sm:$0xff]
    %v156 = vld [vmem:[#allocation5 + $0x60] sm:$0xff]
    %v157 = vld [vmem:[#allocation5 + $0x68] sm:$0xff]
    %v158 = vld [vmem:[#allocation5 + $0x70] sm:$0xff]
    %v159 = vld [vmem:[#allocation5 + $0x78] sm:$0xff]
    %v160 = vld [vmem:[#allocation5 + $0x80] sm:$0xf]
    %v161 = vld [vmem:[#allocation5 + $0x84] sm:$0xff]
    %v162 = vld [vmem:[#allocation5 + $0x8c] sm:$0xff]
    %v163 = vld [vmem:[#allocation5 + $0x94] sm:$0xff]
    %v164 = vld [vmem:[#allocation5 + $0x9c] sm:$0xff]
    %v165 = vld [vmem:[#allocation5 + $0xa4] sm:$0xff]
    %v166 = vld [vmem:[#allocation5 + $0xac] sm:$0xf]
    %v167 = vld [vmem:[#allocation5 + $0xb0] sm:$0xff]
    %v168 = vld [vmem:[#allocation5 + $0xb8] sm:$0xff]
    %v169 = vld [vmem:[#allocation5 + $0xc0] sm:$0xff]
    %v170 = vld [vmem:[#allocation5 + $0xc8] sm:$0xff]
    %v171 = vld [vmem:[#allocation5 + $0xd0] sm:$0xff]
    %v172 = vld [vmem:[#allocation5 + $0xd8] sm:$0xf]
    %v173 = vld [vmem:[#allocation5 + $0xdc] sm:$0xff]
    %v174 = vld [vmem:[#allocation5 + $0xe4] sm:$0xff]
    %v175 = vld [vmem:[#allocation5 + $0xec] sm:$0xff]
    %v176 = vld [vmem:[#allocation5 + $0xf4] sm:$0xff]
    %v177 = vld [vmem:[#allocation5 + $0xfc] sm:$0xff]
    %v178 = vld [vmem:[#allocation5 + $0x104] sm:$0xf]
    %v179 = vld [vmem:[#allocation5 + $0x108] sm:$0xff]
    %v180 = vld [vmem:[#allocation5 + $0x110] sm:$0xff]
    %v181 = vld [vmem:[#allocation5 + $0x118] sm:$0xff]
    %v182 = vld [vmem:[#allocation5 + $0x120] sm:$0xff]
    %v183 = vld [vmem:[#allocation5 + $0x128] sm:$0xff]
    %v184 = vld [vmem:[#allocation5 + $0x130] sm:$0xf]
    %v185 = vld [vmem:[#allocation5 + $0x134] sm:$0xff]
    %v186 = vld [vmem:[#allocation5 + $0x13c] sm:$0xff]
    %v187 = vld [vmem:[#allocation5 + $0x144] sm:$0xff]
    %v188 = vld [vmem:[#allocation5 + $0x14c] sm:$0xff]
    %v189 = vld [vmem:[#allocation5 + $0x154] sm:$0xff]
    %v190 = vld [vmem:[#allocation5 + $0x15c] sm:$0xf]
    %v191 = vld [vmem:[#allocation5 + $0x160] sm:$0xff]
    %v192 = vld [vmem:[#allocation5 + $0x168] sm:$0xff]
    %v193 = vld [vmem:[#allocation5 + $0x170] sm:$0xff]
    %v194 = vld [vmem:[#allocation5 + $0x178] sm:$0xff]
    %v195 = vld [vmem:[#allocation5 + $0x180] sm:$0xff]
    %v196 = vld [vmem:[#allocation5 + $0x188] sm:$0xf]
    %v197 = vld [vmem:[#allocation5 + $0x18c] sm:$0xff]
    %v198 = vld [vmem:[#allocation5 + $0x194] sm:$0xff]
    %v199 = vld [vmem:[#allocation5 + $0x19c] sm:$0xff]
    %v200 = vld [vmem:[#allocation5 + $0x1a4] sm:$0xff]
    %v201 = vld [vmem:[#allocation5 + $0x1ac] sm:$0xff]
    %v202 = vld [vmem:[#allocation5 + $0x1b4] sm:$0xf]
    %v203 = vld [vmem:[#allocation5 + $0x1b8] sm:$0xff]
    %v204 = vld [vmem:[#allocation5 + $0x1c0] sm:$0xff]
    %v205 = vld [vmem:[#allocation5 + $0x1c8] sm:$0xff]
    %v206 = vld [vmem:[#allocation5 + $0x1d0] sm:$0xff]
    %v207 = vld [vmem:[#allocation5 + $0x1d8] sm:$0xff]
    %v208 = vld [vmem:[#allocation5 + $0x1e0] sm:$0xf]
    %v209 = vld [vmem:[#allocation5 + $0x1e4] sm:$0xff]
    %v210 = vld [vmem:[#allocation5 + $0x1ec] sm:$0xff]
    %v211 = vld [vmem:[#allocation5 + $0x1f4] sm:$0xff]
    %v212 = vld [vmem:[#allocation5 + $0x1fc] sm:$0xff]
    %v213 = vld [vmem:[#allocation5 + $0x204] sm:$0xff]
    %v214 = vld [vmem:[#allocation5 + $0x20c] sm:$0xf]
    %v215 = vld [vmem:[#allocation5 + $0x210] sm:$0xff]
    %v216 = vld [vmem:[#allocation5 + $0x218] sm:$0xff]
    %v217 = vld [vmem:[#allocation5 + $0x220] sm:$0xff]
    %v218 = vld [vmem:[#allocation5 + $0x228] sm:$0xff]
    %v219 = vld [vmem:[#allocation5 + $0x230] sm:$0xff]
    %v220 = vld [vmem:[#allocation5 + $0x238] sm:$0xf]
    %v221 = vld [vmem:[#allocation5 + $0x23c] sm:$0xff]
    %v222 = vld [vmem:[#allocation5 + $0x244] sm:$0xff]
    %v223 = vld [vmem:[#allocation5 + $0x24c] sm:$0xff]
    %v224 = vld [vmem:[#allocation5 + $0x254] sm:$0xff]
    %v225 = vld [vmem:[#allocation5 + $0x25c] sm:$0xff]
    %v226 = vld [vmem:[#allocation5 + $0x264] sm:$0xf]
    %v227 = vld [vmem:[#allocation5 + $0x268] sm:$0xff]
    %v228 = vld [vmem:[#allocation5 + $0x270] sm:$0xff]
    %v229 = vld [vmem:[#allocation5 + $0x278] sm:$0xff]
    %v230 = vld [vmem:[#allocation5 + $0x280] sm:$0xff]
    %v231 = vld [vmem:[#allocation5 + $0x288] sm:$0xff]
    %v232 = vld [vmem:[#allocation5 + $0x290] sm:$0xf]
    %v233 = vld [vmem:[#allocation5 + $0x294] sm:$0xff]
    %v234 = vld [vmem:[#allocation5 + $0x29c] sm:$0xff]
    %v235 = vld [vmem:[#allocation5 + $0x2a4] sm:$0xff]
    %v236 = vld [vmem:[#allocation5 + $0x2ac] sm:$0xff]
    %v237 = vld [vmem:[#allocation5 + $0x2b4] sm:$0xff]
    %v238 = vld [vmem:[#allocation5 + $0x2bc] sm:$0xf]
    %v239 = vld [vmem:[#allocation5 + $0x2c0] sm:$0xff]
    %v240 = vld [vmem:[#allocation5 + $0x2c8] sm:$0xff]
    %v241 = vld [vmem:[#allocation5 + $0x2d0] sm:$0xff]
    %v242 = vld [vmem:[#allocation5 + $0x2d8] sm:$0xff]
    %v243 = vld [vmem:[#allocation5 + $0x2e0] sm:$0xff]
    %v244 = vld [vmem:[#allocation5 + $0x2e8] sm:$0xf]
    %v245 = vld [vmem:[#allocation5 + $0x2ec] sm:$0xff]
    %v246 = vld [vmem:[#allocation5 + $0x2f4] sm:$0xff]
    %v247 = vld [vmem:[#allocation5 + $0x2fc] sm:$0xff]
    %v248 = vld [vmem:[#allocation5 + $0x304] sm:$0xff]
    %v249 = vld [vmem:[#allocation5 + $0x30c] sm:$0xff]
    %v250 = vld [vmem:[#allocation5 + $0x314] sm:$0xf]
    %v251 = vld [vmem:[#allocation5 + $0x318] sm:$0xff]
    %v252 = vld [vmem:[#allocation5 + $0x320] sm:$0xff]
    %v253 = vld [vmem:[#allocation5 + $0x328] sm:$0xff]
    %v254 = vld [vmem:[#allocation5 + $0x330] sm:$0xff]
    %v255 = vld [vmem:[#allocation5 + $0x338] sm:$0xff]
    %v256 = vld [vmem:[#allocation5 + $0x340] sm:$0xf]
    %v257 = vld [vmem:[#allocation5 + $0x344] sm:$0xff]
    %v258 = vld [vmem:[#allocation5 + $0x34c] sm:$0xff]
    %v259 = vld [vmem:[#allocation5 + $0x354] sm:$0xff]
    %v260 = vld [vmem:[#allocation5 + $0x35c] sm:$0xff]
    %v261 = vld [vmem:[#allocation5 + $0x364] sm:$0xff]
    %v262 = vld [vmem:[#allocation5 + $0x36c] sm:$0xf]
    %v263 = vld [vmem:[#allocation5 + $0x370] sm:$0xff]
    %v264 = vld [vmem:[#allocation5 + $0x378] sm:$0xff]
    %v265 = vld [vmem:[#allocation5 + $0x380] sm:$0xff]
    %v266 = vld [vmem:[#allocation5 + $0x388] sm:$0xff]
    %v267 = vld [vmem:[#allocation5 + $0x390] sm:$0xff]
    %v268 = vld [vmem:[#allocation5 + $0x398] sm:$0xf]
    %v269 = vld [vmem:[#allocation5 + $0x39c] sm:$0xff]
    %v270 = vld [vmem:[#allocation5 + $0x3a4] sm:$0xff]
    %v271 = vld [vmem:[#allocation5 + $0x3ac] sm:$0xff]
    %v272 = vld [vmem:[#allocation5 + $0x3b4] sm:$0xff]
    %v273 = vld [vmem:[#allocation5 + $0x3bc] sm:$0xff]
    %v274 = vld [vmem:[#allocation5 + $0x3c4] sm:$0xf]
    %v275 = vld [vmem:[#allocation5 + $0x3c8] sm:$0xff]
    %v276 = vld [vmem:[#allocation5 + $0x3d0] sm:$0xff]
    %v277 = vld [vmem:[#allocation5 + $0x3d8] sm:$0xff]
    %v278 = vld [vmem:[#allocation5 + $0x3e0] sm:$0xff]
    %v279 = vld [vmem:[#allocation5 + $0x3e8] sm:$0xff]
    %v280 = vld [vmem:[#allocation5 + $0x3f0] sm:$0xf]
    %v281 = vld [vmem:[#allocation5 + $0x3f4] sm:$0xff]
    %v282 = vld [vmem:[#allocation5 + $0x3fc] sm:$0xff]
    %v283 = vld [vmem:[#allocation5 + $0x404] sm:$0xff]
    %v284 = vld [vmem:[#allocation5 + $0x40c] sm:$0xff]
    %v285 = vld [vmem:[#allocation5 + $0x414] sm:$0xff]
    %v286 = vld [vmem:[#allocation5 + $0x41c] sm:$0xf]
    %v287 = vld [vmem:[#allocation5 + $0x420] sm:$0xff]
    %v288 = vld [vmem:[#allocation5 + $0x428] sm:$0xff]
    %v289 = vld [vmem:[#allocation5 + $0x430] sm:$0xff]
    %v290 = vld [vmem:[#allocation5 + $0x438] sm:$0xff]
    %v291 = vld [vmem:[#allocation5 + $0x440] sm:$0xff]
    %v292 = vld [vmem:[#allocation5 + $0x448] sm:$0xf]
    %v293 = vld [vmem:[#allocation5 + $0x44c] sm:$0xff]
    %v294 = vld [vmem:[#allocation5 + $0x454] sm:$0xff]
    %v295 = vld [vmem:[#allocation5 + $0x45c] sm:$0xff]
    %v296 = vld [vmem:[#allocation5 + $0x464] sm:$0xff]
    %v297 = vld [vmem:[#allocation5 + $0x46c] sm:$0xff]
    %v298 = vld [vmem:[#allocation5 + $0x474] sm:$0xf]
    %v299 = vld [vmem:[#allocation5 + $0x478] sm:$0xff]
    %v300 = vld [vmem:[#allocation5 + $0x480] sm:$0xff]
    %v301 = vld [vmem:[#allocation5 + $0x488] sm:$0xff]
    %v302 = vld [vmem:[#allocation5 + $0x490] sm:$0xff]
    %v303 = vld [vmem:[#allocation5 + $0x498] sm:$0xff]
    %v304 = vld [vmem:[#allocation5 + $0x4a0] sm:$0xf]
    %v305 = vld [vmem:[#allocation5 + $0x4a4] sm:$0xff]
    %v306 = vld [vmem:[#allocation5 + $0x4ac] sm:$0xff]
    %v307 = vld [vmem:[#allocation5 + $0x4b4] sm:$0xff]
    %v308 = vld [vmem:[#allocation5 + $0x4bc] sm:$0xff]
    %v309 = vld [vmem:[#allocation5 + $0x4c4] sm:$0xff]
    %v310 = vld [vmem:[#allocation5 + $0x4cc] sm:$0xf]
    %v311 = vld [vmem:[#allocation5 + $0x4d0] sm:$0xff]
    %v312 = vld [vmem:[#allocation5 + $0x4d8] sm:$0xff]
    %v313 = vld [vmem:[#allocation5 + $0x4e0] sm:$0xff]
    %v314 = vld [vmem:[#allocation5 + $0x4e8] sm:$0xff]
    %v315 = vld [vmem:[#allocation5 + $0x4f0] sm:$0xff]
    %v316 = vld [vmem:[#allocation5 + $0x4f8] sm:$0xf]
    %v317 = vld [vmem:[#allocation5 + $0x4fc] sm:$0xff]
    %v318 = vld [vmem:[#allocation5 + $0x504] sm:$0xff]
    %v319 = vld [vmem:[#allocation5 + $0x50c] sm:$0xff]
    %v320 = vld [vmem:[#allocation5 + $0x514] sm:$0xff]
    %v321 = vld [vmem:[#allocation5 + $0x51c] sm:$0xff]
    %v322 = vld [vmem:[#allocation5 + $0x524] sm:$0xf]
    %v323 = vld [vmem:[#allocation5 + $0x528] sm:$0xff]
    %v324 = vld [vmem:[#allocation5 + $0x530] sm:$0xff]
    %v325 = vld [vmem:[#allocation5 + $0x538] sm:$0xff]
    %v326 = vld [vmem:[#allocation5 + $0x540] sm:$0xff]
    %v327 = vld [vmem:[#allocation5 + $0x548] sm:$0xff]
    %v328 = vld [vmem:[#allocation5 + $0x550] sm:$0xf]
    %v329 = vld [vmem:[#allocation5 + $0x554] sm:$0xff]
    %v330 = vld [vmem:[#allocation5 + $0x55c] sm:$0xff]
    %v331 = vld [vmem:[#allocation5 + $0x564] sm:$0xff]
    %v332 = vld [vmem:[#allocation5 + $0x56c] sm:$0xff]
    %v333 = vld [vmem:[#allocation5 + $0x574] sm:$0xff]
    %v334 = vld [vmem:[#allocation5 + $0x57c] sm:$0xf]
    %v335 = vld [vmem:[#allocation5 + $0x580] sm:$0xff]
    %v336 = vld [vmem:[#allocation5 + $0x588] sm:$0xff]
    %v337 = vld [vmem:[#allocation5 + $0x590] sm:$0xff]
    %v338 = vld [vmem:[#allocation5 + $0x598] sm:$0xff]
    %v339 = vld [vmem:[#allocation5 + $0x5a0] sm:$0xff]
    %v340 = vld [vmem:[#allocation5 + $0x5a8] sm:$0xf]
    %v341 = vld [vmem:[#allocation5 + $0x5ac] sm:$0xff]
    %v342 = vld [vmem:[#allocation5 + $0x5b4] sm:$0xff]
    %v343 = vld [vmem:[#allocation5 + $0x5bc] sm:$0xff]
    %v344 = vld [vmem:[#allocation5 + $0x5c4] sm:$0xff]
    %v345 = vld [vmem:[#allocation5 + $0x5cc] sm:$0xff]
    %v346 = vld [vmem:[#allocation5 + $0x5d4] sm:$0xf]
    %v347 = vld [vmem:[#allocation5 + $0x5d8] sm:$0xff]
    %v348 = vld [vmem:[#allocation5 + $0x5e0] sm:$0xff]
    %v349 = vld [vmem:[#allocation5 + $0x5e8] sm:$0xff]
    %v350 = vld [vmem:[#allocation5 + $0x5f0] sm:$0xff]
    %v351 = vld [vmem:[#allocation5 + $0x5f8] sm:$0xff]
    %v352 = vld [vmem:[#allocation5 + $0x600] sm:$0xf]
    %v353 = vld [vmem:[#allocation5 + $0x604] sm:$0xff]
    %v354 = vld [vmem:[#allocation5 + $0x60c] sm:$0xff]
    %v355 = vld [vmem:[#allocation5 + $0x614] sm:$0xff]
    %v356 = vld [vmem:[#allocation5 + $0x61c] sm:$0xff]
    %v357 = vld [vmem:[#allocation5 + $0x624] sm:$0xff]
    %v358 = vld [vmem:[#allocation5 + $0x62c] sm:$0xf]
    %v359 = vld [vmem:[#allocation5 + $0x630] sm:$0xff]
    %v360 = vld [vmem:[#allocation5 + $0x638] sm:$0xff]
    %v361 = vld [vmem:[#allocation5 + $0x640] sm:$0xff]
    %v362 = vld [vmem:[#allocation5 + $0x648] sm:$0xff]
    %v363 = vld [vmem:[#allocation5 + $0x650] sm:$0xff]
    %v364 = vld [vmem:[#allocation5 + $0x658] sm:$0xf]
    %v365 = vld [vmem:[#allocation5 + $0x65c] sm:$0xff]
    %v366 = vld [vmem:[#allocation5 + $0x664] sm:$0xff]
    %v367 = vld [vmem:[#allocation5 + $0x66c] sm:$0xff]
    %v368 = vld [vmem:[#allocation5 + $0x674] sm:$0xff]
    %v369 = vld [vmem:[#allocation5 + $0x67c] sm:$0xff]
    %v370 = vld [vmem:[#allocation5 + $0x684] sm:$0xf]
    %v371 = vld [vmem:[#allocation5 + $0x688] sm:$0xff]
    %v372 = vld [vmem:[#allocation5 + $0x690] sm:$0xff]
    %v373 = vld [vmem:[#allocation5 + $0x698] sm:$0xff]
    %v374 = vld [vmem:[#allocation5 + $0x6a0] sm:$0xff]
    %v375 = vld [vmem:[#allocation5 + $0x6a8] sm:$0xff]
    %v376 = vld [vmem:[#allocation5 + $0x6b0] sm:$0xf]
    %v377 = vld [vmem:[#allocation5 + $0x6b4] sm:$0xff]
    %v378 = vld [vmem:[#allocation5 + $0x6bc] sm:$0xff]
    %v379 = vld [vmem:[#allocation5 + $0x6c4] sm:$0xff]
    %v380 = vld [vmem:[#allocation5 + $0x6cc] sm:$0xff]
    %v381 = vld [vmem:[#allocation5 + $0x6d4] sm:$0xff]
    %v382 = vld [vmem:[#allocation5 + $0x6dc] sm:$0xf]
    %v383 = vld [vmem:[#allocation5 + $0x6e0] sm:$0xff]
    %v384 = vld [vmem:[#allocation5 + $0x6e8] sm:$0xff]
    %v385 = vld [vmem:[#allocation5 + $0x6f0] sm:$0xff]
    %v386 = vld [vmem:[#allocation5 + $0x6f8] sm:$0xff]
    %v387 = vld [vmem:[#allocation5 + $0x700] sm:$0xff]
    %v388 = vld [vmem:[#allocation5 + $0x708] sm:$0xf]
    %v389 = vld [vmem:[#allocation5 + $0x70c] sm:$0xff]
    %v390 = vld [vmem:[#allocation5 + $0x714] sm:$0xff]
    %v391 = vld [vmem:[#allocation5 + $0x71c] sm:$0xff]
    %v392 = vld [vmem:[#allocation5 + $0x724] sm:$0xff]
    %v393 = vld [vmem:[#allocation5 + $0x72c] sm:$0xff]
    %v394 = vld [vmem:[#allocation5 + $0x734] sm:$0xf]
    %v395 = vld [vmem:[#allocation5 + $0x738] sm:$0xff]
    %v396 = vld [vmem:[#allocation5 + $0x740] sm:$0xff]
    %v397 = vld [vmem:[#allocation5 + $0x748] sm:$0xff]
    %v398 = vld [vmem:[#allocation5 + $0x750] sm:$0xff]
    %v399 = vld [vmem:[#allocation5 + $0x758] sm:$0xff]
    %v400 = vld [vmem:[#allocation5 + $0x760] sm:$0xf]
    %v401 = vld [vmem:[#allocation5 + $0x764] sm:$0xff]
    %v402 = vld [vmem:[#allocation5 + $0x76c] sm:$0xff]
    %v403 = vld [vmem:[#allocation5 + $0x774] sm:$0xff]
    %v404 = vld [vmem:[#allocation5 + $0x77c] sm:$0xff]
    %v405 = vld [vmem:[#allocation5 + $0x784] sm:$0xff]
    %v406 = vld [vmem:[#allocation5 + $0x78c] sm:$0xf]
    %v407 = vld [vmem:[#allocation5 + $0x790] sm:$0xff]
    %v408 = vld [vmem:[#allocation5 + $0x798] sm:$0xff]
    %v409 = vld [vmem:[#allocation5 + $0x7a0] sm:$0xff]
    %v410 = vld [vmem:[#allocation5 + $0x7a8] sm:$0xff]
    %v411 = vld [vmem:[#allocation5 + $0x7b0] sm:$0xff]
    %v412 = vld [vmem:[#allocation5 + $0x7b8] sm:$0xf]
    %v413 = vld [vmem:[#allocation5 + $0x7bc] sm:$0xff]
    %v414 = vld [vmem:[#allocation5 + $0x7c4] sm:$0xff]
    %v415 = vld [vmem:[#allocation5 + $0x7cc] sm:$0xff]
    %v416 = vld [vmem:[#allocation5 + $0x7d4] sm:$0xff]
    %v417 = vld [vmem:[#allocation5 + $0x7dc] sm:$0xff]
    %v418 = vld [vmem:[#allocation5 + $0x7e4] sm:$0xf]
    %v419 = vld [vmem:[#allocation5 + $0x7e8] sm:$0xff]
    %v420 = vld [vmem:[#allocation5 + $0x7f0] sm:$0xff]
    %v421 = vld [vmem:[#allocation5 + $0x7f8] sm:$0xff]
    %v422 = vld [vmem:[#allocation5 + $0x800] sm:$0xff]
    %v423 = vld [vmem:[#allocation5 + $0x808] sm:$0xff]
    %v424 = vld [vmem:[#allocation5 + $0x810] sm:$0xf]
    %v425 = vld [vmem:[#allocation5 + $0x814] sm:$0xff]
    %v426 = vld [vmem:[#allocation5 + $0x81c] sm:$0xff]
    %v427 = vld [vmem:[#allocation5 + $0x824] sm:$0xff]
    %v428 = vld [vmem:[#allocation5 + $0x82c] sm:$0xff]
    %v429 = vld [vmem:[#allocation5 + $0x834] sm:$0xff]
    %v430 = vld [vmem:[#allocation5 + $0x83c] sm:$0xf]
    %v431 = vld [vmem:[#allocation5 + $0x840] sm:$0xff]
    %v432 = vld [vmem:[#allocation5 + $0x848] sm:$0xff]
    %v433 = vld [vmem:[#allocation5 + $0x850] sm:$0xff]
    %v434 = vld [vmem:[#allocation5 + $0x858] sm:$0xff]
    %v435 = vld [vmem:[#allocation5 + $0x860] sm:$0xff]
    %v436 = vld [vmem:[#allocation5 + $0x868] sm:$0xf]
    %v437 = vld [vmem:[#allocation5 + $0x86c] sm:$0xff]
    %v438 = vld [vmem:[#allocation5 + $0x874] sm:$0xff]
    %v439 = vld [vmem:[#allocation5 + $0x87c] sm:$0xff]
    %v440 = vld [vmem:[#allocation5 + $0x884] sm:$0xff]
    %v441 = vld [vmem:[#allocation5 + $0x88c] sm:$0xff]
    %v442 = vld [vmem:[#allocation5 + $0x894] sm:$0xf]
    %v443 = vld [vmem:[#allocation5 + $0x898] sm:$0xff]
    %v444 = vld [vmem:[#allocation5 + $0x8a0] sm:$0xff]
    %v445 = vld [vmem:[#allocation5 + $0x8a8] sm:$0xff]
    %v446 = vld [vmem:[#allocation5 + $0x8b0] sm:$0xff]
    %v447 = vld [vmem:[#allocation5 + $0x8b8] sm:$0xff]
    %v448 = vld [vmem:[#allocation5 + $0x8c0] sm:$0xf]
    %v449 = vld [vmem:[#allocation5 + $0x8c4] sm:$0xff]
    %v450 = vld [vmem:[#allocation5 + $0x8cc] sm:$0xff]
    %v451 = vld [vmem:[#allocation5 + $0x8d4] sm:$0xff]
    %v452 = vld [vmem:[#allocation5 + $0x8dc] sm:$0xff]
    %v453 = vld [vmem:[#allocation5 + $0x8e4] sm:$0xff]
    %v454 = vld [vmem:[#allocation5 + $0x8ec] sm:$0xf]
    %v455 = vld [vmem:[#allocation5 + $0x8f0] sm:$0xff]
    %v456 = vld [vmem:[#allocation5 + $0x8f8] sm:$0xff]
    %v457 = vld [vmem:[#allocation5 + $0x900] sm:$0xff]
    %v458 = vld [vmem:[#allocation5 + $0x908] sm:$0xff]
    %v459 = vld [vmem:[#allocation5 + $0x910] sm:$0xff]
    %v460 = vld [vmem:[#allocation5 + $0x918] sm:$0xf]
    %v461 = vld [vmem:[#allocation5 + $0x91c] sm:$0xff]
    %v462 = vld [vmem:[#allocation5 + $0x924] sm:$0xff]
    %v463 = vld [vmem:[#allocation5 + $0x92c] sm:$0xff]
    %v464 = vld [vmem:[#allocation5 + $0x934] sm:$0xff]
    %v465 = vld [vmem:[#allocation5 + $0x93c] sm:$0xff]
    %v466 = vld [vmem:[#allocation5 + $0x944] sm:$0xf]
    %v467 = vld [vmem:[#allocation5 + $0x948] sm:$0xff]
    %v468 = vld [vmem:[#allocation5 + $0x950] sm:$0xff]
    %v469 = vld [vmem:[#allocation5 + $0x958] sm:$0xff]
    %v470 = vld [vmem:[#allocation5 + $0x960] sm:$0xff]
    %v471 = vld [vmem:[#allocation5 + $0x968] sm:$0xff]
    %v472 = vld [vmem:[#allocation5 + $0x970] sm:$0xf]
    %v473 = vld [vmem:[#allocation5 + $0x974] sm:$0xff]
    %v474 = vld [vmem:[#allocation5 + $0x97c] sm:$0xff]
    %v475 = vld [vmem:[#allocation5 + $0x984] sm:$0xff]
    %v476 = vld [vmem:[#allocation5 + $0x98c] sm:$0xff]
    %v477 = vld [vmem:[#allocation5 + $0x994] sm:$0xff]
    %v478 = vld [vmem:[#allocation5 + $0x99c] sm:$0xf]
    %v479 = vld [vmem:[#allocation5 + $0x9a0] sm:$0xff]
    %v480 = vld [vmem:[#allocation5 + $0x9a8] sm:$0xff]
    %v481 = vld [vmem:[#allocation5 + $0x9b0] sm:$0xff]
    %v482 = vld [vmem:[#allocation5 + $0x9b8] sm:$0xff]
    %v483 = vld [vmem:[#allocation5 + $0x9c0] sm:$0xff]
    %v484 = vld [vmem:[#allocation5 + $0x9c8] sm:$0xf]
    %v485 = vld [vmem:[#allocation5 + $0x9cc] sm:$0xff]
    %v486 = vld [vmem:[#allocation5 + $0x9d4] sm:$0xff]
    %v487 = vld [vmem:[#allocation5 + $0x9dc] sm:$0xff]
    %v488 = vld [vmem:[#allocation5 + $0x9e4] sm:$0xff]
    %v489 = vld [vmem:[#allocation5 + $0x9ec] sm:$0xff]
    %v490 = vld [vmem:[#allocation5 + $0x9f4] sm:$0xf]
    %v491 = vld [vmem:[#allocation5 + $0x9f8] sm:$0xff]
    %v492 = vld [vmem:[#allocation5 + $0xa00] sm:$0xff]
    %v493 = vld [vmem:[#allocation5 + $0xa08] sm:$0xff]
    %v494 = vld [vmem:[#allocation5 + $0xa10] sm:$0xff]
    %v495 = vld [vmem:[#allocation5 + $0xa18] sm:$0xff]
    %v496 = vld [vmem:[#allocation5 + $0xa20] sm:$0xf]
    %v497 = vld [vmem:[#allocation5 + $0xa24] sm:$0xff]
    %v498 = vld [vmem:[#allocation5 + $0xa2c] sm:$0xff]
    %v499 = vld [vmem:[#allocation5 + $0xa34] sm:$0xff]
    %v500 = vld [vmem:[#allocation5 + $0xa3c] sm:$0xff]
    %v501 = vld [vmem:[#allocation5 + $0xa44] sm:$0xff]
    %v502 = vld [vmem:[#allocation5 + $0xa4c] sm:$0xf]
    %v503 = vld [vmem:[#allocation5 + $0xa50] sm:$0xff]
    %v504 = vld [vmem:[#allocation5 + $0xa58] sm:$0xff]
    %v505 = vld [vmem:[#allocation5 + $0xa60] sm:$0xff]
    %v506 = vld [vmem:[#allocation5 + $0xa68] sm:$0xff]
    %v507 = vld [vmem:[#allocation5 + $0xa70] sm:$0xff]
    %v508 = vld [vmem:[#allocation5 + $0xa78] sm:$0xf]
    %v509 = vld [vmem:[#allocation5 + $0xa7c] sm:$0xff]
    %v510 = vld [vmem:[#allocation5 + $0xa84] sm:$0xff]
    %v511 = vld [vmem:[#allocation5 + $0xa8c] sm:$0xff]
    %v512 = vld [vmem:[#allocation5 + $0xa94] sm:$0xff]
    %v513 = vld [vmem:[#allocation5 + $0xa9c] sm:$0xff]
    %v514 = vld [vmem:[#allocation5 + $0xaa4] sm:$0xf]
    %v515 = vld [vmem:[#allocation5 + $0xaa8] sm:$0xff]
    %v516 = vld [vmem:[#allocation5 + $0xab0] sm:$0xff]
    %v517 = vld [vmem:[#allocation5 + $0xab8] sm:$0xff]
    %v518 = vld [vmem:[#allocation5 + $0xac0] sm:$0xff]
    %v519 = vld [vmem:[#allocation5 + $0xac8] sm:$0xff]
    %v520 = vld [vmem:[#allocation5 + $0xad0] sm:$0xf]
    %v521 = vld [vmem:[#allocation5 + $0xad4] sm:$0xff]
    %v522 = vld [vmem:[#allocation5 + $0xadc] sm:$0xff]
    %v523 = vld [vmem:[#allocation5 + $0xae4] sm:$0xff]
    %v524 = vld [vmem:[#allocation5 + $0xaec] sm:$0xff]
    %v525 = vld [vmem:[#allocation5 + $0xaf4] sm:$0xff]
    %v526 = vld [vmem:[#allocation5 + $0xafc] sm:$0xf]
    %v527 = vld [vmem:[#allocation7] sm:$0xff]
    %v528 = vld [vmem:[#allocation7 + $0x8] sm:$0x7]
    %v531 = vlaneseq
    %v532 = vshrl.u32 %v531, 7
    %v533 = vsub.s32 0, %v532
    %v534 = vrot.slane %v527, %v533
    %v535 = vlaneseq
    %v536 = vshrl.u32 %v535, 7
    %v537 = vsub.s32 1, %v536
    %v538 = vrot.slane %v527, %v537
    %v539 = vlaneseq
    %v540 = vshrl.u32 %v539, 7
    %v541 = vsub.s32 2, %v540
    %v542 = vrot.slane %v527, %v541
    %v543 = vlaneseq
    %v544 = vshrl.u32 %v543, 7
    %v545 = vsub.s32 3, %v544
    %v546 = vrot.slane %v527, %v545
    %v547 = vlaneseq
    %v548 = vshrl.u32 %v547, 7
    %v549 = vsub.s32 4, %v548
    %v550 = vrot.slane %v527, %v549
    %v551 = vlaneseq
    %v552 = vshrl.u32 %v551, 7
    %v553 = vsub.s32 5, %v552
    %v554 = vrot.slane %v527, %v553
    %v555 = vlaneseq
    %v556 = vshrl.u32 %v555, 7
    %v557 = vsub.s32 6, %v556
    %v558 = vrot.slane %v527, %v557
    %v559 = vlaneseq
    %v560 = vshrl.u32 %v559, 7
    %v561 = vsub.s32 7, %v560
    %v562 = vrot.slane %v527, %v561
    %v563 = vlaneseq
    %v564 = vshrl.u32 %v563, 7
    %v565 = vsub.s32 0, %v564
    %v566 = vrot.slane %v528, %v565
    %v567 = vlaneseq
    %v568 = vshrl.u32 %v567, 7
    %v569 = vsub.s32 1, %v568
    %v570 = vrot.slane %v528, %v569
    %v571 = vlaneseq
    %v572 = vshrl.u32 %v571, 7
    %v573 = vsub.s32 2, %v572
    %v574 = vrot.slane %v528, %v573
    %v970 = vunpack.c.l.b16 %v143
    %v971 = vunpack.c.h.b16 %v143
    %v972 = vunpack.c.l.b16 %v144
    %v973 = vunpack.c.h.b16 %v144
    %v974 = vunpack.c.l.b16 %v145
    %v975 = vunpack.c.h.b16 %v145
    %v976 = vunpack.c.l.b16 %v146
    %v977 = vunpack.c.h.b16 %v146
    %v978 = vunpack.c.l.b16 %v147
    %v979 = vunpack.c.h.b16 %v147
    %v980 = vunpack.c.l.b16 %v148
    %v981 = vunpack.c.l.b16 %v149
    %v982 = vunpack.c.h.b16 %v149
    %v983 = vunpack.c.l.b16 %v150
    %v984 = vunpack.c.h.b16 %v150
    %v985 = vunpack.c.l.b16 %v151
    %v986 = vunpack.c.h.b16 %v151
    %v987 = vunpack.c.l.b16 %v152
    %v988 = vunpack.c.h.b16 %v152
    %v989 = vunpack.c.l.b16 %v153
    %v990 = vunpack.c.h.b16 %v153
    %v991 = vunpack.c.l.b16 %v154
    %v992 = vunpack.c.l.b16 %v155
    %v993 = vunpack.c.h.b16 %v155
    %v994 = vunpack.c.l.b16 %v156
    %v995 = vunpack.c.h.b16 %v156
    %v996 = vunpack.c.l.b16 %v157
    %v997 = vunpack.c.h.b16 %v157
    %v998 = vunpack.c.l.b16 %v158
    %v999 = vunpack.c.h.b16 %v158
    %v1000 = vunpack.c.l.b16 %v159
    %v1001 = vunpack.c.h.b16 %v159
    %v1002 = vunpack.c.l.b16 %v160
    %v1003 = vunpack.c.l.b16 %v161
    %v1004 = vunpack.c.h.b16 %v161
    %v1005 = vunpack.c.l.b16 %v162
    %v1006 = vunpack.c.h.b16 %v162
    %v1007 = vunpack.c.l.b16 %v163
    %v1008 = vunpack.c.h.b16 %v163
    %v1009 = vunpack.c.l.b16 %v164
    %v1010 = vunpack.c.h.b16 %v164
    %v1011 = vunpack.c.l.b16 %v165
    %v1012 = vunpack.c.h.b16 %v165
    %v1013 = vunpack.c.l.b16 %v166
    %v1014 = vunpack.c.l.b16 %v167
    %v1015 = vunpack.c.h.b16 %v167
    %v1016 = vunpack.c.l.b16 %v168
    %v1017 = vunpack.c.h.b16 %v168
    %v1018 = vunpack.c.l.b16 %v169
    %v1019 = vunpack.c.h.b16 %v169
    %v1020 = vunpack.c.l.b16 %v170
    %v1021 = vunpack.c.h.b16 %v170
    %v1022 = vunpack.c.l.b16 %v171
    %v1023 = vunpack.c.h.b16 %v171
    %v1024 = vunpack.c.l.b16 %v172
    %v1025 = vunpack.c.l.b16 %v173
    %v1026 = vunpack.c.h.b16 %v173
    %v1027 = vunpack.c.l.b16 %v174
    %v1028 = vunpack.c.h.b16 %v174
    %v1029 = vunpack.c.l.b16 %v175
    %v1030 = vunpack.c.h.b16 %v175
    %v1031 = vunpack.c.l.b16 %v176
    %v1032 = vunpack.c.h.b16 %v176
    %v1033 = vunpack.c.l.b16 %v177
    %v1034 = vunpack.c.h.b16 %v177
    %v1035 = vunpack.c.l.b16 %v178
    %v1036 = vunpack.c.l.b16 %v179
    %v1037 = vunpack.c.h.b16 %v179
    %v1038 = vunpack.c.l.b16 %v180
    %v1039 = vunpack.c.h.b16 %v180
    %v1040 = vunpack.c.l.b16 %v181
    %v1041 = vunpack.c.h.b16 %v181
    %v1042 = vunpack.c.l.b16 %v182
    %v1043 = vunpack.c.h.b16 %v182
    %v1044 = vunpack.c.l.b16 %v183
    %v1045 = vunpack.c.h.b16 %v183
    %v1046 = vunpack.c.l.b16 %v184
    %v1047 = vunpack.c.l.b16 %v185
    %v1048 = vunpack.c.h.b16 %v185
    %v1049 = vunpack.c.l.b16 %v186
    %v1050 = vunpack.c.h.b16 %v186
    %v1051 = vunpack.c.l.b16 %v187
    %v1052 = vunpack.c.h.b16 %v187
    %v1053 = vunpack.c.l.b16 %v188
    %v1054 = vunpack.c.h.b16 %v188
    %v1055 = vunpack.c.l.b16 %v189
    %v1056 = vunpack.c.h.b16 %v189
    %v1057 = vunpack.c.l.b16 %v190
    %v1058 = vunpack.c.l.b16 %v191
    %v1059 = vunpack.c.h.b16 %v191
    %v1060 = vunpack.c.l.b16 %v192
    %v1061 = vunpack.c.h.b16 %v192
    %v1062 = vunpack.c.l.b16 %v193
    %v1063 = vunpack.c.h.b16 %v193
    %v1064 = vunpack.c.l.b16 %v194
    %v1065 = vunpack.c.h.b16 %v194
    %v1066 = vunpack.c.l.b16 %v195
    %v1067 = vunpack.c.h.b16 %v195
    %v1068 = vunpack.c.l.b16 %v196
    %v1069 = vunpack.c.l.b16 %v197
    %v1070 = vunpack.c.h.b16 %v197
    %v1071 = vunpack.c.l.b16 %v198
    %v1072 = vunpack.c.h.b16 %v198
    %v1073 = vunpack.c.l.b16 %v199
    %v1074 = vunpack.c.h.b16 %v199
    %v1075 = vunpack.c.l.b16 %v200
    %v1076 = vunpack.c.h.b16 %v200
    %v1077 = vunpack.c.l.b16 %v201
    %v1078 = vunpack.c.h.b16 %v201
    %v1079 = vunpack.c.l.b16 %v202
    %v1080 = vunpack.c.l.b16 %v203
    %v1081 = vunpack.c.h.b16 %v203
    %v1082 = vunpack.c.l.b16 %v204
    %v1083 = vunpack.c.h.b16 %v204
    %v1084 = vunpack.c.l.b16 %v205
    %v1085 = vunpack.c.h.b16 %v205
    %v1086 = vunpack.c.l.b16 %v206
    %v1087 = vunpack.c.h.b16 %v206
    %v1088 = vunpack.c.l.b16 %v207
    %v1089 = vunpack.c.h.b16 %v207
    %v1090 = vunpack.c.l.b16 %v208
    %v1091 = vunpack.c.l.b16 %v209
    %v1092 = vunpack.c.h.b16 %v209
    %v1093 = vunpack.c.l.b16 %v210
    %v1094 = vunpack.c.h.b16 %v210
    %v1095 = vunpack.c.l.b16 %v211
    %v1096 = vunpack.c.h.b16 %v211
    %v1097 = vunpack.c.l.b16 %v212
    %v1098 = vunpack.c.h.b16 %v212
    %v1099 = vunpack.c.l.b16 %v213
    %v1100 = vunpack.c.h.b16 %v213
    %v1101 = vunpack.c.l.b16 %v214
    %v1102 = vunpack.c.l.b16 %v215
    %v1103 = vunpack.c.h.b16 %v215
    %v1104 = vunpack.c.l.b16 %v216
    %v1105 = vunpack.c.h.b16 %v216
    %v1106 = vunpack.c.l.b16 %v217
    %v1107 = vunpack.c.h.b16 %v217
    %v1108 = vunpack.c.l.b16 %v218
    %v1109 = vunpack.c.h.b16 %v218
    %v1110 = vunpack.c.l.b16 %v219
    %v1111 = vunpack.c.h.b16 %v219
    %v1112 = vunpack.c.l.b16 %v220
    %v1113 = vunpack.c.l.b16 %v221
    %v1114 = vunpack.c.h.b16 %v221
    %v1115 = vunpack.c.l.b16 %v222
    %v1116 = vunpack.c.h.b16 %v222
    %v1117 = vunpack.c.l.b16 %v223
    %v1118 = vunpack.c.h.b16 %v223
    %v1119 = vunpack.c.l.b16 %v224
    %v1120 = vunpack.c.h.b16 %v224
    %v1121 = vunpack.c.l.b16 %v225
    %v1122 = vunpack.c.h.b16 %v225
    %v1123 = vunpack.c.l.b16 %v226
    %v1124 = vunpack.c.l.b16 %v227
    %v1125 = vunpack.c.h.b16 %v227
    %v1126 = vunpack.c.l.b16 %v228
    %v1127 = vunpack.c.h.b16 %v228
    %v1128 = vunpack.c.l.b16 %v229
    %v1129 = vunpack.c.h.b16 %v229
    %v1130 = vunpack.c.l.b16 %v230
    %v1131 = vunpack.c.h.b16 %v230
    %v1132 = vunpack.c.l.b16 %v231
    %v1133 = vunpack.c.h.b16 %v231
    %v1134 = vunpack.c.l.b16 %v232
    %v1135 = vunpack.c.l.b16 %v233
    %v1136 = vunpack.c.h.b16 %v233
    %v1137 = vunpack.c.l.b16 %v234
    %v1138 = vunpack.c.h.b16 %v234
    %v1139 = vunpack.c.l.b16 %v235
    %v1140 = vunpack.c.h.b16 %v235
    %v1141 = vunpack.c.l.b16 %v236
    %v1142 = vunpack.c.h.b16 %v236
    %v1143 = vunpack.c.l.b16 %v237
    %v1144 = vunpack.c.h.b16 %v237
    %v1145 = vunpack.c.l.b16 %v238
    %v1146 = vunpack.c.l.b16 %v239
    %v1147 = vunpack.c.h.b16 %v239
    %v1148 = vunpack.c.l.b16 %v240
    %v1149 = vunpack.c.h.b16 %v240
    %v1150 = vunpack.c.l.b16 %v241
    %v1151 = vunpack.c.h.b16 %v241
    %v1152 = vunpack.c.l.b16 %v242
    %v1153 = vunpack.c.h.b16 %v242
    %v1154 = vunpack.c.l.b16 %v243
    %v1155 = vunpack.c.h.b16 %v243
    %v1156 = vunpack.c.l.b16 %v244
    %v1157 = vunpack.c.l.b16 %v245
    %v1158 = vunpack.c.h.b16 %v245
    %v1159 = vunpack.c.l.b16 %v246
    %v1160 = vunpack.c.h.b16 %v246
    %v1161 = vunpack.c.l.b16 %v247
    %v1162 = vunpack.c.h.b16 %v247
    %v1163 = vunpack.c.l.b16 %v248
    %v1164 = vunpack.c.h.b16 %v248
    %v1165 = vunpack.c.l.b16 %v249
    %v1166 = vunpack.c.h.b16 %v249
    %v1167 = vunpack.c.l.b16 %v250
    %v1168 = vunpack.c.l.b16 %v251
    %v1169 = vunpack.c.h.b16 %v251
    %v1170 = vunpack.c.l.b16 %v252
    %v1171 = vunpack.c.h.b16 %v252
    %v1172 = vunpack.c.l.b16 %v253
    %v1173 = vunpack.c.h.b16 %v253
    %v1174 = vunpack.c.l.b16 %v254
    %v1175 = vunpack.c.h.b16 %v254
    %v1176 = vunpack.c.l.b16 %v255
    %v1177 = vunpack.c.h.b16 %v255
    %v1178 = vunpack.c.l.b16 %v256
    %v1179 = vunpack.c.l.b16 %v257
    %v1180 = vunpack.c.h.b16 %v257
    %v1181 = vunpack.c.l.b16 %v258
    %v1182 = vunpack.c.h.b16 %v258
    %v1183 = vunpack.c.l.b16 %v259
    %v1184 = vunpack.c.h.b16 %v259
    %v1185 = vunpack.c.l.b16 %v260
    %v1186 = vunpack.c.h.b16 %v260
    %v1187 = vunpack.c.l.b16 %v261
    %v1188 = vunpack.c.h.b16 %v261
    %v1189 = vunpack.c.l.b16 %v262
    %v1190 = vunpack.c.l.b16 %v263
    %v1191 = vunpack.c.h.b16 %v263
    %v1192 = vunpack.c.l.b16 %v264
    %v1193 = vunpack.c.h.b16 %v264
    %v1194 = vunpack.c.l.b16 %v265
    %v1195 = vunpack.c.h.b16 %v265
    %v1196 = vunpack.c.l.b16 %v266
    %v1197 = vunpack.c.h.b16 %v266
    %v1198 = vunpack.c.l.b16 %v267
    %v1199 = vunpack.c.h.b16 %v267
    %v1200 = vunpack.c.l.b16 %v268
    %v1201 = vunpack.c.l.b16 %v269
    %v1202 = vunpack.c.h.b16 %v269
    %v1203 = vunpack.c.l.b16 %v270
    %v1204 = vunpack.c.h.b16 %v270
    %v1205 = vunpack.c.l.b16 %v271
    %v1206 = vunpack.c.h.b16 %v271
    %v1207 = vunpack.c.l.b16 %v272
    %v1208 = vunpack.c.h.b16 %v272
    %v1209 = vunpack.c.l.b16 %v273
    %v1210 = vunpack.c.h.b16 %v273
    %v1211 = vunpack.c.l.b16 %v274
    %v1212 = vunpack.c.l.b16 %v275
    %v1213 = vunpack.c.h.b16 %v275
    %v1214 = vunpack.c.l.b16 %v276
    %v1215 = vunpack.c.h.b16 %v276
    %v1216 = vunpack.c.l.b16 %v277
    %v1217 = vunpack.c.h.b16 %v277
    %v1218 = vunpack.c.l.b16 %v278
    %v1219 = vunpack.c.h.b16 %v278
    %v1220 = vunpack.c.l.b16 %v279
    %v1221 = vunpack.c.h.b16 %v279
    %v1222 = vunpack.c.l.b16 %v280
    %v1223 = vunpack.c.l.b16 %v281
    %v1224 = vunpack.c.h.b16 %v281
    %v1225 = vunpack.c.l.b16 %v282
    %v1226 = vunpack.c.h.b16 %v282
    %v1227 = vunpack.c.l.b16 %v283
    %v1228 = vunpack.c.h.b16 %v283
    %v1229 = vunpack.c.l.b16 %v284
    %v1230 = vunpack.c.h.b16 %v284
    %v1231 = vunpack.c.l.b16 %v285
    %v1232 = vunpack.c.h.b16 %v285
    %v1233 = vunpack.c.l.b16 %v286
    %v1234 = vunpack.c.l.b16 %v287
    %v1235 = vunpack.c.h.b16 %v287
    %v1236 = vunpack.c.l.b16 %v288
    %v1237 = vunpack.c.h.b16 %v288
    %v1238 = vunpack.c.l.b16 %v289
    %v1239 = vunpack.c.h.b16 %v289
    %v1240 = vunpack.c.l.b16 %v290
    %v1241 = vunpack.c.h.b16 %v290
    %v1242 = vunpack.c.l.b16 %v291
    %v1243 = vunpack.c.h.b16 %v291
    %v1244 = vunpack.c.l.b16 %v292
    %v1245 = vunpack.c.l.b16 %v293
    %v1246 = vunpack.c.h.b16 %v293
    %v1247 = vunpack.c.l.b16 %v294
    %v1248 = vunpack.c.h.b16 %v294
    %v1249 = vunpack.c.l.b16 %v295
    %v1250 = vunpack.c.h.b16 %v295
    %v1251 = vunpack.c.l.b16 %v296
    %v1252 = vunpack.c.h.b16 %v296
    %v1253 = vunpack.c.l.b16 %v297
    %v1254 = vunpack.c.h.b16 %v297
    %v1255 = vunpack.c.l.b16 %v298
    %v1256 = vunpack.c.l.b16 %v299
    %v1257 = vunpack.c.h.b16 %v299
    %v1258 = vunpack.c.l.b16 %v300
    %v1259 = vunpack.c.h.b16 %v300
    %v1260 = vunpack.c.l.b16 %v301
    %v1261 = vunpack.c.h.b16 %v301
    %v1262 = vunpack.c.l.b16 %v302
    %v1263 = vunpack.c.h.b16 %v302
    %v1264 = vunpack.c.l.b16 %v303
    %v1265 = vunpack.c.h.b16 %v303
    %v1266 = vunpack.c.l.b16 %v304
    %v1267 = vunpack.c.l.b16 %v305
    %v1268 = vunpack.c.h.b16 %v305
    %v1269 = vunpack.c.l.b16 %v306
    %v1270 = vunpack.c.h.b16 %v306
    %v1271 = vunpack.c.l.b16 %v307
    %v1272 = vunpack.c.h.b16 %v307
    %v1273 = vunpack.c.l.b16 %v308
    %v1274 = vunpack.c.h.b16 %v308
    %v1275 = vunpack.c.l.b16 %v309
    %v1276 = vunpack.c.h.b16 %v309
    %v1277 = vunpack.c.l.b16 %v310
    %v1278 = vunpack.c.l.b16 %v311
    %v1279 = vunpack.c.h.b16 %v311
    %v1280 = vunpack.c.l.b16 %v312
    %v1281 = vunpack.c.h.b16 %v312
    %v1282 = vunpack.c.l.b16 %v313
    %v1283 = vunpack.c.h.b16 %v313
    %v1284 = vunpack.c.l.b16 %v314
    %v1285 = vunpack.c.h.b16 %v314
    %v1286 = vunpack.c.l.b16 %v315
    %v1287 = vunpack.c.h.b16 %v315
    %v1288 = vunpack.c.l.b16 %v316
    %v1289 = vunpack.c.l.b16 %v317
    %v1290 = vunpack.c.h.b16 %v317
    %v1291 = vunpack.c.l.b16 %v318
    %v1292 = vunpack.c.h.b16 %v318
    %v1293 = vunpack.c.l.b16 %v319
    %v1294 = vunpack.c.h.b16 %v319
    %v1295 = vunpack.c.l.b16 %v320
    %v1296 = vunpack.c.h.b16 %v320
    %v1297 = vunpack.c.l.b16 %v321
    %v1298 = vunpack.c.h.b16 %v321
    %v1299 = vunpack.c.l.b16 %v322
    %v1300 = vunpack.c.l.b16 %v323
    %v1301 = vunpack.c.h.b16 %v323
    %v1302 = vunpack.c.l.b16 %v324
    %v1303 = vunpack.c.h.b16 %v324
    %v1304 = vunpack.c.l.b16 %v325
    %v1305 = vunpack.c.h.b16 %v325
    %v1306 = vunpack.c.l.b16 %v326
    %v1307 = vunpack.c.h.b16 %v326
    %v1308 = vunpack.c.l.b16 %v327
    %v1309 = vunpack.c.h.b16 %v327
    %v1310 = vunpack.c.l.b16 %v328
    %v1311 = vunpack.c.l.b16 %v329
    %v1312 = vunpack.c.h.b16 %v329
    %v1313 = vunpack.c.l.b16 %v330
    %v1314 = vunpack.c.h.b16 %v330
    %v1315 = vunpack.c.l.b16 %v331
    %v1316 = vunpack.c.h.b16 %v331
    %v1317 = vunpack.c.l.b16 %v332
    %v1318 = vunpack.c.h.b16 %v332
    %v1319 = vunpack.c.l.b16 %v333
    %v1320 = vunpack.c.h.b16 %v333
    %v1321 = vunpack.c.l.b16 %v334
    %v1322 = vunpack.c.l.b16 %v335
    %v1323 = vunpack.c.h.b16 %v335
    %v1324 = vunpack.c.l.b16 %v336
    %v1325 = vunpack.c.h.b16 %v336
    %v1326 = vunpack.c.l.b16 %v337
    %v1327 = vunpack.c.h.b16 %v337
    %v1328 = vunpack.c.l.b16 %v338
    %v1329 = vunpack.c.h.b16 %v338
    %v1330 = vunpack.c.l.b16 %v339
    %v1331 = vunpack.c.h.b16 %v339
    %v1332 = vunpack.c.l.b16 %v340
    %v1333 = vunpack.c.l.b16 %v341
    %v1334 = vunpack.c.h.b16 %v341
    %v1335 = vunpack.c.l.b16 %v342
    %v1336 = vunpack.c.h.b16 %v342
    %v1337 = vunpack.c.l.b16 %v343
    %v1338 = vunpack.c.h.b16 %v343
    %v1339 = vunpack.c.l.b16 %v344
    %v1340 = vunpack.c.h.b16 %v344
    %v1341 = vunpack.c.l.b16 %v345
    %v1342 = vunpack.c.h.b16 %v345
    %v1343 = vunpack.c.l.b16 %v346
    %v1344 = vunpack.c.l.b16 %v347
    %v1345 = vunpack.c.h.b16 %v347
    %v1346 = vunpack.c.l.b16 %v348
    %v1347 = vunpack.c.h.b16 %v348
    %v1348 = vunpack.c.l.b16 %v349
    %v1349 = vunpack.c.h.b16 %v349
    %v1350 = vunpack.c.l.b16 %v350
    %v1351 = vunpack.c.h.b16 %v350
    %v1352 = vunpack.c.l.b16 %v351
    %v1353 = vunpack.c.h.b16 %v351
    %v1354 = vunpack.c.l.b16 %v352
    %v1355 = vunpack.c.l.b16 %v353
    %v1356 = vunpack.c.h.b16 %v353
    %v1357 = vunpack.c.l.b16 %v354
    %v1358 = vunpack.c.h.b16 %v354
    %v1359 = vunpack.c.l.b16 %v355
    %v1360 = vunpack.c.h.b16 %v355
    %v1361 = vunpack.c.l.b16 %v356
    %v1362 = vunpack.c.h.b16 %v356
    %v1363 = vunpack.c.l.b16 %v357
    %v1364 = vunpack.c.h.b16 %v357
    %v1365 = vunpack.c.l.b16 %v358
    %v1366 = vunpack.c.l.b16 %v359
    %v1367 = vunpack.c.h.b16 %v359
    %v1368 = vunpack.c.l.b16 %v360
    %v1369 = vunpack.c.h.b16 %v360
    %v1370 = vunpack.c.l.b16 %v361
    %v1371 = vunpack.c.h.b16 %v361
    %v1372 = vunpack.c.l.b16 %v362
    %v1373 = vunpack.c.h.b16 %v362
    %v1374 = vunpack.c.l.b16 %v363
    %v1375 = vunpack.c.h.b16 %v363
    %v1376 = vunpack.c.l.b16 %v364
    %v1377 = vunpack.c.l.b16 %v365
    %v1378 = vunpack.c.h.b16 %v365
    %v1379 = vunpack.c.l.b16 %v366
    %v1380 = vunpack.c.h.b16 %v366
    %v1381 = vunpack.c.l.b16 %v367
    %v1382 = vunpack.c.h.b16 %v367
    %v1383 = vunpack.c.l.b16 %v368
    %v1384 = vunpack.c.h.b16 %v368
    %v1385 = vunpack.c.l.b16 %v369
    %v1386 = vunpack.c.h.b16 %v369
    %v1387 = vunpack.c.l.b16 %v370
    %v1388 = vunpack.c.l.b16 %v371
    %v1389 = vunpack.c.h.b16 %v371
    %v1390 = vunpack.c.l.b16 %v372
    %v1391 = vunpack.c.h.b16 %v372
    %v1392 = vunpack.c.l.b16 %v373
    %v1393 = vunpack.c.h.b16 %v373
    %v1394 = vunpack.c.l.b16 %v374
    %v1395 = vunpack.c.h.b16 %v374
    %v1396 = vunpack.c.l.b16 %v375
    %v1397 = vunpack.c.h.b16 %v375
    %v1398 = vunpack.c.l.b16 %v376
    %v1399 = vunpack.c.l.b16 %v377
    %v1400 = vunpack.c.h.b16 %v377
    %v1401 = vunpack.c.l.b16 %v378
    %v1402 = vunpack.c.h.b16 %v378
    %v1403 = vunpack.c.l.b16 %v379
    %v1404 = vunpack.c.h.b16 %v379
    %v1405 = vunpack.c.l.b16 %v380
    %v1406 = vunpack.c.h.b16 %v380
    %v1407 = vunpack.c.l.b16 %v381
    %v1408 = vunpack.c.h.b16 %v381
    %v1409 = vunpack.c.l.b16 %v382
    %v1410 = vunpack.c.l.b16 %v383
    %v1411 = vunpack.c.h.b16 %v383
    %v1412 = vunpack.c.l.b16 %v384
    %v1413 = vunpack.c.h.b16 %v384
    %v1414 = vunpack.c.l.b16 %v385
    %v1415 = vunpack.c.h.b16 %v385
    %v1416 = vunpack.c.l.b16 %v386
    %v1417 = vunpack.c.h.b16 %v386
    %v1418 = vunpack.c.l.b16 %v387
    %v1419 = vunpack.c.h.b16 %v387
    %v1420 = vunpack.c.l.b16 %v388
    %v1421 = vunpack.c.l.b16 %v389
    %v1422 = vunpack.c.h.b16 %v389
    %v1423 = vunpack.c.l.b16 %v390
    %v1424 = vunpack.c.h.b16 %v390
    %v1425 = vunpack.c.l.b16 %v391
    %v1426 = vunpack.c.h.b16 %v391
    %v1427 = vunpack.c.l.b16 %v392
    %v1428 = vunpack.c.h.b16 %v392
    %v1429 = vunpack.c.l.b16 %v393
    %v1430 = vunpack.c.h.b16 %v393
    %v1431 = vunpack.c.l.b16 %v394
    %v1432 = vunpack.c.l.b16 %v395
    %v1433 = vunpack.c.h.b16 %v395
    %v1434 = vunpack.c.l.b16 %v396
    %v1435 = vunpack.c.h.b16 %v396
    %v1436 = vunpack.c.l.b16 %v397
    %v1437 = vunpack.c.h.b16 %v397
    %v1438 = vunpack.c.l.b16 %v398
    %v1439 = vunpack.c.h.b16 %v398
    %v1440 = vunpack.c.l.b16 %v399
    %v1441 = vunpack.c.h.b16 %v399
    %v1442 = vunpack.c.l.b16 %v400
    %v1443 = vunpack.c.l.b16 %v401
    %v1444 = vunpack.c.h.b16 %v401
    %v1445 = vunpack.c.l.b16 %v402
    %v1446 = vunpack.c.h.b16 %v402
    %v1447 = vunpack.c.l.b16 %v403
    %v1448 = vunpack.c.h.b16 %v403
    %v1449 = vunpack.c.l.b16 %v404
    %v1450 = vunpack.c.h.b16 %v404
    %v1451 = vunpack.c.l.b16 %v405
    %v1452 = vunpack.c.h.b16 %v405
    %v1453 = vunpack.c.l.b16 %v406
    %v1454 = vunpack.c.l.b16 %v407
    %v1455 = vunpack.c.h.b16 %v407
    %v1456 = vunpack.c.l.b16 %v408
    %v1457 = vunpack.c.h.b16 %v408
    %v1458 = vunpack.c.l.b16 %v409
    %v1459 = vunpack.c.h.b16 %v409
    %v1460 = vunpack.c.l.b16 %v410
    %v1461 = vunpack.c.h.b16 %v410
    %v1462 = vunpack.c.l.b16 %v411
    %v1463 = vunpack.c.h.b16 %v411
    %v1464 = vunpack.c.l.b16 %v412
    %v1465 = vunpack.c.l.b16 %v413
    %v1466 = vunpack.c.h.b16 %v413
    %v1467 = vunpack.c.l.b16 %v414
    %v1468 = vunpack.c.h.b16 %v414
    %v1469 = vunpack.c.l.b16 %v415
    %v1470 = vunpack.c.h.b16 %v415
    %v1471 = vunpack.c.l.b16 %v416
    %v1472 = vunpack.c.h.b16 %v416
    %v1473 = vunpack.c.l.b16 %v417
    %v1474 = vunpack.c.h.b16 %v417
    %v1475 = vunpack.c.l.b16 %v418
    %v1476 = vunpack.c.l.b16 %v419
    %v1477 = vunpack.c.h.b16 %v419
    %v1478 = vunpack.c.l.b16 %v420
    %v1479 = vunpack.c.h.b16 %v420
    %v1480 = vunpack.c.l.b16 %v421
    %v1481 = vunpack.c.h.b16 %v421
    %v1482 = vunpack.c.l.b16 %v422
    %v1483 = vunpack.c.h.b16 %v422
    %v1484 = vunpack.c.l.b16 %v423
    %v1485 = vunpack.c.h.b16 %v423
    %v1486 = vunpack.c.l.b16 %v424
    %v1487 = vunpack.c.l.b16 %v425
    %v1488 = vunpack.c.h.b16 %v425
    %v1489 = vunpack.c.l.b16 %v426
    %v1490 = vunpack.c.h.b16 %v426
    %v1491 = vunpack.c.l.b16 %v427
    %v1492 = vunpack.c.h.b16 %v427
    %v1493 = vunpack.c.l.b16 %v428
    %v1494 = vunpack.c.h.b16 %v428
    %v1495 = vunpack.c.l.b16 %v429
    %v1496 = vunpack.c.h.b16 %v429
    %v1497 = vunpack.c.l.b16 %v430
    %v1498 = vunpack.c.l.b16 %v431
    %v1499 = vunpack.c.h.b16 %v431
    %v1500 = vunpack.c.l.b16 %v432
    %v1501 = vunpack.c.h.b16 %v432
    %v1502 = vunpack.c.l.b16 %v433
    %v1503 = vunpack.c.h.b16 %v433
    %v1504 = vunpack.c.l.b16 %v434
    %v1505 = vunpack.c.h.b16 %v434
    %v1506 = vunpack.c.l.b16 %v435
    %v1507 = vunpack.c.h.b16 %v435
    %v1508 = vunpack.c.l.b16 %v436
    %v1509 = vunpack.c.l.b16 %v437
    %v1510 = vunpack.c.h.b16 %v437
    %v1511 = vunpack.c.l.b16 %v438
    %v1512 = vunpack.c.h.b16 %v438
    %v1513 = vunpack.c.l.b16 %v439
    %v1514 = vunpack.c.h.b16 %v439
    %v1515 = vunpack.c.l.b16 %v440
    %v1516 = vunpack.c.h.b16 %v440
    %v1517 = vunpack.c.l.b16 %v441
    %v1518 = vunpack.c.h.b16 %v441
    %v1519 = vunpack.c.l.b16 %v442
    %v1520 = vunpack.c.l.b16 %v443
    %v1521 = vunpack.c.h.b16 %v443
    %v1522 = vunpack.c.l.b16 %v444
    %v1523 = vunpack.c.h.b16 %v444
    %v1524 = vunpack.c.l.b16 %v445
    %v1525 = vunpack.c.h.b16 %v445
    %v1526 = vunpack.c.l.b16 %v446
    %v1527 = vunpack.c.h.b16 %v446
    %v1528 = vunpack.c.l.b16 %v447
    %v1529 = vunpack.c.h.b16 %v447
    %v1530 = vunpack.c.l.b16 %v448
    %v1531 = vunpack.c.l.b16 %v449
    %v1532 = vunpack.c.h.b16 %v449
    %v1533 = vunpack.c.l.b16 %v450
    %v1534 = vunpack.c.h.b16 %v450
    %v1535 = vunpack.c.l.b16 %v451
    %v1536 = vunpack.c.h.b16 %v451
    %v1537 = vunpack.c.l.b16 %v452
    %v1538 = vunpack.c.h.b16 %v452
    %v1539 = vunpack.c.l.b16 %v453
    %v1540 = vunpack.c.h.b16 %v453
    %v1541 = vunpack.c.l.b16 %v454
    %v1542 = vunpack.c.l.b16 %v455
    %v1543 = vunpack.c.h.b16 %v455
    %v1544 = vunpack.c.l.b16 %v456
    %v1545 = vunpack.c.h.b16 %v456
    %v1546 = vunpack.c.l.b16 %v457
    %v1547 = vunpack.c.h.b16 %v457
    %v1548 = vunpack.c.l.b16 %v458
    %v1549 = vunpack.c.h.b16 %v458
    %v1550 = vunpack.c.l.b16 %v459
    %v1551 = vunpack.c.h.b16 %v459
    %v1552 = vunpack.c.l.b16 %v460
    %v1553 = vunpack.c.l.b16 %v461
    %v1554 = vunpack.c.h.b16 %v461
    %v1555 = vunpack.c.l.b16 %v462
    %v1556 = vunpack.c.h.b16 %v462
    %v1557 = vunpack.c.l.b16 %v463
    %v1558 = vunpack.c.h.b16 %v463
    %v1559 = vunpack.c.l.b16 %v464
    %v1560 = vunpack.c.h.b16 %v464
    %v1561 = vunpack.c.l.b16 %v465
    %v1562 = vunpack.c.h.b16 %v465
    %v1563 = vunpack.c.l.b16 %v466
    %v1564 = vunpack.c.l.b16 %v467
    %v1565 = vunpack.c.h.b16 %v467
    %v1566 = vunpack.c.l.b16 %v468
    %v1567 = vunpack.c.h.b16 %v468
    %v1568 = vunpack.c.l.b16 %v469
    %v1569 = vunpack.c.h.b16 %v469
    %v1570 = vunpack.c.l.b16 %v470
    %v1571 = vunpack.c.h.b16 %v470
    %v1572 = vunpack.c.l.b16 %v471
    %v1573 = vunpack.c.h.b16 %v471
    %v1574 = vunpack.c.l.b16 %v472
    %v1575 = vunpack.c.l.b16 %v473
    %v1576 = vunpack.c.h.b16 %v473
    %v1577 = vunpack.c.l.b16 %v474
    %v1578 = vunpack.c.h.b16 %v474
    %v1579 = vunpack.c.l.b16 %v475
    %v1580 = vunpack.c.h.b16 %v475
    %v1581 = vunpack.c.l.b16 %v476
    %v1582 = vunpack.c.h.b16 %v476
    %v1583 = vunpack.c.l.b16 %v477
    %v1584 = vunpack.c.h.b16 %v477
    %v1585 = vunpack.c.l.b16 %v478
    %v1586 = vunpack.c.l.b16 %v479
    %v1587 = vunpack.c.h.b16 %v479
    %v1588 = vunpack.c.l.b16 %v480
    %v1589 = vunpack.c.h.b16 %v480
    %v1590 = vunpack.c.l.b16 %v481
    %v1591 = vunpack.c.h.b16 %v481
    %v1592 = vunpack.c.l.b16 %v482
    %v1593 = vunpack.c.h.b16 %v482
    %v1594 = vunpack.c.l.b16 %v483
    %v1595 = vunpack.c.h.b16 %v483
    %v1596 = vunpack.c.l.b16 %v484
    %v1597 = vunpack.c.l.b16 %v485
    %v1598 = vunpack.c.h.b16 %v485
    %v1599 = vunpack.c.l.b16 %v486
    %v1600 = vunpack.c.h.b16 %v486
    %v1601 = vunpack.c.l.b16 %v487
    %v1602 = vunpack.c.h.b16 %v487
    %v1603 = vunpack.c.l.b16 %v488
    %v1604 = vunpack.c.h.b16 %v488
    %v1605 = vunpack.c.l.b16 %v489
    %v1606 = vunpack.c.h.b16 %v489
    %v1607 = vunpack.c.l.b16 %v490
    %v1608 = vunpack.c.l.b16 %v491
    %v1609 = vunpack.c.h.b16 %v491
    %v1610 = vunpack.c.l.b16 %v492
    %v1611 = vunpack.c.h.b16 %v492
    %v1612 = vunpack.c.l.b16 %v493
    %v1613 = vunpack.c.h.b16 %v493
    %v1614 = vunpack.c.l.b16 %v494
    %v1615 = vunpack.c.h.b16 %v494
    %v1616 = vunpack.c.l.b16 %v495
    %v1617 = vunpack.c.h.b16 %v495
    %v1618 = vunpack.c.l.b16 %v496
    %v1619 = vunpack.c.l.b16 %v497
    %v1620 = vunpack.c.h.b16 %v497
    %v1621 = vunpack.c.l.b16 %v498
    %v1622 = vunpack.c.h.b16 %v498
    %v1623 = vunpack.c.l.b16 %v499
    %v1624 = vunpack.c.h.b16 %v499
    %v1625 = vunpack.c.l.b16 %v500
    %v1626 = vunpack.c.h.b16 %v500
    %v1627 = vunpack.c.l.b16 %v501
    %v1628 = vunpack.c.h.b16 %v501
    %v1629 = vunpack.c.l.b16 %v502
    %v1630 = vunpack.c.l.b16 %v503
    %v1631 = vunpack.c.h.b16 %v503
    %v1632 = vunpack.c.l.b16 %v504
    %v1633 = vunpack.c.h.b16 %v504
    %v1634 = vunpack.c.l.b16 %v505
    %v1635 = vunpack.c.h.b16 %v505
    %v1636 = vunpack.c.l.b16 %v506
    %v1637 = vunpack.c.h.b16 %v506
    %v1638 = vunpack.c.l.b16 %v507
    %v1639 = vunpack.c.h.b16 %v507
    %v1640 = vunpack.c.l.b16 %v508
    %v1641 = vunpack.c.l.b16 %v509
    %v1642 = vunpack.c.h.b16 %v509
    %v1643 = vunpack.c.l.b16 %v510
    %v1644 = vunpack.c.h.b16 %v510
    %v1645 = vunpack.c.l.b16 %v511
    %v1646 = vunpack.c.h.b16 %v511
    %v1647 = vunpack.c.l.b16 %v512
    %v1648 = vunpack.c.h.b16 %v512
    %v1649 = vunpack.c.l.b16 %v513
    %v1650 = vunpack.c.h.b16 %v513
    %v1651 = vunpack.c.l.b16 %v514
    %v1652 = vunpack.c.l.b16 %v515
    %v1653 = vunpack.c.h.b16 %v515
    %v1654 = vunpack.c.l.b16 %v516
    %v1655 = vunpack.c.h.b16 %v516
    %v1656 = vunpack.c.l.b16 %v517
    %v1657 = vunpack.c.h.b16 %v517
    %v1658 = vunpack.c.l.b16 %v518
    %v1659 = vunpack.c.h.b16 %v518
    %v1660 = vunpack.c.l.b16 %v519
    %v1661 = vunpack.c.h.b16 %v519
    %v1662 = vunpack.c.l.b16 %v520
    %v1663 = vunpack.c.l.b16 %v521
    %v1664 = vunpack.c.h.b16 %v521
    %v1665 = vunpack.c.l.b16 %v522
    %v1666 = vunpack.c.h.b16 %v522
    %v1667 = vunpack.c.l.b16 %v523
    %v1668 = vunpack.c.h.b16 %v523
    %v1669 = vunpack.c.l.b16 %v524
    %v1670 = vunpack.c.h.b16 %v524
    %v1671 = vunpack.c.l.b16 %v525
    %v1672 = vunpack.c.h.b16 %v525
    %v1673 = vunpack.c.l.b16 %v526
    %v1674 = vpack.c.b16 %v981, %v970
    %v1675 = vpack.c.b16 %v982, %v971
    %v1676 = vpack.c.b16 %v983, %v972
    %v1677 = vpack.c.b16 %v984, %v973
    %v1678 = vpack.c.b16 %v985, %v974
    %v1679 = vpack.c.b16 %v986, %v975
    %v1680 = vpack.c.b16 %v987, %v976
    %v1681 = vpack.c.b16 %v988, %v977
    %v1682 = vpack.c.b16 %v989, %v978
    %v1683 = vpack.c.b16 %v990, %v979
    %v1684 = vpack.c.b16 %v991, %v980
    %v1685 = vpack.c.b16 %v1003, %v992
    %v1686 = vpack.c.b16 %v1004, %v993
    %v1687 = vpack.c.b16 %v1005, %v994
    %v1688 = vpack.c.b16 %v1006, %v995
    %v1689 = vpack.c.b16 %v1007, %v996
    %v1690 = vpack.c.b16 %v1008, %v997
    %v1691 = vpack.c.b16 %v1009, %v998
    %v1692 = vpack.c.b16 %v1010, %v999
    %v1693 = vpack.c.b16 %v1011, %v1000
    %v1694 = vpack.c.b16 %v1012, %v1001
    %v1695 = vpack.c.b16 %v1013, %v1002
    %v1696 = vpack.c.b16 %v1025, %v1014
    %v1697 = vpack.c.b16 %v1026, %v1015
    %v1698 = vpack.c.b16 %v1027, %v1016
    %v1699 = vpack.c.b16 %v1028, %v1017
    %v1700 = vpack.c.b16 %v1029, %v1018
    %v1701 = vpack.c.b16 %v1030, %v1019
    %v1702 = vpack.c.b16 %v1031, %v1020
    %v1703 = vpack.c.b16 %v1032, %v1021
    %v1704 = vpack.c.b16 %v1033, %v1022
    %v1705 = vpack.c.b16 %v1034, %v1023
    %v1706 = vpack.c.b16 %v1035, %v1024
    %v1707 = vpack.c.b16 %v1047, %v1036
    %v1708 = vpack.c.b16 %v1048, %v1037
    %v1709 = vpack.c.b16 %v1049, %v1038
    %v1710 = vpack.c.b16 %v1050, %v1039
    %v1711 = vpack.c.b16 %v1051, %v1040
    %v1712 = vpack.c.b16 %v1052, %v1041
    %v1713 = vpack.c.b16 %v1053, %v1042
    %v1714 = vpack.c.b16 %v1054, %v1043
    %v1715 = vpack.c.b16 %v1055, %v1044
    %v1716 = vpack.c.b16 %v1056, %v1045
    %v1717 = vpack.c.b16 %v1057, %v1046
    %v1718 = vpack.c.b16 %v1069, %v1058
    %v1719 = vpack.c.b16 %v1070, %v1059
    %v1720 = vpack.c.b16 %v1071, %v1060
    %v1721 = vpack.c.b16 %v1072, %v1061
    %v1722 = vpack.c.b16 %v1073, %v1062
    %v1723 = vpack.c.b16 %v1074, %v1063
    %v1724 = vpack.c.b16 %v1075, %v1064
    %v1725 = vpack.c.b16 %v1076, %v1065
    %v1726 = vpack.c.b16 %v1077, %v1066
    %v1727 = vpack.c.b16 %v1078, %v1067
    %v1728 = vpack.c.b16 %v1079, %v1068
    %v1729 = vpack.c.b16 %v1091, %v1080
    %v1730 = vpack.c.b16 %v1092, %v1081
    %v1731 = vpack.c.b16 %v1093, %v1082
    %v1732 = vpack.c.b16 %v1094, %v1083
    %v1733 = vpack.c.b16 %v1095, %v1084
    %v1734 = vpack.c.b16 %v1096, %v1085
    %v1735 = vpack.c.b16 %v1097, %v1086
    %v1736 = vpack.c.b16 %v1098, %v1087
    %v1737 = vpack.c.b16 %v1099, %v1088
    %v1738 = vpack.c.b16 %v1100, %v1089
    %v1739 = vpack.c.b16 %v1101, %v1090
    %v1740 = vpack.c.b16 %v1113, %v1102
    %v1741 = vpack.c.b16 %v1114, %v1103
    %v1742 = vpack.c.b16 %v1115, %v1104
    %v1743 = vpack.c.b16 %v1116, %v1105
    %v1744 = vpack.c.b16 %v1117, %v1106
    %v1745 = vpack.c.b16 %v1118, %v1107
    %v1746 = vpack.c.b16 %v1119, %v1108
    %v1747 = vpack.c.b16 %v1120, %v1109
    %v1748 = vpack.c.b16 %v1121, %v1110
    %v1749 = vpack.c.b16 %v1122, %v1111
    %v1750 = vpack.c.b16 %v1123, %v1112
    %v1751 = vpack.c.b16 %v1135, %v1124
    %v1752 = vpack.c.b16 %v1136, %v1125
    %v1753 = vpack.c.b16 %v1137, %v1126
    %v1754 = vpack.c.b16 %v1138, %v1127
    %v1755 = vpack.c.b16 %v1139, %v1128
    %v1756 = vpack.c.b16 %v1140, %v1129
    %v1757 = vpack.c.b16 %v1141, %v1130
    %v1758 = vpack.c.b16 %v1142, %v1131
    %v1759 = vpack.c.b16 %v1143, %v1132
    %v1760 = vpack.c.b16 %v1144, %v1133
    %v1761 = vpack.c.b16 %v1145, %v1134
    %v1762 = vpack.c.b16 %v1157, %v1146
    %v1763 = vpack.c.b16 %v1158, %v1147
    %v1764 = vpack.c.b16 %v1159, %v1148
    %v1765 = vpack.c.b16 %v1160, %v1149
    %v1766 = vpack.c.b16 %v1161, %v1150
    %v1767 = vpack.c.b16 %v1162, %v1151
    %v1768 = vpack.c.b16 %v1163, %v1152
    %v1769 = vpack.c.b16 %v1164, %v1153
    %v1770 = vpack.c.b16 %v1165, %v1154
    %v1771 = vpack.c.b16 %v1166, %v1155
    %v1772 = vpack.c.b16 %v1167, %v1156
    %v1773 = vpack.c.b16 %v1179, %v1168
    %v1774 = vpack.c.b16 %v1180, %v1169
    %v1775 = vpack.c.b16 %v1181, %v1170
    %v1776 = vpack.c.b16 %v1182, %v1171
    %v1777 = vpack.c.b16 %v1183, %v1172
    %v1778 = vpack.c.b16 %v1184, %v1173
    %v1779 = vpack.c.b16 %v1185, %v1174
    %v1780 = vpack.c.b16 %v1186, %v1175
    %v1781 = vpack.c.b16 %v1187, %v1176
    %v1782 = vpack.c.b16 %v1188, %v1177
    %v1783 = vpack.c.b16 %v1189, %v1178
    %v1784 = vpack.c.b16 %v1201, %v1190
    %v1785 = vpack.c.b16 %v1202, %v1191
    %v1786 = vpack.c.b16 %v1203, %v1192
    %v1787 = vpack.c.b16 %v1204, %v1193
    %v1788 = vpack.c.b16 %v1205, %v1194
    %v1789 = vpack.c.b16 %v1206, %v1195
    %v1790 = vpack.c.b16 %v1207, %v1196
    %v1791 = vpack.c.b16 %v1208, %v1197
    %v1792 = vpack.c.b16 %v1209, %v1198
    %v1793 = vpack.c.b16 %v1210, %v1199
    %v1794 = vpack.c.b16 %v1211, %v1200
    %v1795 = vpack.c.b16 %v1223, %v1212
    %v1796 = vpack.c.b16 %v1224, %v1213
    %v1797 = vpack.c.b16 %v1225, %v1214
    %v1798 = vpack.c.b16 %v1226, %v1215
    %v1799 = vpack.c.b16 %v1227, %v1216
    %v1800 = vpack.c.b16 %v1228, %v1217
    %v1801 = vpack.c.b16 %v1229, %v1218
    %v1802 = vpack.c.b16 %v1230, %v1219
    %v1803 = vpack.c.b16 %v1231, %v1220
    %v1804 = vpack.c.b16 %v1232, %v1221
    %v1805 = vpack.c.b16 %v1233, %v1222
    %v1806 = vpack.c.b16 %v1245, %v1234
    %v1807 = vpack.c.b16 %v1246, %v1235
    %v1808 = vpack.c.b16 %v1247, %v1236
    %v1809 = vpack.c.b16 %v1248, %v1237
    %v1810 = vpack.c.b16 %v1249, %v1238
    %v1811 = vpack.c.b16 %v1250, %v1239
    %v1812 = vpack.c.b16 %v1251, %v1240
    %v1813 = vpack.c.b16 %v1252, %v1241
    %v1814 = vpack.c.b16 %v1253, %v1242
    %v1815 = vpack.c.b16 %v1254, %v1243
    %v1816 = vpack.c.b16 %v1255, %v1244
    %v1817 = vpack.c.b16 %v1267, %v1256
    %v1818 = vpack.c.b16 %v1268, %v1257
    %v1819 = vpack.c.b16 %v1269, %v1258
    %v1820 = vpack.c.b16 %v1270, %v1259
    %v1821 = vpack.c.b16 %v1271, %v1260
    %v1822 = vpack.c.b16 %v1272, %v1261
    %v1823 = vpack.c.b16 %v1273, %v1262
    %v1824 = vpack.c.b16 %v1274, %v1263
    %v1825 = vpack.c.b16 %v1275, %v1264
    %v1826 = vpack.c.b16 %v1276, %v1265
    %v1827 = vpack.c.b16 %v1277, %v1266
    %v1828 = vpack.c.b16 %v1289, %v1278
    %v1829 = vpack.c.b16 %v1290, %v1279
    %v1830 = vpack.c.b16 %v1291, %v1280
    %v1831 = vpack.c.b16 %v1292, %v1281
    %v1832 = vpack.c.b16 %v1293, %v1282
    %v1833 = vpack.c.b16 %v1294, %v1283
    %v1834 = vpack.c.b16 %v1295, %v1284
    %v1835 = vpack.c.b16 %v1296, %v1285
    %v1836 = vpack.c.b16 %v1297, %v1286
    %v1837 = vpack.c.b16 %v1298, %v1287
    %v1838 = vpack.c.b16 %v1299, %v1288
    %v1839 = vpack.c.b16 %v1311, %v1300
    %v1840 = vpack.c.b16 %v1312, %v1301
    %v1841 = vpack.c.b16 %v1313, %v1302
    %v1842 = vpack.c.b16 %v1314, %v1303
    %v1843 = vpack.c.b16 %v1315, %v1304
    %v1844 = vpack.c.b16 %v1316, %v1305
    %v1845 = vpack.c.b16 %v1317, %v1306
    %v1846 = vpack.c.b16 %v1318, %v1307
    %v1847 = vpack.c.b16 %v1319, %v1308
    %v1848 = vpack.c.b16 %v1320, %v1309
    %v1849 = vpack.c.b16 %v1321, %v1310
    %v1850 = vpack.c.b16 %v1333, %v1322
    %v1851 = vpack.c.b16 %v1334, %v1323
    %v1852 = vpack.c.b16 %v1335, %v1324
    %v1853 = vpack.c.b16 %v1336, %v1325
    %v1854 = vpack.c.b16 %v1337, %v1326
    %v1855 = vpack.c.b16 %v1338, %v1327
    %v1856 = vpack.c.b16 %v1339, %v1328
    %v1857 = vpack.c.b16 %v1340, %v1329
    %v1858 = vpack.c.b16 %v1341, %v1330
    %v1859 = vpack.c.b16 %v1342, %v1331
    %v1860 = vpack.c.b16 %v1343, %v1332
    %v1861 = vpack.c.b16 %v1355, %v1344
    %v1862 = vpack.c.b16 %v1356, %v1345
    %v1863 = vpack.c.b16 %v1357, %v1346
    %v1864 = vpack.c.b16 %v1358, %v1347
    %v1865 = vpack.c.b16 %v1359, %v1348
    %v1866 = vpack.c.b16 %v1360, %v1349
    %v1867 = vpack.c.b16 %v1361, %v1350
    %v1868 = vpack.c.b16 %v1362, %v1351
    %v1869 = vpack.c.b16 %v1363, %v1352
    %v1870 = vpack.c.b16 %v1364, %v1353
    %v1871 = vpack.c.b16 %v1365, %v1354
    %v1872 = vpack.c.b16 %v1377, %v1366
    %v1873 = vpack.c.b16 %v1378, %v1367
    %v1874 = vpack.c.b16 %v1379, %v1368
    %v1875 = vpack.c.b16 %v1380, %v1369
    %v1876 = vpack.c.b16 %v1381, %v1370
    %v1877 = vpack.c.b16 %v1382, %v1371
    %v1878 = vpack.c.b16 %v1383, %v1372
    %v1879 = vpack.c.b16 %v1384, %v1373
    %v1880 = vpack.c.b16 %v1385, %v1374
    %v1881 = vpack.c.b16 %v1386, %v1375
    %v1882 = vpack.c.b16 %v1387, %v1376
    %v1883 = vpack.c.b16 %v1399, %v1388
    %v1884 = vpack.c.b16 %v1400, %v1389
    %v1885 = vpack.c.b16 %v1401, %v1390
    %v1886 = vpack.c.b16 %v1402, %v1391
    %v1887 = vpack.c.b16 %v1403, %v1392
    %v1888 = vpack.c.b16 %v1404, %v1393
    %v1889 = vpack.c.b16 %v1405, %v1394
    %v1890 = vpack.c.b16 %v1406, %v1395
    %v1891 = vpack.c.b16 %v1407, %v1396
    %v1892 = vpack.c.b16 %v1408, %v1397
    %v1893 = vpack.c.b16 %v1409, %v1398
    %v1894 = vpack.c.b16 %v1421, %v1410
    %v1895 = vpack.c.b16 %v1422, %v1411
    %v1896 = vpack.c.b16 %v1423, %v1412
    %v1897 = vpack.c.b16 %v1424, %v1413
    %v1898 = vpack.c.b16 %v1425, %v1414
    %v1899 = vpack.c.b16 %v1426, %v1415
    %v1900 = vpack.c.b16 %v1427, %v1416
    %v1901 = vpack.c.b16 %v1428, %v1417
    %v1902 = vpack.c.b16 %v1429, %v1418
    %v1903 = vpack.c.b16 %v1430, %v1419
    %v1904 = vpack.c.b16 %v1431, %v1420
    %v1905 = vpack.c.b16 %v1443, %v1432
    %v1906 = vpack.c.b16 %v1444, %v1433
    %v1907 = vpack.c.b16 %v1445, %v1434
    %v1908 = vpack.c.b16 %v1446, %v1435
    %v1909 = vpack.c.b16 %v1447, %v1436
    %v1910 = vpack.c.b16 %v1448, %v1437
    %v1911 = vpack.c.b16 %v1449, %v1438
    %v1912 = vpack.c.b16 %v1450, %v1439
    %v1913 = vpack.c.b16 %v1451, %v1440
    %v1914 = vpack.c.b16 %v1452, %v1441
    %v1915 = vpack.c.b16 %v1453, %v1442
    %v1916 = vpack.c.b16 %v1465, %v1454
    %v1917 = vpack.c.b16 %v1466, %v1455
    %v1918 = vpack.c.b16 %v1467, %v1456
    %v1919 = vpack.c.b16 %v1468, %v1457
    %v1920 = vpack.c.b16 %v1469, %v1458
    %v1921 = vpack.c.b16 %v1470, %v1459
    %v1922 = vpack.c.b16 %v1471, %v1460
    %v1923 = vpack.c.b16 %v1472, %v1461
    %v1924 = vpack.c.b16 %v1473, %v1462
    %v1925 = vpack.c.b16 %v1474, %v1463
    %v1926 = vpack.c.b16 %v1475, %v1464
    %v1927 = vpack.c.b16 %v1487, %v1476
    %v1928 = vpack.c.b16 %v1488, %v1477
    %v1929 = vpack.c.b16 %v1489, %v1478
    %v1930 = vpack.c.b16 %v1490, %v1479
    %v1931 = vpack.c.b16 %v1491, %v1480
    %v1932 = vpack.c.b16 %v1492, %v1481
    %v1933 = vpack.c.b16 %v1493, %v1482
    %v1934 = vpack.c.b16 %v1494, %v1483
    %v1935 = vpack.c.b16 %v1495, %v1484
    %v1936 = vpack.c.b16 %v1496, %v1485
    %v1937 = vpack.c.b16 %v1497, %v1486
    %v1938 = vpack.c.b16 %v1509, %v1498
    %v1939 = vpack.c.b16 %v1510, %v1499
    %v1940 = vpack.c.b16 %v1511, %v1500
    %v1941 = vpack.c.b16 %v1512, %v1501
    %v1942 = vpack.c.b16 %v1513, %v1502
    %v1943 = vpack.c.b16 %v1514, %v1503
    %v1944 = vpack.c.b16 %v1515, %v1504
    %v1945 = vpack.c.b16 %v1516, %v1505
    %v1946 = vpack.c.b16 %v1517, %v1506
    %v1947 = vpack.c.b16 %v1518, %v1507
    %v1948 = vpack.c.b16 %v1519, %v1508
    %v1949 = vpack.c.b16 %v1531, %v1520
    %v1950 = vpack.c.b16 %v1532, %v1521
    %v1951 = vpack.c.b16 %v1533, %v1522
    %v1952 = vpack.c.b16 %v1534, %v1523
    %v1953 = vpack.c.b16 %v1535, %v1524
    %v1954 = vpack.c.b16 %v1536, %v1525
    %v1955 = vpack.c.b16 %v1537, %v1526
    %v1956 = vpack.c.b16 %v1538, %v1527
    %v1957 = vpack.c.b16 %v1539, %v1528
    %v1958 = vpack.c.b16 %v1540, %v1529
    %v1959 = vpack.c.b16 %v1541, %v1530
    %v1960 = vpack.c.b16 %v1553, %v1542
    %v1961 = vpack.c.b16 %v1554, %v1543
    %v1962 = vpack.c.b16 %v1555, %v1544
    %v1963 = vpack.c.b16 %v1556, %v1545
    %v1964 = vpack.c.b16 %v1557, %v1546
    %v1965 = vpack.c.b16 %v1558, %v1547
    %v1966 = vpack.c.b16 %v1559, %v1548
    %v1967 = vpack.c.b16 %v1560, %v1549
    %v1968 = vpack.c.b16 %v1561, %v1550
    %v1969 = vpack.c.b16 %v1562, %v1551
    %v1970 = vpack.c.b16 %v1563, %v1552
    %v1971 = vpack.c.b16 %v1575, %v1564
    %v1972 = vpack.c.b16 %v1576, %v1565
    %v1973 = vpack.c.b16 %v1577, %v1566
    %v1974 = vpack.c.b16 %v1578, %v1567
    %v1975 = vpack.c.b16 %v1579, %v1568
    %v1976 = vpack.c.b16 %v1580, %v1569
    %v1977 = vpack.c.b16 %v1581, %v1570
    %v1978 = vpack.c.b16 %v1582, %v1571
    %v1979 = vpack.c.b16 %v1583, %v1572
    %v1980 = vpack.c.b16 %v1584, %v1573
    %v1981 = vpack.c.b16 %v1585, %v1574
    %v1982 = vpack.c.b16 %v1597, %v1586
    %v1983 = vpack.c.b16 %v1598, %v1587
    %v1984 = vpack.c.b16 %v1599, %v1588
    %v1985 = vpack.c.b16 %v1600, %v1589
    %v1986 = vpack.c.b16 %v1601, %v1590
    %v1987 = vpack.c.b16 %v1602, %v1591
    %v1988 = vpack.c.b16 %v1603, %v1592
    %v1989 = vpack.c.b16 %v1604, %v1593
    %v1990 = vpack.c.b16 %v1605, %v1594
    %v1991 = vpack.c.b16 %v1606, %v1595
    %v1992 = vpack.c.b16 %v1607, %v1596
    %v1993 = vpack.c.b16 %v1619, %v1608
    %v1994 = vpack.c.b16 %v1620, %v1609
    %v1995 = vpack.c.b16 %v1621, %v1610
    %v1996 = vpack.c.b16 %v1622, %v1611
    %v1997 = vpack.c.b16 %v1623, %v1612
    %v1998 = vpack.c.b16 %v1624, %v1613
    %v1999 = vpack.c.b16 %v1625, %v1614
    %v2000 = vpack.c.b16 %v1626, %v1615
    %v2001 = vpack.c.b16 %v1627, %v1616
    %v2002 = vpack.c.b16 %v1628, %v1617
    %v2003 = vpack.c.b16 %v1629, %v1618
    %v2004 = vpack.c.b16 %v1641, %v1630
    %v2005 = vpack.c.b16 %v1642, %v1631
    %v2006 = vpack.c.b16 %v1643, %v1632
    %v2007 = vpack.c.b16 %v1644, %v1633
    %v2008 = vpack.c.b16 %v1645, %v1634
    %v2009 = vpack.c.b16 %v1646, %v1635
    %v2010 = vpack.c.b16 %v1647, %v1636
    %v2011 = vpack.c.b16 %v1648, %v1637
    %v2012 = vpack.c.b16 %v1649, %v1638
    %v2013 = vpack.c.b16 %v1650, %v1639
    %v2014 = vpack.c.b16 %v1651, %v1640
    %v2015 = vpack.c.b16 %v1663, %v1652
    %v2016 = vpack.c.b16 %v1664, %v1653
    %v2017 = vpack.c.b16 %v1665, %v1654
    %v2018 = vpack.c.b16 %v1666, %v1655
    %v2019 = vpack.c.b16 %v1667, %v1656
    %v2020 = vpack.c.b16 %v1668, %v1657
    %v2021 = vpack.c.b16 %v1669, %v1658
    %v2022 = vpack.c.b16 %v1670, %v1659
    %v2023 = vpack.c.b16 %v1671, %v1660
    %v2024 = vpack.c.b16 %v1672, %v1661
    %v2025 = vpack.c.b16 %v1673, %v1662
    %2378 = vmatprep.subr.bf16.mxu0 %v1675
    %2379 = vmatpush1.bf16.msra.mxu0 %v1674
    %2380 = vmatprep.subr.bf16.mxu0 %v1686
    %2381 = vmatpush1.bf16.msra.mxu0 %v1685
    %2382 = vmatprep.subr.bf16.mxu0 %v1697
    %2383 = vmatpush1.bf16.msra.mxu0 %v1696
    %2384 = vmatprep.subr.bf16.mxu0 %v1708
    %2385 = vmatpush1.bf16.msra.mxu0 %v1707
    %2386 = vmatprep.subr.bf16.mxu0 %v1719
    %2387 = vmatpush1.bf16.msra.mxu0 %v1718
    %2388 = vmatprep.subr.bf16.mxu0 %v1730
    %2389 = vmatpush1.bf16.msra.mxu0 %v1729
    %2390 = vmatprep.subr.bf16.mxu0 %v1741
    %2391 = vmatpush1.bf16.msra.mxu0 %v1740
    %2392 = vmatprep.subr.bf16.mxu0 %v1752
    %2393 = vmatpush1.bf16.msra.mxu0 %v1751
    %2394 = vmatprep.subr.bf16.mxu0 %v1763
    %2395 = vmatpush1.bf16.msra.mxu0 %v1762
    %2396 = vmatprep.subr.bf16.mxu0 %v1774
    %2397 = vmatpush1.bf16.msra.mxu0 %v1773
    %2398 = vmatprep.subr.bf16.mxu0 %v1785
    %2399 = vmatpush1.bf16.msra.mxu0 %v1784
    %2400 = vmatprep.subr.bf16.mxu0 %v1796
    %2401 = vmatpush1.bf16.msra.mxu0 %v1795
    %2402 = vmatprep.subr.bf16.mxu0 %v1807
    %2403 = vmatpush1.bf16.msra.mxu0 %v1806
    %2404 = vmatprep.subr.bf16.mxu0 %v1818
    %2405 = vmatpush1.bf16.msra.mxu0 %v1817
    %2406 = vmatprep.subr.bf16.mxu0 %v1829
    %2407 = vmatpush1.bf16.msra.mxu0 %v1828
    %2408 = vmatprep.subr.bf16.mxu0 %v1840
    %2409 = vmatpush1.bf16.msra.mxu0 %v1839
    %2410 = vmatprep.mubr.bf16.mxu0 %v140
    %2411 = vmatmul.mubr.bf16.gmra.mrb[0].mxu0 %v139
    %v2412 = vpop.f32.mrb[0].mxu0
    %v2413 = vadd.f32 %v534, %v2412
    %v2414 = vpop.f32.mrb[0].mxu0
    %v2415 = vadd.f32 %v538, %v2414
    %v2416 = vpop.f32.mrb[0].mxu0
    %v2417 = vpop.f32.mrb[0].mxu0
    %2418 = vdwg.mxu0
    %2419 = vmatprep.subr.bf16.mxu0 %v1851
    %2420 = vmatpush1.bf16.msra.mxu0 %v1850
    %2421 = vmatprep.subr.bf16.mxu0 %v1862
    %2422 = vmatpush1.bf16.msra.mxu0 %v1861
    %2423 = vmatprep.subr.bf16.mxu0 %v1873
    %2424 = vmatpush1.bf16.msra.mxu0 %v1872
    %2425 = vmatprep.subr.bf16.mxu0 %v1884
    %2426 = vmatpush1.bf16.msra.mxu0 %v1883
    %2427 = vmatprep.subr.bf16.mxu0 %v1895
    %2428 = vmatpush1.bf16.msra.mxu0 %v1894
    %2429 = vmatprep.subr.bf16.mxu0 %v1906
    %2430 = vmatpush1.bf16.msra.mxu0 %v1905
    %2431 = vmatprep.subr.bf16.mxu0 %v1917
    %2432 = vmatpush1.bf16.msra.mxu0 %v1916
    %2433 = vmatprep.subr.bf16.mxu0 %v1928
    %2434 = vmatpush1.bf16.msra.mxu0 %v1927
    %2435 = vmatprep.subr.bf16.mxu0 %v1939
    %2436 = vmatpush1.bf16.msra.mxu0 %v1938
    %2437 = vmatprep.subr.bf16.mxu0 %v1950
    %2438 = vmatpush1.bf16.msra.mxu0 %v1949
    %2439 = vmatprep.subr.bf16.mxu0 %v1961
    %2440 = vmatpush1.bf16.msra.mxu0 %v1960
    %2441 = vmatprep.subr.bf16.mxu0 %v1972
    %2442 = vmatpush1.bf16.msra.mxu0 %v1971
    %2443 = vmatprep.subr.bf16.mxu0 %v1983
    %2444 = vmatpush1.bf16.msra.mxu0 %v1982
    %2445 = vmatprep.subr.bf16.mxu0 %v1994
    %2446 = vmatpush1.bf16.msra.mxu0 %v1993
    %2447 = vmatprep.subr.bf16.mxu0 %v2005
    %2448 = vmatpush1.bf16.msra.mxu0 %v2004
    %2449 = vmatprep.subr.bf16.mxu0 %v2016
    %2450 = vmatpush1.bf16.msra.mxu0 %v2015
    %2451 = vmatprep.mubr.bf16.mxu0 %v142
    %2452 = vmatmul.mubr.bf16.gmra.mrb[0].mxu0 %v141
    %v2453 = vpop.f32.mrb[0].mxu0
    %v2454 = vadd.f32 %v2413, %v2453
    %v2455 = vpop.f32.mrb[0].mxu0
    %v2456 = vadd.f32 %v2415, %v2455
    %v2457 = vpop.f32.mrb[0].mxu0
    %v2458 = vpop.f32.mrb[0].mxu0
    %2459 = vdwg.mxu0
    %2460 = vmatprep.subr.bf16.mxu0 %v1677
    %2461 = vmatpush1.bf16.msra.mxu0 %v1676
    %2462 = vmatprep.subr.bf16.mxu0 %v1688
    %2463 = vmatpush1.bf16.msra.mxu0 %v1687
    %2464 = vmatprep.subr.bf16.mxu0 %v1699
    %2465 = vmatpush1.bf16.msra.mxu0 %v1698
    %2466 = vmatprep.subr.bf16.mxu0 %v1710
    %2467 = vmatpush1.bf16.msra.mxu0 %v1709
    %2468 = vmatprep.subr.bf16.mxu0 %v1721
    %2469 = vmatpush1.bf16.msra.mxu0 %v1720
    %2470 = vmatprep.subr.bf16.mxu0 %v1732
    %2471 = vmatpush1.bf16.msra.mxu0 %v1731
    %2472 = vmatprep.subr.bf16.mxu0 %v1743
    %2473 = vmatpush1.bf16.msra.mxu0 %v1742
    %2474 = vmatprep.subr.bf16.mxu0 %v1754
    %2475 = vmatpush1.bf16.msra.mxu0 %v1753
    %2476 = vmatprep.subr.bf16.mxu0 %v1765
    %2477 = vmatpush1.bf16.msra.mxu0 %v1764
    %2478 = vmatprep.subr.bf16.mxu0 %v1776
    %2479 = vmatpush1.bf16.msra.mxu0 %v1775
    %2480 = vmatprep.subr.bf16.mxu0 %v1787
    %2481 = vmatpush1.bf16.msra.mxu0 %v1786
    %2482 = vmatprep.subr.bf16.mxu0 %v1798
    %2483 = vmatpush1.bf16.msra.mxu0 %v1797
    %2484 = vmatprep.subr.bf16.mxu0 %v1809
    %2485 = vmatpush1.bf16.msra.mxu0 %v1808
    %2486 = vmatprep.subr.bf16.mxu0 %v1820
    %2487 = vmatpush1.bf16.msra.mxu0 %v1819
    %2488 = vmatprep.subr.bf16.mxu0 %v1831
    %2489 = vmatpush1.bf16.msra.mxu0 %v1830
    %2490 = vmatprep.subr.bf16.mxu0 %v1842
    %2491 = vmatpush1.bf16.msra.mxu0 %v1841
    %2492 = vmatprep.mubr.bf16.mxu0 %v140
    %2493 = vmatmul.mubr.bf16.gmra.mrb[0].mxu0 %v139
    %v2494 = vpop.f32.mrb[0].mxu0
    %v2495 = vadd.f32 %v542, %v2494
    %v2496 = vpop.f32.mrb[0].mxu0
    %v2497 = vadd.f32 %v546, %v2496
    %v2498 = vpop.f32.mrb[0].mxu0
    %v2499 = vpop.f32.mrb[0].mxu0
    %2500 = vdwg.mxu0
    %2501 = vmatprep.subr.bf16.mxu0 %v1853
    %2502 = vmatpush1.bf16.msra.mxu0 %v1852
    %2503 = vmatprep.subr.bf16.mxu0 %v1864
    %2504 = vmatpush1.bf16.msra.mxu0 %v1863
    %2505 = vmatprep.subr.bf16.mxu0 %v1875
    %2506 = vmatpush1.bf16.msra.mxu0 %v1874
    %2507 = vmatprep.subr.bf16.mxu0 %v1886
    %2508 = vmatpush1.bf16.msra.mxu0 %v1885
    %2509 = vmatprep.subr.bf16.mxu0 %v1897
    %2510 = vmatpush1.bf16.msra.mxu0 %v1896
    %2511 = vmatprep.subr.bf16.mxu0 %v1908
    %2512 = vmatpush1.bf16.msra.mxu0 %v1907
    %2513 = vmatprep.subr.bf16.mxu0 %v1919
    %2514 = vmatpush1.bf16.msra.mxu0 %v1918
    %2515 = vmatprep.subr.bf16.mxu0 %v1930
    %2516 = vmatpush1.bf16.msra.mxu0 %v1929
    %2517 = vmatprep.subr.bf16.mxu0 %v1941
    %2518 = vmatpush1.bf16.msra.mxu0 %v1940
    %2519 = vmatprep.subr.bf16.mxu0 %v1952
    %2520 = vmatpush1.bf16.msra.mxu0 %v1951
    %2521 = vmatprep.subr.bf16.mxu0 %v1963
    %2522 = vmatpush1.bf16.msra.mxu0 %v1962
    %2523 = vmatprep.subr.bf16.mxu0 %v1974
    %2524 = vmatpush1.bf16.msra.mxu0 %v1973
    %2525 = vmatprep.subr.bf16.mxu0 %v1985
    %2526 = vmatpush1.bf16.msra.mxu0 %v1984
    %2527 = vmatprep.subr.bf16.mxu0 %v1996
    %2528 = vmatpush1.bf16.msra.mxu0 %v1995
    %2529 = vmatprep.subr.bf16.mxu0 %v2007
    %2530 = vmatpush1.bf16.msra.mxu0 %v2006
    %2531 = vmatprep.subr.bf16.mxu0 %v2018
    %2532 = vmatpush1.bf16.msra.mxu0 %v2017
    %2533 = vmatprep.mubr.bf16.mxu0 %v142
    %2534 = vmatmul.mubr.bf16.gmra.mrb[0].mxu0 %v141
    %v2535 = vpop.f32.mrb[0].mxu0
    %v2536 = vadd.f32 %v2495, %v2535
    %v2537 = vpop.f32.mrb[0].mxu0
    %v2538 = vadd.f32 %v2497, %v2537
    %v2539 = vpop.f32.mrb[0].mxu0
    %v2540 = vpop.f32.mrb[0].mxu0
    %2541 = vdwg.mxu0
    %2542 = vmatprep.subr.bf16.mxu0 %v1679
    %2543 = vmatpush1.bf16.msra.mxu0 %v1678
    %2544 = vmatprep.subr.bf16.mxu0 %v1690
    %2545 = vmatpush1.bf16.msra.mxu0 %v1689
    %2546 = vmatprep.subr.bf16.mxu0 %v1701
    %2547 = vmatpush1.bf16.msra.mxu0 %v1700
    %2548 = vmatprep.subr.bf16.mxu0 %v1712
    %2549 = vmatpush1.bf16.msra.mxu0 %v1711
    %2550 = vmatprep.subr.bf16.mxu0 %v1723
    %2551 = vmatpush1.bf16.msra.mxu0 %v1722
    %2552 = vmatprep.subr.bf16.mxu0 %v1734
    %2553 = vmatpush1.bf16.msra.mxu0 %v1733
    %2554 = vmatprep.subr.bf16.mxu0 %v1745
    %2555 = vmatpush1.bf16.msra.mxu0 %v1744
    %2556 = vmatprep.subr.bf16.mxu0 %v1756
    %2557 = vmatpush1.bf16.msra.mxu0 %v1755
    %2558 = vmatprep.subr.bf16.mxu0 %v1767
    %2559 = vmatpush1.bf16.msra.mxu0 %v1766
    %2560 = vmatprep.subr.bf16.mxu0 %v1778
    %2561 = vmatpush1.bf16.msra.mxu0 %v1777
    %2562 = vmatprep.subr.bf16.mxu0 %v1789
    %2563 = vmatpush1.bf16.msra.mxu0 %v1788
    %2564 = vmatprep.subr.bf16.mxu0 %v1800
    %2565 = vmatpush1.bf16.msra.mxu0 %v1799
    %2566 = vmatprep.subr.bf16.mxu0 %v1811
    %2567 = vmatpush1.bf16.msra.mxu0 %v1810
    %2568 = vmatprep.subr.bf16.mxu0 %v1822
    %2569 = vmatpush1.bf16.msra.mxu0 %v1821
    %2570 = vmatprep.subr.bf16.mxu0 %v1833
    %2571 = vmatpush1.bf16.msra.mxu0 %v1832
    %2572 = vmatprep.subr.bf16.mxu0 %v1844
    %2573 = vmatpush1.bf16.msra.mxu0 %v1843
    %2574 = vmatprep.mubr.bf16.mxu0 %v140
    %2575 = vmatmul.mubr.bf16.gmra.mrb[0].mxu0 %v139
    %v2576 = vpop.f32.mrb[0].mxu0
    %v2577 = vadd.f32 %v550, %v2576
    %v2578 = vpop.f32.mrb[0].mxu0
    %v2579 = vadd.f32 %v554, %v2578
    %v2580 = vpop.f32.mrb[0].mxu0
    %v2581 = vpop.f32.mrb[0].mxu0
    %2582 = vdwg.mxu0
    %2583 = vmatprep.subr.bf16.mxu0 %v1855
    %2584 = vmatpush1.bf16.msra.mxu0 %v1854
    %2585 = vmatprep.subr.bf16.mxu0 %v1866
    %2586 = vmatpush1.bf16.msra.mxu0 %v1865
    %2587 = vmatprep.subr.bf16.mxu0 %v1877
    %2588 = vmatpush1.bf16.msra.mxu0 %v1876
    %2589 = vmatprep.subr.bf16.mxu0 %v1888
    %2590 = vmatpush1.bf16.msra.mxu0 %v1887
    %2591 = vmatprep.subr.bf16.mxu0 %v1899
    %2592 = vmatpush1.bf16.msra.mxu0 %v1898
    %2593 = vmatprep.subr.bf16.mxu0 %v1910
    %2594 = vmatpush1.bf16.msra.mxu0 %v1909
    %2595 = vmatprep.subr.bf16.mxu0 %v1921
    %2596 = vmatpush1.bf16.msra.mxu0 %v1920
    %2597 = vmatprep.subr.bf16.mxu0 %v1932
    %2598 = vmatpush1.bf16.msra.mxu0 %v1931
    %2599 = vmatprep.subr.bf16.mxu0 %v1943
    %2600 = vmatpush1.bf16.msra.mxu0 %v1942
    %2601 = vmatprep.subr.bf16.mxu0 %v1954
    %2602 = vmatpush1.bf16.msra.mxu0 %v1953
    %2603 = vmatprep.subr.bf16.mxu0 %v1965
    %2604 = vmatpush1.bf16.msra.mxu0 %v1964
    %2605 = vmatprep.subr.bf16.mxu0 %v1976
    %2606 = vmatpush1.bf16.msra.mxu0 %v1975
    %2607 = vmatprep.subr.bf16.mxu0 %v1987
    %2608 = vmatpush1.bf16.msra.mxu0 %v1986
    %2609 = vmatprep.subr.bf16.mxu0 %v1998
    %2610 = vmatpush1.bf16.msra.mxu0 %v1997
    %2611 = vmatprep.subr.bf16.mxu0 %v2009
    %2612 = vmatpush1.bf16.msra.mxu0 %v2008
    %2613 = vmatprep.subr.bf16.mxu0 %v2020
    %2614 = vmatpush1.bf16.msra.mxu0 %v2019
    %2615 = vmatprep.mubr.bf16.mxu0 %v142
    %2616 = vmatmul.mubr.bf16.gmra.mrb[0].mxu0 %v141
    %v2617 = vpop.f32.mrb[0].mxu0
    %v2618 = vadd.f32 %v2577, %v2617
    %v2619 = vpop.f32.mrb[0].mxu0
    %v2620 = vadd.f32 %v2579, %v2619
    %v2621 = vpop.f32.mrb[0].mxu0
    %v2622 = vpop.f32.mrb[0].mxu0
    %2623 = vdwg.mxu0
    %2624 = vmatprep.subr.bf16.mxu0 %v1681
    %2625 = vmatpush1.bf16.msra.mxu0 %v1680
    %2626 = vmatprep.subr.bf16.mxu0 %v1692
    %2627 = vmatpush1.bf16.msra.mxu0 %v1691
    %2628 = vmatprep.subr.bf16.mxu0 %v1703
    %2629 = vmatpush1.bf16.msra.mxu0 %v1702
    %2630 = vmatprep.subr.bf16.mxu0 %v1714
    %2631 = vmatpush1.bf16.msra.mxu0 %v1713
    %2632 = vmatprep.subr.bf16.mxu0 %v1725
    %2633 = vmatpush1.bf16.msra.mxu0 %v1724
    %2634 = vmatprep.subr.bf16.mxu0 %v1736
    %2635 = vmatpush1.bf16.msra.mxu0 %v1735
    %2636 = vmatprep.subr.bf16.mxu0 %v1747
    %2637 = vmatpush1.bf16.msra.mxu0 %v1746
    %2638 = vmatprep.subr.bf16.mxu0 %v1758
    %2639 = vmatpush1.bf16.msra.mxu0 %v1757
    %2640 = vmatprep.subr.bf16.mxu0 %v1769
    %2641 = vmatpush1.bf16.msra.mxu0 %v1768
    %2642 = vmatprep.subr.bf16.mxu0 %v1780
    %2643 = vmatpush1.bf16.msra.mxu0 %v1779
    %2644 = vmatprep.subr.bf16.mxu0 %v1791
    %2645 = vmatpush1.bf16.msra.mxu0 %v1790
    %2646 = vmatprep.subr.bf16.mxu0 %v1802
    %2647 = vmatpush1.bf16.msra.mxu0 %v1801
    %2648 = vmatprep.subr.bf16.mxu0 %v1813
    %2649 = vmatpush1.bf16.msra.mxu0 %v1812
    %2650 = vmatprep.subr.bf16.mxu0 %v1824
    %2651 = vmatpush1.bf16.msra.mxu0 %v1823
    %2652 = vmatprep.subr.bf16.mxu0 %v1835
    %2653 = vmatpush1.bf16.msra.mxu0 %v1834
    %2654 = vmatprep.subr.bf16.mxu0 %v1846
    %2655 = vmatpush1.bf16.msra.mxu0 %v1845
    %2656 = vmatprep.mubr.bf16.mxu0 %v140
    %2657 = vmatmul.mubr.bf16.gmra.mrb[0].mxu0 %v139
    %v2658 = vpop.f32.mrb[0].mxu0
    %v2659 = vadd.f32 %v558, %v2658
    %v2660 = vpop.f32.mrb[0].mxu0
    %v2661 = vadd.f32 %v562, %v2660
    %v2662 = vpop.f32.mrb[0].mxu0
    %v2663 = vpop.f32.mrb[0].mxu0
    %2664 = vdwg.mxu0
    %2665 = vmatprep.subr.bf16.mxu0 %v1857
    %2666 = vmatpush1.bf16.msra.mxu0 %v1856
    %2667 = vmatprep.subr.bf16.mxu0 %v1868
    %2668 = vmatpush1.bf16.msra.mxu0 %v1867
    %2669 = vmatprep.subr.bf16.mxu0 %v1879
    %2670 = vmatpush1.bf16.msra.mxu0 %v1878
    %2671 = vmatprep.subr.bf16.mxu0 %v1890
    %2672 = vmatpush1.bf16.msra.mxu0 %v1889
    %2673 = vmatprep.subr.bf16.mxu0 %v1901
    %2674 = vmatpush1.bf16.msra.mxu0 %v1900
    %2675 = vmatprep.subr.bf16.mxu0 %v1912
    %2676 = vmatpush1.bf16.msra.mxu0 %v1911
    %2677 = vmatprep.subr.bf16.mxu0 %v1923
    %2678 = vmatpush1.bf16.msra.mxu0 %v1922
    %2679 = vmatprep.subr.bf16.mxu0 %v1934
    %2680 = vmatpush1.bf16.msra.mxu0 %v1933
    %2681 = vmatprep.subr.bf16.mxu0 %v1945
    %2682 = vmatpush1.bf16.msra.mxu0 %v1944
    %2683 = vmatprep.subr.bf16.mxu0 %v1956
    %2684 = vmatpush1.bf16.msra.mxu0 %v1955
    %2685 = vmatprep.subr.bf16.mxu0 %v1967
    %2686 = vmatpush1.bf16.msra.mxu0 %v1966
    %2687 = vmatprep.subr.bf16.mxu0 %v1978
    %2688 = vmatpush1.bf16.msra.mxu0 %v1977
    %2689 = vmatprep.subr.bf16.mxu0 %v1989
    %2690 = vmatpush1.bf16.msra.mxu0 %v1988
    %2691 = vmatprep.subr.bf16.mxu0 %v2000
    %2692 = vmatpush1.bf16.msra.mxu0 %v1999
    %2693 = vmatprep.subr.bf16.mxu0 %v2011
    %2694 = vmatpush1.bf16.msra.mxu0 %v2010
    %2695 = vmatprep.subr.bf16.mxu0 %v2022
    %2696 = vmatpush1.bf16.msra.mxu0 %v2021
    %2697 = vmatprep.mubr.bf16.mxu0 %v142
    %2698 = vmatmul.mubr.bf16.gmra.mrb[0].mxu0 %v141
    %v2699 = vpop.f32.mrb[0].mxu0
    %v2700 = vadd.f32 %v2659, %v2699
    %v2701 = vpop.f32.mrb[0].mxu0
    %v2702 = vadd.f32 %v2661, %v2701
    %v2703 = vpop.f32.mrb[0].mxu0
    %v2704 = vpop.f32.mrb[0].mxu0
    %2705 = vdwg.mxu0
    %2706 = vmatprep.subr.bf16.mxu0 %v1683
    %2707 = vmatpush1.bf16.msra.mxu0 %v1682
    %2708 = vmatprep.subr.bf16.mxu0 %v1694
    %2709 = vmatpush1.bf16.msra.mxu0 %v1693
    %2710 = vmatprep.subr.bf16.mxu0 %v1705
    %2711 = vmatpush1.bf16.msra.mxu0 %v1704
    %2712 = vmatprep.subr.bf16.mxu0 %v1716
    %2713 = vmatpush1.bf16.msra.mxu0 %v1715
    %2714 = vmatprep.subr.bf16.mxu0 %v1727
    %2715 = vmatpush1.bf16.msra.mxu0 %v1726
    %2716 = vmatprep.subr.bf16.mxu0 %v1738
    %2717 = vmatpush1.bf16.msra.mxu0 %v1737
    %2718 = vmatprep.subr.bf16.mxu0 %v1749
    %2719 = vmatpush1.bf16.msra.mxu0 %v1748
    %2720 = vmatprep.subr.bf16.mxu0 %v1760
    %2721 = vmatpush1.bf16.msra.mxu0 %v1759
    %2722 = vmatprep.subr.bf16.mxu0 %v1771
    %2723 = vmatpush1.bf16.msra.mxu0 %v1770
    %2724 = vmatprep.subr.bf16.mxu0 %v1782
    %2725 = vmatpush1.bf16.msra.mxu0 %v1781
    %2726 = vmatprep.subr.bf16.mxu0 %v1793
    %2727 = vmatpush1.bf16.msra.mxu0 %v1792
    %2728 = vmatprep.subr.bf16.mxu0 %v1804
    %2729 = vmatpush1.bf16.msra.mxu0 %v1803
    %2730 = vmatprep.subr.bf16.mxu0 %v1815
    %2731 = vmatpush1.bf16.msra.mxu0 %v1814
    %2732 = vmatprep.subr.bf16.mxu0 %v1826
    %2733 = vmatpush1.bf16.msra.mxu0 %v1825
    %2734 = vmatprep.subr.bf16.mxu0 %v1837
    %2735 = vmatpush1.bf16.msra.mxu0 %v1836
    %2736 = vmatprep.subr.bf16.mxu0 %v1848
    %2737 = vmatpush1.bf16.msra.mxu0 %v1847
    %2738 = vmatprep.mubr.bf16.mxu0 %v140
    %2739 = vmatmul.mubr.bf16.gmra.mrb[0].mxu0 %v139
    %v2740 = vpop.f32.mrb[0].mxu0
    %v2741 = vadd.f32 %v566, %v2740
    %v2742 = vpop.f32.mrb[0].mxu0
    %v2743 = vadd.f32 %v570, %v2742
    %v2744 = vpop.f32.mrb[0].mxu0
    %v2745 = vpop.f32.mrb[0].mxu0
    %2746 = vdwg.mxu0
    %2747 = vmatprep.subr.bf16.mxu0 %v1859
    %2748 = vmatpush1.bf16.msra.mxu0 %v1858
    %2749 = vmatprep.subr.bf16.mxu0 %v1870
    %2750 = vmatpush1.bf16.msra.mxu0 %v1869
    %2751 = vmatprep.subr.bf16.mxu0 %v1881
    %2752 = vmatpush1.bf16.msra.mxu0 %v1880
    %2753 = vmatprep.subr.bf16.mxu0 %v1892
    %2754 = vmatpush1.bf16.msra.mxu0 %v1891
    %2755 = vmatprep.subr.bf16.mxu0 %v1903
    %2756 = vmatpush1.bf16.msra.mxu0 %v1902
    %2757 = vmatprep.subr.bf16.mxu0 %v1914
    %2758 = vmatpush1.bf16.msra.mxu0 %v1913
    %2759 = vmatprep.subr.bf16.mxu0 %v1925
    %2760 = vmatpush1.bf16.msra.mxu0 %v1924
    %2761 = vmatprep.subr.bf16.mxu0 %v1936
    %2762 = vmatpush1.bf16.msra.mxu0 %v1935
    %2763 = vmatprep.subr.bf16.mxu0 %v1947
    %2764 = vmatpush1.bf16.msra.mxu0 %v1946
    %2765 = vmatprep.subr.bf16.mxu0 %v1958
    %2766 = vmatpush1.bf16.msra.mxu0 %v1957
    %2767 = vmatprep.subr.bf16.mxu0 %v1969
    %2768 = vmatpush1.bf16.msra.mxu0 %v1968
    %2769 = vmatprep.subr.bf16.mxu0 %v1980
    %2770 = vmatpush1.bf16.msra.mxu0 %v1979
    %2771 = vmatprep.subr.bf16.mxu0 %v1991
    %2772 = vmatpush1.bf16.msra.mxu0 %v1990
    %2773 = vmatprep.subr.bf16.mxu0 %v2002
    %2774 = vmatpush1.bf16.msra.mxu0 %v2001
    %2775 = vmatprep.subr.bf16.mxu0 %v2013
    %2776 = vmatpush1.bf16.msra.mxu0 %v2012
    %2777 = vmatprep.subr.bf16.mxu0 %v2024
    %2778 = vmatpush1.bf16.msra.mxu0 %v2023
    %2779 = vmatprep.mubr.bf16.mxu0 %v142
    %2780 = vmatmul.mubr.bf16.gmra.mrb[0].mxu0 %v141
    %v2781 = vpop.f32.mrb[0].mxu0
    %v2782 = vadd.f32 %v2741, %v2781
    %v2783 = vpop.f32.mrb[0].mxu0
    %v2784 = vadd.f32 %v2743, %v2783
    %v2785 = vpop.f32.mrb[0].mxu0
    %v2786 = vpop.f32.mrb[0].mxu0
    %2787 = vdwg.mxu0
    %2788 = vmatprep.subr.bf16.mxu0 0
    %2789 = vmatpush1.bf16.msra.mxu0 %v1684
    %2790 = vmatprep.subr.bf16.mxu0 0
    %2791 = vmatpush1.bf16.msra.mxu0 %v1695
    %2792 = vmatprep.subr.bf16.mxu0 0
    %2793 = vmatpush1.bf16.msra.mxu0 %v1706
    %2794 = vmatprep.subr.bf16.mxu0 0
    %2795 = vmatpush1.bf16.msra.mxu0 %v1717
    %2796 = vmatprep.subr.bf16.mxu0 0
    %2797 = vmatpush1.bf16.msra.mxu0 %v1728
    %2798 = vmatprep.subr.bf16.mxu0 0
    %2799 = vmatpush1.bf16.msra.mxu0 %v1739
    %2800 = vmatprep.subr.bf16.mxu0 0
    %2801 = vmatpush1.bf16.msra.mxu0 %v1750
    %2802 = vmatprep.subr.bf16.mxu0 0
    %2803 = vmatpush1.bf16.msra.mxu0 %v1761
    %2804 = vmatprep.subr.bf16.mxu0 0
    %2805 = vmatpush1.bf16.msra.mxu0 %v1772
    %2806 = vmatprep.subr.bf16.mxu0 0
    %2807 = vmatpush1.bf16.msra.mxu0 %v1783
    %2808 = vmatprep.subr.bf16.mxu0 0
    %2809 = vmatpush1.bf16.msra.mxu0 %v1794
    %2810 = vmatprep.subr.bf16.mxu0 0
    %2811 = vmatpush1.bf16.msra.mxu0 %v1805
    %2812 = vmatprep.subr.bf16.mxu0 0
    %2813 = vmatpush1.bf16.msra.mxu0 %v1816
    %2814 = vmatprep.subr.bf16.mxu0 0
    %2815 = vmatpush1.bf16.msra.mxu0 %v1827
    %2816 = vmatprep.subr.bf16.mxu0 0
    %2817 = vmatpush1.bf16.msra.mxu0 %v1838
    %2818 = vmatprep.subr.bf16.mxu0 0
    %2819 = vmatpush1.bf16.msra.mxu0 %v1849
    %2820 = vmatprep.mubr.bf16.mxu0 %v140
    %2821 = vmatmul.mubr.bf16.gmra.mrb[0].mxu0 %v139
    %v2822 = vpop.f32.mrb[0].mxu0
    %v2823 = vadd.f32 %v574, %v2822
    %v2824 = vpop.f32.mrb[0].mxu0
    %v2825 = vpop.f32.mrb[0].mxu0
    %v2826 = vpop.f32.mrb[0].mxu0
    %2827 = vdwg.mxu0
    %2828 = vmatprep.subr.bf16.mxu0 0
    %2829 = vmatpush1.bf16.msra.mxu0 %v1860
    %2830 = vmatprep.subr.bf16.mxu0 0
    %2831 = vmatpush1.bf16.msra.mxu0 %v1871
    %2832 = vmatprep.subr.bf16.mxu0 0
    %2833 = vmatpush1.bf16.msra.mxu0 %v1882
    %2834 = vmatprep.subr.bf16.mxu0 0
    %2835 = vmatpush1.bf16.msra.mxu0 %v1893
    %2836 = vmatprep.subr.bf16.mxu0 0
    %2837 = vmatpush1.bf16.msra.mxu0 %v1904
    %2838 = vmatprep.subr.bf16.mxu0 0
    %2839 = vmatpush1.bf16.msra.mxu0 %v1915
    %2840 = vmatprep.subr.bf16.mxu0 0
    %2841 = vmatpush1.bf16.msra.mxu0 %v1926
    %2842 = vmatprep.subr.bf16.mxu0 0
    %2843 = vmatpush1.bf16.msra.mxu0 %v1937
    %2844 = vmatprep.subr.bf16.mxu0 0
    %2845 = vmatpush1.bf16.msra.mxu0 %v1948
    %2846 = vmatprep.subr.bf16.mxu0 0
    %2847 = vmatpush1.bf16.msra.mxu0 %v1959
    %2848 = vmatprep.subr.bf16.mxu0 0
    %2849 = vmatpush1.bf16.msra.mxu0 %v1970
    %2850 = vmatprep.subr.bf16.mxu0 0
    %2851 = vmatpush1.bf16.msra.mxu0 %v1981
    %2852 = vmatprep.subr.bf16.mxu0 0
    %2853 = vmatpush1.bf16.msra.mxu0 %v1992
    %2854 = vmatprep.subr.bf16.mxu0 0
    %2855 = vmatpush1.bf16.msra.mxu0 %v2003
    %2856 = vmatprep.subr.bf16.mxu0 0
    %2857 = vmatpush1.bf16.msra.mxu0 %v2014
    %2858 = vmatprep.subr.bf16.mxu0 0
    %2859 = vmatpush1.bf16.msra.mxu0 %v2025
    %2860 = vmatprep.mubr.bf16.mxu0 %v142
    %2861 = vmatmul.mubr.bf16.gmra.mrb[0].mxu0 %v141
    %v2862 = vpop.f32.mrb[0].mxu0
    %v2863 = vadd.f32 %v2823, %v2862
    %v2864 = vpop.f32.mrb[0].mxu0
    %v2865 = vpop.f32.mrb[0].mxu0
    %v2866 = vpop.f32.mrb[0].mxu0
    %2867 = vdwg.mxu0
    %v2868 = vld [vmem:[#allocation8] sm:$0xf]
    %v2869 = vld [vmem:[#allocation8 + $0x4] sm:$0xf]
    %v2870 = vld [vmem:[#allocation8 + $0x8] sm:$0xf]
    %v2871 = vld [vmem:[#allocation8 + $0xc] sm:$0xf]
    %v2872 = vld [vmem:[#allocation8 + $0x10] sm:$0xf]
    %v2873 = vld [vmem:[#allocation8 + $0x14] sm:$0xf]
    %v2874 = vld [vmem:[#allocation8 + $0x18] sm:$0xf]
    %v2875 = vld [vmem:[#allocation8 + $0x1c] sm:$0xf]
    %v2876 = vld [vmem:[#allocation8 + $0x20] sm:$0xf]
    %v2877 = vld [vmem:[#allocation8 + $0x24] sm:$0xf]
    %v2878 = vld [vmem:[#allocation8 + $0x28] sm:$0xf]
    %v2879 = vld [vmem:[#allocation8 + $0x2c] sm:$0xf]
    %v2880 = vld [vmem:[#allocation8 + $0x30] sm:$0xf]
    %v2881 = vld [vmem:[#allocation8 + $0x34] sm:$0xf]
    %v2882 = vld [vmem:[#allocation8 + $0x38] sm:$0xf]
    %v2883 = vld [vmem:[#allocation8 + $0x3c] sm:$0xf]
    %v2884 = vld [vmem:[#allocation8 + $0x40] sm:$0xf]
    %v2885 = vld [vmem:[#allocation8 + $0x44] sm:$0xf]
    %v2886 = vld [vmem:[#allocation8 + $0x48] sm:$0xf]
    %v2887 = vld [vmem:[#allocation8 + $0x4c] sm:$0xf]
    %v2888 = vld [vmem:[#allocation8 + $0x50] sm:$0xf]
    %v2889 = vld [vmem:[#allocation8 + $0x54] sm:$0xf]
    %v2890 = vld [vmem:[#allocation8 + $0x58] sm:$0xf]
    %v2891 = vld [vmem:[#allocation8 + $0x5c] sm:$0xf]
    %v2892 = vld [vmem:[#allocation8 + $0x60] sm:$0xf]
    %v2893 = vld [vmem:[#allocation8 + $0x64] sm:$0xf]
    %v2894 = vld [vmem:[#allocation8 + $0x68] sm:$0xf]
    %v2895 = vld [vmem:[#allocation8 + $0x6c] sm:$0xf]
    %v2896 = vld [vmem:[#allocation8 + $0x70] sm:$0xf]
    %v2897 = vld [vmem:[#allocation8 + $0x74] sm:$0xf]
    %v2898 = vld [vmem:[#allocation8 + $0x78] sm:$0xf]
    %v2899 = vld [vmem:[#allocation8 + $0x7c] sm:$0xf]
    %v2900 = vld [vmem:[#allocation8 + $0x80] sm:$0xf]
    %v2901 = vld [vmem:[#allocation8 + $0x84] sm:$0xf]
    %v2902 = vld [vmem:[#allocation8 + $0x88] sm:$0xf]
    %v2903 = vld [vmem:[#allocation8 + $0x8c] sm:$0xf]
    %v2904 = vld [vmem:[#allocation8 + $0x90] sm:$0xf]
    %v2905 = vld [vmem:[#allocation8 + $0x94] sm:$0xf]
    %v2906 = vld [vmem:[#allocation8 + $0x98] sm:$0xf]
    %v2907 = vld [vmem:[#allocation8 + $0x9c] sm:$0xf]
    %v2908 = vld [vmem:[#allocation8 + $0xa0] sm:$0xf]
    %v2909 = vld [vmem:[#allocation8 + $0xa4] sm:$0xf]
    %v2910 = vld [vmem:[#allocation8 + $0xa8] sm:$0xf]
    %v2911 = vld [vmem:[#allocation8 + $0xac] sm:$0xf]
    %v2912 = vld [vmem:[#allocation8 + $0xb0] sm:$0xf]
    %v2913 = vld [vmem:[#allocation8 + $0xb4] sm:$0xf]
    %v2914 = vld [vmem:[#allocation8 + $0xb8] sm:$0xf]
    %v2915 = vld [vmem:[#allocation8 + $0xbc] sm:$0xf]
    %v2916 = vld [vmem:[#allocation8 + $0xc0] sm:$0xf]
    %v2917 = vld [vmem:[#allocation8 + $0xc4] sm:$0xf]
    %v2918 = vld [vmem:[#allocation8 + $0xc8] sm:$0xf]
    %v2919 = vld [vmem:[#allocation8 + $0xcc] sm:$0xf]
    %v2920 = vld [vmem:[#allocation8 + $0xd0] sm:$0xf]
    %v2921 = vld [vmem:[#allocation8 + $0xd4] sm:$0xf]
    %v2922 = vld [vmem:[#allocation8 + $0xd8] sm:$0xf]
    %v2923 = vld [vmem:[#allocation8 + $0xdc] sm:$0xf]
    %v2924 = vld [vmem:[#allocation8 + $0xe0] sm:$0xf]
    %v2925 = vld [vmem:[#allocation8 + $0xe4] sm:$0xf]
    %v2926 = vld [vmem:[#allocation8 + $0xe8] sm:$0xf]
    %v2927 = vld [vmem:[#allocation8 + $0xec] sm:$0xf]
    %v2928 = vld [vmem:[#allocation8 + $0xf0] sm:$0xf]
    %v2929 = vld [vmem:[#allocation8 + $0xf4] sm:$0xf]
    %v2930 = vld [vmem:[#allocation8 + $0xf8] sm:$0xf]
    %v2931 = vld [vmem:[#allocation8 + $0xfc] sm:$0xf]
    %v2932 = vld [vmem:[#allocation10] sm:$0x1]
    %v2934 = vlaneseq
    %v2935 = vshrl.u32 %v2934, 7
    %v2936 = vsub.s32 0, %v2935
    %v2937 = vrot.slane %v2932, %v2936
    %v3003 = vunpack.c.l.b16 %v2868
    %v3004 = vunpack.c.l.b16 %v2869
    %v3005 = vunpack.c.l.b16 %v2870
    %v3006 = vunpack.c.l.b16 %v2871
    %v3007 = vunpack.c.l.b16 %v2872
    %v3008 = vunpack.c.l.b16 %v2873
    %v3009 = vunpack.c.l.b16 %v2874
    %v3010 = vunpack.c.l.b16 %v2875
    %v3011 = vunpack.c.l.b16 %v2876
    %v3012 = vunpack.c.l.b16 %v2877
    %v3013 = vunpack.c.l.b16 %v2878
    %v3014 = vunpack.c.l.b16 %v2879
    %v3015 = vunpack.c.l.b16 %v2880
    %v3016 = vunpack.c.l.b16 %v2881
    %v3017 = vunpack.c.l.b16 %v2882
    %v3018 = vunpack.c.l.b16 %v2883
    %v3019 = vunpack.c.l.b16 %v2884
    %v3020 = vunpack.c.l.b16 %v2885
    %v3021 = vunpack.c.l.b16 %v2886
    %v3022 = vunpack.c.l.b16 %v2887
    %v3023 = vunpack.c.l.b16 %v2888
    %v3024 = vunpack.c.l.b16 %v2889
    %v3025 = vunpack.c.l.b16 %v2890
    %v3026 = vunpack.c.l.b16 %v2891
    %v3027 = vunpack.c.l.b16 %v2892
    %v3028 = vunpack.c.l.b16 %v2893
    %v3029 = vunpack.c.l.b16 %v2894
    %v3030 = vunpack.c.l.b16 %v2895
    %v3031 = vunpack.c.l.b16 %v2896
    %v3032 = vunpack.c.l.b16 %v2897
    %v3033 = vunpack.c.l.b16 %v2898
    %v3034 = vunpack.c.l.b16 %v2899
    %v3035 = vunpack.c.l.b16 %v2900
    %v3036 = vunpack.c.l.b16 %v2901
    %v3037 = vunpack.c.l.b16 %v2902
    %v3038 = vunpack.c.l.b16 %v2903
    %v3039 = vunpack.c.l.b16 %v2904
    %v3040 = vunpack.c.l.b16 %v2905
    %v3041 = vunpack.c.l.b16 %v2906
    %v3042 = vunpack.c.l.b16 %v2907
    %v3043 = vunpack.c.l.b16 %v2908
    %v3044 = vunpack.c.l.b16 %v2909
    %v3045 = vunpack.c.l.b16 %v2910
    %v3046 = vunpack.c.l.b16 %v2911
    %v3047 = vunpack.c.l.b16 %v2912
    %v3048 = vunpack.c.l.b16 %v2913
    %v3049 = vunpack.c.l.b16 %v2914
    %v3050 = vunpack.c.l.b16 %v2915
    %v3051 = vunpack.c.l.b16 %v2916
    %v3052 = vunpack.c.l.b16 %v2917
    %v3053 = vunpack.c.l.b16 %v2918
    %v3054 = vunpack.c.l.b16 %v2919
    %v3055 = vunpack.c.l.b16 %v2920
    %v3056 = vunpack.c.l.b16 %v2921
    %v3057 = vunpack.c.l.b16 %v2922
    %v3058 = vunpack.c.l.b16 %v2923
    %v3059 = vunpack.c.l.b16 %v2924
    %v3060 = vunpack.c.l.b16 %v2925
    %v3061 = vunpack.c.l.b16 %v2926
    %v3062 = vunpack.c.l.b16 %v2927
    %v3063 = vunpack.c.l.b16 %v2928
    %v3064 = vunpack.c.l.b16 %v2929
    %v3065 = vunpack.c.l.b16 %v2930
    %v3066 = vunpack.c.l.b16 %v2931
    %v3067 = vpack.c.b16 %v3004, %v3003
    %v3068 = vpack.c.b16 %v3006, %v3005
    %v3069 = vpack.c.b16 %v3008, %v3007
    %v3070 = vpack.c.b16 %v3010, %v3009
    %v3071 = vpack.c.b16 %v3012, %v3011
    %v3072 = vpack.c.b16 %v3014, %v3013
    %v3073 = vpack.c.b16 %v3016, %v3015
    %v3074 = vpack.c.b16 %v3018, %v3017
    %v3075 = vpack.c.b16 %v3020, %v3019
    %v3076 = vpack.c.b16 %v3022, %v3021
    %v3077 = vpack.c.b16 %v3024, %v3023
    %v3078 = vpack.c.b16 %v3026, %v3025
    %v3079 = vpack.c.b16 %v3028, %v3027
    %v3080 = vpack.c.b16 %v3030, %v3029
    %v3081 = vpack.c.b16 %v3032, %v3031
    %v3082 = vpack.c.b16 %v3034, %v3033
    %v3083 = vpack.c.b16 %v3036, %v3035
    %v3084 = vpack.c.b16 %v3038, %v3037
    %v3085 = vpack.c.b16 %v3040, %v3039
    %v3086 = vpack.c.b16 %v3042, %v3041
    %v3087 = vpack.c.b16 %v3044, %v3043
    %v3088 = vpack.c.b16 %v3046, %v3045
    %v3089 = vpack.c.b16 %v3048, %v3047
    %v3090 = vpack.c.b16 %v3050, %v3049
    %v3091 = vpack.c.b16 %v3052, %v3051
    %v3092 = vpack.c.b16 %v3054, %v3053
    %v3093 = vpack.c.b16 %v3056, %v3055
    %v3094 = vpack.c.b16 %v3058, %v3057
    %v3095 = vpack.c.b16 %v3060, %v3059
    %v3096 = vpack.c.b16 %v3062, %v3061
    %v3097 = vpack.c.b16 %v3064, %v3063
    %v3098 = vpack.c.b16 %v3066, %v3065
    %3131 = vmatprep.subr.bf16.mxu0 0
    %3132 = vmatpush1.bf16.msra.mxu0 %v3067
    %3133 = vmatprep.subr.bf16.mxu0 0
    %3134 = vmatpush1.bf16.msra.mxu0 %v3068
    %3135 = vmatprep.subr.bf16.mxu0 0
    %3136 = vmatpush1.bf16.msra.mxu0 %v3069
    %3137 = vmatprep.subr.bf16.mxu0 0
    %3138 = vmatpush1.bf16.msra.mxu0 %v3070
    %3139 = vmatprep.subr.bf16.mxu0 0
    %3140 = vmatpush1.bf16.msra.mxu0 %v3071
    %3141 = vmatprep.subr.bf16.mxu0 0
    %3142 = vmatpush1.bf16.msra.mxu0 %v3072
    %3143 = vmatprep.subr.bf16.mxu0 0
    %3144 = vmatpush1.bf16.msra.mxu0 %v3073
    %3145 = vmatprep.subr.bf16.mxu0 0
    %3146 = vmatpush1.bf16.msra.mxu0 %v3074
    %3147 = vmatprep.subr.bf16.mxu0 0
    %3148 = vmatpush1.bf16.msra.mxu0 %v3075
    %3149 = vmatprep.subr.bf16.mxu0 0
    %3150 = vmatpush1.bf16.msra.mxu0 %v3076
    %3151 = vmatprep.subr.bf16.mxu0 0
    %3152 = vmatpush1.bf16.msra.mxu0 %v3077
    %3153 = vmatprep.subr.bf16.mxu0 0
    %3154 = vmatpush1.bf16.msra.mxu0 %v3078
    %3155 = vmatprep.subr.bf16.mxu0 0
    %3156 = vmatpush1.bf16.msra.mxu0 %v3079
    %3157 = vmatprep.subr.bf16.mxu0 0
    %3158 = vmatpush1.bf16.msra.mxu0 %v3080
    %3159 = vmatprep.subr.bf16.mxu0 0
    %3160 = vmatpush1.bf16.msra.mxu0 %v3081
    %3161 = vmatprep.subr.bf16.mxu0 0
    %3162 = vmatpush1.bf16.msra.mxu0 %v3082
    %3163 = vmatprep.mubr.bf16.mxu0 %v140
    %3164 = vmatmul.mubr.bf16.gmra.mrb[0].mxu0 %v139
    %v3165 = vpop.f32.mrb[0].mxu0
    %v3166 = vadd.f32 %v2937, %v3165
    %v3167 = vpop.f32.mrb[0].mxu0
    %v3168 = vpop.f32.mrb[0].mxu0
    %v3169 = vpop.f32.mrb[0].mxu0
    %3170 = vdwg.mxu0
    %3171 = vmatprep.subr.bf16.mxu0 0
    %3172 = vmatpush1.bf16.msra.mxu0 %v3083
    %3173 = vmatprep.subr.bf16.mxu0 0
    %3174 = vmatpush1.bf16.msra.mxu0 %v3084
    %3175 = vmatprep.subr.bf16.mxu0 0
    %3176 = vmatpush1.bf16.msra.mxu0 %v3085
    %3177 = vmatprep.subr.bf16.mxu0 0
    %3178 = vmatpush1.bf16.msra.mxu0 %v3086
    %3179 = vmatprep.subr.bf16.mxu0 0
    %3180 = vmatpush1.bf16.msra.mxu0 %v3087
    %3181 = vmatprep.subr.bf16.mxu0 0
    %3182 = vmatpush1.bf16.msra.mxu0 %v3088
    %3183 = vmatprep.subr.bf16.mxu0 0
    %3184 = vmatpush1.bf16.msra.mxu0 %v3089
    %3185 = vmatprep.subr.bf16.mxu0 0
    %3186 = vmatpush1.bf16.msra.mxu0 %v3090
    %3187 = vmatprep.subr.bf16.mxu0 0
    %3188 = vmatpush1.bf16.msra.mxu0 %v3091
    %3189 = vmatprep.subr.bf16.mxu0 0
    %3190 = vmatpush1.bf16.msra.mxu0 %v3092
    %3191 = vmatprep.subr.bf16.mxu0 0
    %3192 = vmatpush1.bf16.msra.mxu0 %v3093
    %3193 = vmatprep.subr.bf16.mxu0 0
    %3194 = vmatpush1.bf16.msra.mxu0 %v3094
    %3195 = vmatprep.subr.bf16.mxu0 0
    %3196 = vmatpush1.bf16.msra.mxu0 %v3095
    %3197 = vmatprep.subr.bf16.mxu0 0
    %3198 = vmatpush1.bf16.msra.mxu0 %v3096
    %3199 = vmatprep.subr.bf16.mxu0 0
    %3200 = vmatpush1.bf16.msra.mxu0 %v3097
    %3201 = vmatprep.subr.bf16.mxu0 0
    %3202 = vmatpush1.bf16.msra.mxu0 %v3098
    %3203 = vmatprep.mubr.bf16.mxu0 %v142
    %3204 = vmatmul.mubr.bf16.gmra.mrb[0].mxu0 %v141
    %v3205 = vpop.f32.mrb[0].mxu0
    %v3206 = vadd.f32 %v3166, %v3205
    %v3207 = vpop.f32.mrb[0].mxu0
    %v3208 = vpop.f32.mrb[0].mxu0
    %v3209 = vpop.f32.mrb[0].mxu0
    %3210 = vdwg.mxu0
    %v3211 = vtanh.pop %v3206
    %v3212 = vpack.c.bf16 %v3211, %v3211
    %v3213 = vld [vmem:[#allocation11] sm:$0xff]
    %v3214 = vld [vmem:[#allocation11 + $0x8] sm:$0xff]
    %v3215 = vld [vmem:[#allocation11 + $0x10] sm:$0xff]
    %v3216 = vld [vmem:[#allocation11 + $0x18] sm:$0xff]
    %v3217 = vld [vmem:[#allocation11 + $0x20] sm:$0xff]
    %v3218 = vld [vmem:[#allocation11 + $0x28] sm:$0xf]
    %v3219 = vld [vmem:[#allocation11 + $0x2c] sm:$0xff]
    %v3220 = vld [vmem:[#allocation11 + $0x34] sm:$0xff]
    %v3221 = vld [vmem:[#allocation11 + $0x3c] sm:$0xff]
    %v3222 = vld [vmem:[#allocation11 + $0x44] sm:$0xff]
    %v3223 = vld [vmem:[#allocation11 + $0x4c] sm:$0xff]
    %v3224 = vld [vmem:[#allocation11 + $0x54] sm:$0xf]
    %v3225 = vld [vmem:[#allocation11 + $0x58] sm:$0xff]
    %v3226 = vld [vmem:[#allocation11 + $0x60] sm:$0xff]
    %v3227 = vld [vmem:[#allocation11 + $0x68] sm:$0xff]
    %v3228 = vld [vmem:[#allocation11 + $0x70] sm:$0xff]
    %v3229 = vld [vmem:[#allocation11 + $0x78] sm:$0xff]
    %v3230 = vld [vmem:[#allocation11 + $0x80] sm:$0xf]
    %v3231 = vld [vmem:[#allocation11 + $0x84] sm:$0xff]
    %v3232 = vld [vmem:[#allocation11 + $0x8c] sm:$0xff]
    %v3233 = vld [vmem:[#allocation11 + $0x94] sm:$0xff]
    %v3234 = vld [vmem:[#allocation11 + $0x9c] sm:$0xff]
    %v3235 = vld [vmem:[#allocation11 + $0xa4] sm:$0xff]
    %v3236 = vld [vmem:[#allocation11 + $0xac] sm:$0xf]
    %v3237 = vld [vmem:[#allocation11 + $0xb0] sm:$0xff]
    %v3238 = vld [vmem:[#allocation11 + $0xb8] sm:$0xff]
    %v3239 = vld [vmem:[#allocation11 + $0xc0] sm:$0xff]
    %v3240 = vld [vmem:[#allocation11 + $0xc8] sm:$0xff]
    %v3241 = vld [vmem:[#allocation11 + $0xd0] sm:$0xff]
    %v3242 = vld [vmem:[#allocation11 + $0xd8] sm:$0xf]
    %v3243 = vld [vmem:[#allocation11 + $0xdc] sm:$0xff]
    %v3244 = vld [vmem:[#allocation11 + $0xe4] sm:$0xff]
    %v3245 = vld [vmem:[#allocation11 + $0xec] sm:$0xff]
    %v3246 = vld [vmem:[#allocation11 + $0xf4] sm:$0xff]
    %v3247 = vld [vmem:[#allocation11 + $0xfc] sm:$0xff]
    %v3248 = vld [vmem:[#allocation11 + $0x104] sm:$0xf]
    %v3249 = vld [vmem:[#allocation11 + $0x108] sm:$0xff]
    %v3250 = vld [vmem:[#allocation11 + $0x110] sm:$0xff]
    %v3251 = vld [vmem:[#allocation11 + $0x118] sm:$0xff]
    %v3252 = vld [vmem:[#allocation11 + $0x120] sm:$0xff]
    %v3253 = vld [vmem:[#allocation11 + $0x128] sm:$0xff]
    %v3254 = vld [vmem:[#allocation11 + $0x130] sm:$0xf]
    %v3255 = vld [vmem:[#allocation11 + $0x134] sm:$0xff]
    %v3256 = vld [vmem:[#allocation11 + $0x13c] sm:$0xff]
    %v3257 = vld [vmem:[#allocation11 + $0x144] sm:$0xff]
    %v3258 = vld [vmem:[#allocation11 + $0x14c] sm:$0xff]
    %v3259 = vld [vmem:[#allocation11 + $0x154] sm:$0xff]
    %v3260 = vld [vmem:[#allocation11 + $0x15c] sm:$0xf]
    %v3261 = vld [vmem:[#allocation11 + $0x160] sm:$0xff]
    %v3262 = vld [vmem:[#allocation11 + $0x168] sm:$0xff]
    %v3263 = vld [vmem:[#allocation11 + $0x170] sm:$0xff]
    %v3264 = vld [vmem:[#allocation11 + $0x178] sm:$0xff]
    %v3265 = vld [vmem:[#allocation11 + $0x180] sm:$0xff]
    %v3266 = vld [vmem:[#allocation11 + $0x188] sm:$0xf]
    %v3267 = vld [vmem:[#allocation11 + $0x18c] sm:$0xff]
    %v3268 = vld [vmem:[#allocation11 + $0x194] sm:$0xff]
    %v3269 = vld [vmem:[#allocation11 + $0x19c] sm:$0xff]
    %v3270 = vld [vmem:[#allocation11 + $0x1a4] sm:$0xff]
    %v3271 = vld [vmem:[#allocation11 + $0x1ac] sm:$0xff]
    %v3272 = vld [vmem:[#allocation11 + $0x1b4] sm:$0xf]
    %v3273 = vld [vmem:[#allocation11 + $0x1b8] sm:$0xff]
    %v3274 = vld [vmem:[#allocation11 + $0x1c0] sm:$0xff]
    %v3275 = vld [vmem:[#allocation11 + $0x1c8] sm:$0xff]
    %v3276 = vld [vmem:[#allocation11 + $0x1d0] sm:$0xff]
    %v3277 = vld [vmem:[#allocation11 + $0x1d8] sm:$0xff]
    %v3278 = vld [vmem:[#allocation11 + $0x1e0] sm:$0xf]
    %v3279 = vld [vmem:[#allocation11 + $0x1e4] sm:$0xff]
    %v3280 = vld [vmem:[#allocation11 + $0x1ec] sm:$0xff]
    %v3281 = vld [vmem:[#allocation11 + $0x1f4] sm:$0xff]
    %v3282 = vld [vmem:[#allocation11 + $0x1fc] sm:$0xff]
    %v3283 = vld [vmem:[#allocation11 + $0x204] sm:$0xff]
    %v3284 = vld [vmem:[#allocation11 + $0x20c] sm:$0xf]
    %v3285 = vld [vmem:[#allocation11 + $0x210] sm:$0xff]
    %v3286 = vld [vmem:[#allocation11 + $0x218] sm:$0xff]
    %v3287 = vld [vmem:[#allocation11 + $0x220] sm:$0xff]
    %v3288 = vld [vmem:[#allocation11 + $0x228] sm:$0xff]
    %v3289 = vld [vmem:[#allocation11 + $0x230] sm:$0xff]
    %v3290 = vld [vmem:[#allocation11 + $0x238] sm:$0xf]
    %v3291 = vld [vmem:[#allocation11 + $0x23c] sm:$0xff]
    %v3292 = vld [vmem:[#allocation11 + $0x244] sm:$0xff]
    %v3293 = vld [vmem:[#allocation11 + $0x24c] sm:$0xff]
    %v3294 = vld [vmem:[#allocation11 + $0x254] sm:$0xff]
    %v3295 = vld [vmem:[#allocation11 + $0x25c] sm:$0xff]
    %v3296 = vld [vmem:[#allocation11 + $0x264] sm:$0xf]
    %v3297 = vld [vmem:[#allocation11 + $0x268] sm:$0xff]
    %v3298 = vld [vmem:[#allocation11 + $0x270] sm:$0xff]
    %v3299 = vld [vmem:[#allocation11 + $0x278] sm:$0xff]
    %v3300 = vld [vmem:[#allocation11 + $0x280] sm:$0xff]
    %v3301 = vld [vmem:[#allocation11 + $0x288] sm:$0xff]
    %v3302 = vld [vmem:[#allocation11 + $0x290] sm:$0xf]
    %v3303 = vld [vmem:[#allocation11 + $0x294] sm:$0xff]
    %v3304 = vld [vmem:[#allocation11 + $0x29c] sm:$0xff]
    %v3305 = vld [vmem:[#allocation11 + $0x2a4] sm:$0xff]
    %v3306 = vld [vmem:[#allocation11 + $0x2ac] sm:$0xff]
    %v3307 = vld [vmem:[#allocation11 + $0x2b4] sm:$0xff]
    %v3308 = vld [vmem:[#allocation11 + $0x2bc] sm:$0xf]
    %v3309 = vld [vmem:[#allocation13] sm:$0xff]
    %v3310 = vld [vmem:[#allocation13 + $0x8] sm:$0x7]
    %v3313 = vlaneseq
    %v3314 = vshrl.u32 %v3313, 7
    %v3315 = vsub.s32 0, %v3314
    %v3316 = vrot.slane %v3309, %v3315
    %v3317 = vlaneseq
    %v3318 = vshrl.u32 %v3317, 7
    %v3319 = vsub.s32 1, %v3318
    %v3320 = vrot.slane %v3309, %v3319
    %v3321 = vlaneseq
    %v3322 = vshrl.u32 %v3321, 7
    %v3323 = vsub.s32 2, %v3322
    %v3324 = vrot.slane %v3309, %v3323
    %v3325 = vlaneseq
    %v3326 = vshrl.u32 %v3325, 7
    %v3327 = vsub.s32 3, %v3326
    %v3328 = vrot.slane %v3309, %v3327
    %v3329 = vlaneseq
    %v3330 = vshrl.u32 %v3329, 7
    %v3331 = vsub.s32 4, %v3330
    %v3332 = vrot.slane %v3309, %v3331
    %v3333 = vlaneseq
    %v3334 = vshrl.u32 %v3333, 7
    %v3335 = vsub.s32 5, %v3334
    %v3336 = vrot.slane %v3309, %v3335
    %v3337 = vlaneseq
    %v3338 = vshrl.u32 %v3337, 7
    %v3339 = vsub.s32 6, %v3338
    %v3340 = vrot.slane %v3309, %v3339
    %v3341 = vlaneseq
    %v3342 = vshrl.u32 %v3341, 7
    %v3343 = vsub.s32 7, %v3342
    %v3344 = vrot.slane %v3309, %v3343
    %v3345 = vlaneseq
    %v3346 = vshrl.u32 %v3345, 7
    %v3347 = vsub.s32 0, %v3346
    %v3348 = vrot.slane %v3310, %v3347
    %v3349 = vlaneseq
    %v3350 = vshrl.u32 %v3349, 7
    %v3351 = vsub.s32 1, %v3350
    %v3352 = vrot.slane %v3310, %v3351
    %v3353 = vlaneseq
    %v3354 = vshrl.u32 %v3353, 7
    %v3355 = vsub.s32 2, %v3354
    %v3356 = vrot.slane %v3310, %v3355
    %v3464 = vunpack.c.l.b16 %v3213
    %v3465 = vunpack.c.h.b16 %v3213
    %v3466 = vunpack.c.l.b16 %v3214
    %v3467 = vunpack.c.h.b16 %v3214
    %v3468 = vunpack.c.l.b16 %v3215
    %v3469 = vunpack.c.h.b16 %v3215
    %v3470 = vunpack.c.l.b16 %v3216
    %v3471 = vunpack.c.h.b16 %v3216
    %v3472 = vunpack.c.l.b16 %v3217
    %v3473 = vunpack.c.h.b16 %v3217
    %v3474 = vunpack.c.l.b16 %v3218
    %v3475 = vunpack.c.l.b16 %v3219
    %v3476 = vunpack.c.h.b16 %v3219
    %v3477 = vunpack.c.l.b16 %v3220
    %v3478 = vunpack.c.h.b16 %v3220
    %v3479 = vunpack.c.l.b16 %v3221
    %v3480 = vunpack.c.h.b16 %v3221
    %v3481 = vunpack.c.l.b16 %v3222
    %v3482 = vunpack.c.h.b16 %v3222
    %v3483 = vunpack.c.l.b16 %v3223
    %v3484 = vunpack.c.h.b16 %v3223
    %v3485 = vunpack.c.l.b16 %v3224
    %v3486 = vunpack.c.l.b16 %v3225
    %v3487 = vunpack.c.h.b16 %v3225
    %v3488 = vunpack.c.l.b16 %v3226
    %v3489 = vunpack.c.h.b16 %v3226
    %v3490 = vunpack.c.l.b16 %v3227
    %v3491 = vunpack.c.h.b16 %v3227
    %v3492 = vunpack.c.l.b16 %v3228
    %v3493 = vunpack.c.h.b16 %v3228
    %v3494 = vunpack.c.l.b16 %v3229
    %v3495 = vunpack.c.h.b16 %v3229
    %v3496 = vunpack.c.l.b16 %v3230
    %v3497 = vunpack.c.l.b16 %v3231
    %v3498 = vunpack.c.h.b16 %v3231
    %v3499 = vunpack.c.l.b16 %v3232
    %v3500 = vunpack.c.h.b16 %v3232
    %v3501 = vunpack.c.l.b16 %v3233
    %v3502 = vunpack.c.h.b16 %v3233
    %v3503 = vunpack.c.l.b16 %v3234
    %v3504 = vunpack.c.h.b16 %v3234
    %v3505 = vunpack.c.l.b16 %v3235
    %v3506 = vunpack.c.h.b16 %v3235
    %v3507 = vunpack.c.l.b16 %v3236
    %v3508 = vunpack.c.l.b16 %v3237
    %v3509 = vunpack.c.h.b16 %v3237
    %v3510 = vunpack.c.l.b16 %v3238
    %v3511 = vunpack.c.h.b16 %v3238
    %v3512 = vunpack.c.l.b16 %v3239
    %v3513 = vunpack.c.h.b16 %v3239
    %v3514 = vunpack.c.l.b16 %v3240
    %v3515 = vunpack.c.h.b16 %v3240
    %v3516 = vunpack.c.l.b16 %v3241
    %v3517 = vunpack.c.h.b16 %v3241
    %v3518 = vunpack.c.l.b16 %v3242
    %v3519 = vunpack.c.l.b16 %v3243
    %v3520 = vunpack.c.h.b16 %v3243
    %v3521 = vunpack.c.l.b16 %v3244
    %v3522 = vunpack.c.h.b16 %v3244
    %v3523 = vunpack.c.l.b16 %v3245
    %v3524 = vunpack.c.h.b16 %v3245
    %v3525 = vunpack.c.l.b16 %v3246
    %v3526 = vunpack.c.h.b16 %v3246
    %v3527 = vunpack.c.l.b16 %v3247
    %v3528 = vunpack.c.h.b16 %v3247
    %v3529 = vunpack.c.l.b16 %v3248
    %v3530 = vunpack.c.l.b16 %v3249
    %v3531 = vunpack.c.h.b16 %v3249
    %v3532 = vunpack.c.l.b16 %v3250
    %v3533 = vunpack.c.h.b16 %v3250
    %v3534 = vunpack.c.l.b16 %v3251
    %v3535 = vunpack.c.h.b16 %v3251
    %v3536 = vunpack.c.l.b16 %v3252
    %v3537 = vunpack.c.h.b16 %v3252
    %v3538 = vunpack.c.l.b16 %v3253
    %v3539 = vunpack.c.h.b16 %v3253
    %v3540 = vunpack.c.l.b16 %v3254
    %v3541 = vunpack.c.l.b16 %v3255
    %v3542 = vunpack.c.h.b16 %v3255
    %v3543 = vunpack.c.l.b16 %v3256
    %v3544 = vunpack.c.h.b16 %v3256
    %v3545 = vunpack.c.l.b16 %v3257
    %v3546 = vunpack.c.h.b16 %v3257
    %v3547 = vunpack.c.l.b16 %v3258
    %v3548 = vunpack.c.h.b16 %v3258
    %v3549 = vunpack.c.l.b16 %v3259
    %v3550 = vunpack.c.h.b16 %v3259
    %v3551 = vunpack.c.l.b16 %v3260
    %v3552 = vunpack.c.l.b16 %v3261
    %v3553 = vunpack.c.h.b16 %v3261
    %v3554 = vunpack.c.l.b16 %v3262
    %v3555 = vunpack.c.h.b16 %v3262
    %v3556 = vunpack.c.l.b16 %v3263
    %v3557 = vunpack.c.h.b16 %v3263
    %v3558 = vunpack.c.l.b16 %v3264
    %v3559 = vunpack.c.h.b16 %v3264
    %v3560 = vunpack.c.l.b16 %v3265
    %v3561 = vunpack.c.h.b16 %v3265
    %v3562 = vunpack.c.l.b16 %v3266
    %v3563 = vunpack.c.l.b16 %v3267
    %v3564 = vunpack.c.h.b16 %v3267
    %v3565 = vunpack.c.l.b16 %v3268
    %v3566 = vunpack.c.h.b16 %v3268
    %v3567 = vunpack.c.l.b16 %v3269
    %v3568 = vunpack.c.h.b16 %v3269
    %v3569 = vunpack.c.l.b16 %v3270
    %v3570 = vunpack.c.h.b16 %v3270
    %v3571 = vunpack.c.l.b16 %v3271
    %v3572 = vunpack.c.h.b16 %v3271
    %v3573 = vunpack.c.l.b16 %v3272
    %v3574 = vunpack.c.l.b16 %v3273
    %v3575 = vunpack.c.h.b16 %v3273
    %v3576 = vunpack.c.l.b16 %v3274
    %v3577 = vunpack.c.h.b16 %v3274
    %v3578 = vunpack.c.l.b16 %v3275
    %v3579 = vunpack.c.h.b16 %v3275
    %v3580 = vunpack.c.l.b16 %v3276
    %v3581 = vunpack.c.h.b16 %v3276
    %v3582 = vunpack.c.l.b16 %v3277
    %v3583 = vunpack.c.h.b16 %v3277
    %v3584 = vunpack.c.l.b16 %v3278
    %v3585 = vunpack.c.l.b16 %v3279
    %v3586 = vunpack.c.h.b16 %v3279
    %v3587 = vunpack.c.l.b16 %v3280
    %v3588 = vunpack.c.h.b16 %v3280
    %v3589 = vunpack.c.l.b16 %v3281
    %v3590 = vunpack.c.h.b16 %v3281
    %v3591 = vunpack.c.l.b16 %v3282
    %v3592 = vunpack.c.h.b16 %v3282
    %v3593 = vunpack.c.l.b16 %v3283
    %v3594 = vunpack.c.h.b16 %v3283
    %v3595 = vunpack.c.l.b16 %v3284
    %v3596 = vunpack.c.l.b16 %v3285
    %v3597 = vunpack.c.h.b16 %v3285
    %v3598 = vunpack.c.l.b16 %v3286
    %v3599 = vunpack.c.h.b16 %v3286
    %v3600 = vunpack.c.l.b16 %v3287
    %v3601 = vunpack.c.h.b16 %v3287
    %v3602 = vunpack.c.l.b16 %v3288
    %v3603 = vunpack.c.h.b16 %v3288
    %v3604 = vunpack.c.l.b16 %v3289
    %v3605 = vunpack.c.h.b16 %v3289
    %v3606 = vunpack.c.l.b16 %v3290
    %v3607 = vunpack.c.l.b16 %v3291
    %v3608 = vunpack.c.h.b16 %v3291
    %v3609 = vunpack.c.l.b16 %v3292
    %v3610 = vunpack.c.h.b16 %v3292
    %v3611 = vunpack.c.l.b16 %v3293
    %v3612 = vunpack.c.h.b16 %v3293
    %v3613 = vunpack.c.l.b16 %v3294
    %v3614 = vunpack.c.h.b16 %v3294
    %v3615 = vunpack.c.l.b16 %v3295
    %v3616 = vunpack.c.h.b16 %v3295
    %v3617 = vunpack.c.l.b16 %v3296
    %v3618 = vunpack.c.l.b16 %v3297
    %v3619 = vunpack.c.h.b16 %v3297
    %v3620 = vunpack.c.l.b16 %v3298
    %v3621 = vunpack.c.h.b16 %v3298
    %v3622 = vunpack.c.l.b16 %v3299
    %v3623 = vunpack.c.h.b16 %v3299
    %v3624 = vunpack.c.l.b16 %v3300
    %v3625 = vunpack.c.h.b16 %v3300
    %v3626 = vunpack.c.l.b16 %v3301
    %v3627 = vunpack.c.h.b16 %v3301
    %v3628 = vunpack.c.l.b16 %v3302
    %v3629 = vunpack.c.l.b16 %v3303
    %v3630 = vunpack.c.h.b16 %v3303
    %v3631 = vunpack.c.l.b16 %v3304
    %v3632 = vunpack.c.h.b16 %v3304
    %v3633 = vunpack.c.l.b16 %v3305
    %v3634 = vunpack.c.h.b16 %v3305
    %v3635 = vunpack.c.l.b16 %v3306
    %v3636 = vunpack.c.h.b16 %v3306
    %v3637 = vunpack.c.l.b16 %v3307
    %v3638 = vunpack.c.h.b16 %v3307
    %v3639 = vunpack.c.l.b16 %v3308
    %v3640 = vpack.c.b16 %v3475, %v3464
    %v3641 = vpack.c.b16 %v3476, %v3465
    %v3642 = vpack.c.b16 %v3477, %v3466
    %v3643 = vpack.c.b16 %v3478, %v3467
    %v3644 = vpack.c.b16 %v3479, %v3468
    %v3645 = vpack.c.b16 %v3480, %v3469
    %v3646 = vpack.c.b16 %v3481, %v3470
    %v3647 = vpack.c.b16 %v3482, %v3471
    %v3648 = vpack.c.b16 %v3483, %v3472
    %v3649 = vpack.c.b16 %v3484, %v3473
    %v3650 = vpack.c.b16 %v3485, %v3474
    %v3651 = vpack.c.b16 %v3497, %v3486
    %v3652 = vpack.c.b16 %v3498, %v3487
    %v3653 = vpack.c.b16 %v3499, %v3488
    %v3654 = vpack.c.b16 %v3500, %v3489
    %v3655 = vpack.c.b16 %v3501, %v3490
    %v3656 = vpack.c.b16 %v3502, %v3491
    %v3657 = vpack.c.b16 %v3503, %v3492
    %v3658 = vpack.c.b16 %v3504, %v3493
    %v3659 = vpack.c.b16 %v3505, %v3494
    %v3660 = vpack.c.b16 %v3506, %v3495
    %v3661 = vpack.c.b16 %v3507, %v3496
    %v3662 = vpack.c.b16 %v3519, %v3508
    %v3663 = vpack.c.b16 %v3520, %v3509
    %v3664 = vpack.c.b16 %v3521, %v3510
    %v3665 = vpack.c.b16 %v3522, %v3511
    %v3666 = vpack.c.b16 %v3523, %v3512
    %v3667 = vpack.c.b16 %v3524, %v3513
    %v3668 = vpack.c.b16 %v3525, %v3514
    %v3669 = vpack.c.b16 %v3526, %v3515
    %v3670 = vpack.c.b16 %v3527, %v3516
    %v3671 = vpack.c.b16 %v3528, %v3517
    %v3672 = vpack.c.b16 %v3529, %v3518
    %v3673 = vpack.c.b16 %v3541, %v3530
    %v3674 = vpack.c.b16 %v3542, %v3531
    %v3675 = vpack.c.b16 %v3543, %v3532
    %v3676 = vpack.c.b16 %v3544, %v3533
    %v3677 = vpack.c.b16 %v3545, %v3534
    %v3678 = vpack.c.b16 %v3546, %v3535
    %v3679 = vpack.c.b16 %v3547, %v3536
    %v3680 = vpack.c.b16 %v3548, %v3537
    %v3681 = vpack.c.b16 %v3549, %v3538
    %v3682 = vpack.c.b16 %v3550, %v3539
    %v3683 = vpack.c.b16 %v3551, %v3540
    %v3684 = vpack.c.b16 %v3563, %v3552
    %v3685 = vpack.c.b16 %v3564, %v3553
    %v3686 = vpack.c.b16 %v3565, %v3554
    %v3687 = vpack.c.b16 %v3566, %v3555
    %v3688 = vpack.c.b16 %v3567, %v3556
    %v3689 = vpack.c.b16 %v3568, %v3557
    %v3690 = vpack.c.b16 %v3569, %v3558
    %v3691 = vpack.c.b16 %v3570, %v3559
    %v3692 = vpack.c.b16 %v3571, %v3560
    %v3693 = vpack.c.b16 %v3572, %v3561
    %v3694 = vpack.c.b16 %v3573, %v3562
    %v3695 = vpack.c.b16 %v3585, %v3574
    %v3696 = vpack.c.b16 %v3586, %v3575
    %v3697 = vpack.c.b16 %v3587, %v3576
    %v3698 = vpack.c.b16 %v3588, %v3577
    %v3699 = vpack.c.b16 %v3589, %v3578
    %v3700 = vpack.c.b16 %v3590, %v3579
    %v3701 = vpack.c.b16 %v3591, %v3580
    %v3702 = vpack.c.b16 %v3592, %v3581
    %v3703 = vpack.c.b16 %v3593, %v3582
    %v3704 = vpack.c.b16 %v3594, %v3583
    %v3705 = vpack.c.b16 %v3595, %v3584
    %v3706 = vpack.c.b16 %v3607, %v3596
    %v3707 = vpack.c.b16 %v3608, %v3597
    %v3708 = vpack.c.b16 %v3609, %v3598
    %v3709 = vpack.c.b16 %v3610, %v3599
    %v3710 = vpack.c.b16 %v3611, %v3600
    %v3711 = vpack.c.b16 %v3612, %v3601
    %v3712 = vpack.c.b16 %v3613, %v3602
    %v3713 = vpack.c.b16 %v3614, %v3603
    %v3714 = vpack.c.b16 %v3615, %v3604
    %v3715 = vpack.c.b16 %v3616, %v3605
    %v3716 = vpack.c.b16 %v3617, %v3606
    %v3717 = vpack.c.b16 %v3629, %v3618
    %v3718 = vpack.c.b16 %v3630, %v3619
    %v3719 = vpack.c.b16 %v3631, %v3620
    %v3720 = vpack.c.b16 %v3632, %v3621
    %v3721 = vpack.c.b16 %v3633, %v3622
    %v3722 = vpack.c.b16 %v3634, %v3623
    %v3723 = vpack.c.b16 %v3635, %v3624
    %v3724 = vpack.c.b16 %v3636, %v3625
    %v3725 = vpack.c.b16 %v3637, %v3626
    %v3726 = vpack.c.b16 %v3638, %v3627
    %v3727 = vpack.c.b16 %v3639, %v3628
    %3816 = vmatprep.subr.bf16.mxu0 %v3641
    %3817 = vmatpush1.bf16.msra.mxu0 %v3640
    %3818 = vmatprep.subr.bf16.mxu0 %v3652
    %3819 = vmatpush1.bf16.msra.mxu0 %v3651
    %3820 = vmatprep.subr.bf16.mxu0 %v3663
    %3821 = vmatpush1.bf16.msra.mxu0 %v3662
    %3822 = vmatprep.subr.bf16.mxu0 %v3674
    %3823 = vmatpush1.bf16.msra.mxu0 %v3673
    %3824 = vmatprep.subr.bf16.mxu0 %v3685
    %3825 = vmatpush1.bf16.msra.mxu0 %v3684
    %3826 = vmatprep.subr.bf16.mxu0 %v3696
    %3827 = vmatpush1.bf16.msra.mxu0 %v3695
    %3828 = vmatprep.subr.bf16.mxu0 %v3707
    %3829 = vmatpush1.bf16.msra.mxu0 %v3706
    %3830 = vmatprep.subr.bf16.mxu0 %v3718
    %3831 = vmatpush1.bf16.msra.mxu0 %v3717
    %3832 = vmatprep.subr.bf16.mxu0 0
    %3833 = vmatpush1.bf16.msra.mxu0 0
    %3834 = vmatprep.subr.bf16.mxu0 0
    %3835 = vmatpush1.bf16.msra.mxu0 0
    %3836 = vmatprep.subr.bf16.mxu0 0
    %3837 = vmatpush1.bf16.msra.mxu0 0
    %3838 = vmatprep.subr.bf16.mxu0 0
    %3839 = vmatpush1.bf16.msra.mxu0 0
    %3840 = vmatprep.subr.bf16.mxu0 0
    %3841 = vmatpush1.bf16.msra.mxu0 0
    %3842 = vmatprep.subr.bf16.mxu0 0
    %3843 = vmatpush1.bf16.msra.mxu0 0
    %3844 = vmatprep.subr.bf16.mxu0 0
    %3845 = vmatpush1.bf16.msra.mxu0 0
    %3846 = vmatprep.subr.bf16.mxu0 0
    %3847 = vmatpush1.bf16.msra.mxu0 0
    %3848 = vmatprep.mubr.bf16.mxu0 0
    %3849 = vmatmul.mubr.bf16.gmra.mrb[0].mxu0 %v3212
    %v3850 = vpop.f32.mrb[0].mxu0
    %v3851 = vadd.f32 %v3316, %v3850
    %v3852 = vpop.f32.mrb[0].mxu0
    %v3853 = vadd.f32 %v3320, %v3852
    %v3854 = vpop.f32.mrb[0].mxu0
    %v3855 = vpop.f32.mrb[0].mxu0
    %3856 = vdwg.mxu0
    %3857 = vmatprep.subr.bf16.mxu0 %v3643
    %3858 = vmatpush1.bf16.msra.mxu0 %v3642
    %3859 = vmatprep.subr.bf16.mxu0 %v3654
    %3860 = vmatpush1.bf16.msra.mxu0 %v3653
    %3861 = vmatprep.subr.bf16.mxu0 %v3665
    %3862 = vmatpush1.bf16.msra.mxu0 %v3664
    %3863 = vmatprep.subr.bf16.mxu0 %v3676
    %3864 = vmatpush1.bf16.msra.mxu0 %v3675
    %3865 = vmatprep.subr.bf16.mxu0 %v3687
    %3866 = vmatpush1.bf16.msra.mxu0 %v3686
    %3867 = vmatprep.subr.bf16.mxu0 %v3698
    %3868 = vmatpush1.bf16.msra.mxu0 %v3697
    %3869 = vmatprep.subr.bf16.mxu0 %v3709
    %3870 = vmatpush1.bf16.msra.mxu0 %v3708
    %3871 = vmatprep.subr.bf16.mxu0 %v3720
    %3872 = vmatpush1.bf16.msra.mxu0 %v3719
    %3873 = vmatprep.subr.bf16.mxu0 0
    %3874 = vmatpush1.bf16.msra.mxu0 0
    %3875 = vmatprep.subr.bf16.mxu0 0
    %3876 = vmatpush1.bf16.msra.mxu0 0
    %3877 = vmatprep.subr.bf16.mxu0 0
    %3878 = vmatpush1.bf16.msra.mxu0 0
    %3879 = vmatprep.subr.bf16.mxu0 0
    %3880 = vmatpush1.bf16.msra.mxu0 0
    %3881 = vmatprep.subr.bf16.mxu0 0
    %3882 = vmatpush1.bf16.msra.mxu0 0
    %3883 = vmatprep.subr.bf16.mxu0 0
    %3884 = vmatpush1.bf16.msra.mxu0 0
    %3885 = vmatprep.subr.bf16.mxu0 0
    %3886 = vmatpush1.bf16.msra.mxu0 0
    %3887 = vmatprep.subr.bf16.mxu0 0
    %3888 = vmatpush1.bf16.msra.mxu0 0
    %3889 = vmatprep.mubr.bf16.mxu0 0
    %3890 = vmatmul.mubr.bf16.gmra.mrb[0].mxu0 %v3212
    %v3891 = vpop.f32.mrb[0].mxu0
    %v3892 = vadd.f32 %v3324, %v3891
    %v3893 = vpop.f32.mrb[0].mxu0
    %v3894 = vadd.f32 %v3328, %v3893
    %v3895 = vpop.f32.mrb[0].mxu0
    %v3896 = vpop.f32.mrb[0].mxu0
    %3897 = vdwg.mxu0
    %3898 = vmatprep.subr.bf16.mxu0 %v3645
    %3899 = vmatpush1.bf16.msra.mxu0 %v3644
    %3900 = vmatprep.subr.bf16.mxu0 %v3656
    %3901 = vmatpush1.bf16.msra.mxu0 %v3655
    %3902 = vmatprep.subr.bf16.mxu0 %v3667
    %3903 = vmatpush1.bf16.msra.mxu0 %v3666
    %3904 = vmatprep.subr.bf16.mxu0 %v3678
    %3905 = vmatpush1.bf16.msra.mxu0 %v3677
    %3906 = vmatprep.subr.bf16.mxu0 %v3689
    %3907 = vmatpush1.bf16.msra.mxu0 %v3688
    %3908 = vmatprep.subr.bf16.mxu0 %v3700
    %3909 = vmatpush1.bf16.msra.mxu0 %v3699
    %3910 = vmatprep.subr.bf16.mxu0 %v3711
    %3911 = vmatpush1.bf16.msra.mxu0 %v3710
    %3912 = vmatprep.subr.bf16.mxu0 %v3722
    %3913 = vmatpush1.bf16.msra.mxu0 %v3721
    %3914 = vmatprep.subr.bf16.mxu0 0
    %3915 = vmatpush1.bf16.msra.mxu0 0
    %3916 = vmatprep.subr.bf16.mxu0 0
    %3917 = vmatpush1.bf16.msra.mxu0 0
    %3918 = vmatprep.subr.bf16.mxu0 0
    %3919 = vmatpush1.bf16.msra.mxu0 0
    %3920 = vmatprep.subr.bf16.mxu0 0
    %3921 = vmatpush1.bf16.msra.mxu0 0
    %3922 = vmatprep.subr.bf16.mxu0 0
    %3923 = vmatpush1.bf16.msra.mxu0 0
    %3924 = vmatprep.subr.bf16.mxu0 0
    %3925 = vmatpush1.bf16.msra.mxu0 0
    %3926 = vmatprep.subr.bf16.mxu0 0
    %3927 = vmatpush1.bf16.msra.mxu0 0
    %3928 = vmatprep.subr.bf16.mxu0 0
    %3929 = vmatpush1.bf16.msra.mxu0 0
    %3930 = vmatprep.mubr.bf16.mxu0 0
    %3931 = vmatmul.mubr.bf16.gmra.mrb[0].mxu0 %v3212
    %v3932 = vpop.f32.mrb[0].mxu0
    %v3933 = vadd.f32 %v3332, %v3932
    %v3934 = vpop.f32.mrb[0].mxu0
    %v3935 = vadd.f32 %v3336, %v3934
    %v3936 = vpop.f32.mrb[0].mxu0
    %v3937 = vpop.f32.mrb[0].mxu0
    %3938 = vdwg.mxu0
    %3939 = vmatprep.subr.bf16.mxu0 %v3647
    %3940 = vmatpush1.bf16.msra.mxu0 %v3646
    %3941 = vmatprep.subr.bf16.mxu0 %v3658
    %3942 = vmatpush1.bf16.msra.mxu0 %v3657
    %3943 = vmatprep.subr.bf16.mxu0 %v3669
    %3944 = vmatpush1.bf16.msra.mxu0 %v3668
    %3945 = vmatprep.subr.bf16.mxu0 %v3680
    %3946 = vmatpush1.bf16.msra.mxu0 %v3679
    %3947 = vmatprep.subr.bf16.mxu0 %v3691
    %3948 = vmatpush1.bf16.msra.mxu0 %v3690
    %3949 = vmatprep.subr.bf16.mxu0 %v3702
    %3950 = vmatpush1.bf16.msra.mxu0 %v3701
    %3951 = vmatprep.subr.bf16.mxu0 %v3713
    %3952 = vmatpush1.bf16.msra.mxu0 %v3712
    %3953 = vmatprep.subr.bf16.mxu0 %v3724
    %3954 = vmatpush1.bf16.msra.mxu0 %v3723
    %3955 = vmatprep.subr.bf16.mxu0 0
    %3956 = vmatpush1.bf16.msra.mxu0 0
    %3957 = vmatprep.subr.bf16.mxu0 0
    %3958 = vmatpush1.bf16.msra.mxu0 0
    %3959 = vmatprep.subr.bf16.mxu0 0
    %3960 = vmatpush1.bf16.msra.mxu0 0
    %3961 = vmatprep.subr.bf16.mxu0 0
    %3962 = vmatpush1.bf16.msra.mxu0 0
    %3963 = vmatprep.subr.bf16.mxu0 0
    %3964 = vmatpush1.bf16.msra.mxu0 0
    %3965 = vmatprep.subr.bf16.mxu0 0
    %3966 = vmatpush1.bf16.msra.mxu0 0
    %3967 = vmatprep.subr.bf16.mxu0 0
    %3968 = vmatpush1.bf16.msra.mxu0 0
    %3969 = vmatprep.subr.bf16.mxu0 0
    %3970 = vmatpush1.bf16.msra.mxu0 0
    %3971 = vmatprep.mubr.bf16.mxu0 0
    %3972 = vmatmul.mubr.bf16.gmra.mrb[0].mxu0 %v3212
    %v3973 = vpop.f32.mrb[0].mxu0
    %v3974 = vadd.f32 %v3340, %v3973
    %v3975 = vpop.f32.mrb[0].mxu0
    %v3976 = vadd.f32 %v3344, %v3975
    %v3977 = vpop.f32.mrb[0].mxu0
    %v3978 = vpop.f32.mrb[0].mxu0
    %3979 = vdwg.mxu0
    %3980 = vmatprep.subr.bf16.mxu0 %v3649
    %3981 = vmatpush1.bf16.msra.mxu0 %v3648
    %3982 = vmatprep.subr.bf16.mxu0 %v3660
    %3983 = vmatpush1.bf16.msra.mxu0 %v3659
    %3984 = vmatprep.subr.bf16.mxu0 %v3671
    %3985 = vmatpush1.bf16.msra.mxu0 %v3670
    %3986 = vmatprep.subr.bf16.mxu0 %v3682
    %3987 = vmatpush1.bf16.msra.mxu0 %v3681
    %3988 = vmatprep.subr.bf16.mxu0 %v3693
    %3989 = vmatpush1.bf16.msra.mxu0 %v3692
    %3990 = vmatprep.subr.bf16.mxu0 %v3704
    %3991 = vmatpush1.bf16.msra.mxu0 %v3703
    %3992 = vmatprep.subr.bf16.mxu0 %v3715
    %3993 = vmatpush1.bf16.msra.mxu0 %v3714
    %3994 = vmatprep.subr.bf16.mxu0 %v3726
    %3995 = vmatpush1.bf16.msra.mxu0 %v3725
    %3996 = vmatprep.subr.bf16.mxu0 0
    %3997 = vmatpush1.bf16.msra.mxu0 0
    %3998 = vmatprep.subr.bf16.mxu0 0
    %3999 = vmatpush1.bf16.msra.mxu0 0
    %4000 = vmatprep.subr.bf16.mxu0 0
    %4001 = vmatpush1.bf16.msra.mxu0 0
    %4002 = vmatprep.subr.bf16.mxu0 0
    %4003 = vmatpush1.bf16.msra.mxu0 0
    %4004 = vmatprep.subr.bf16.mxu0 0
    %4005 = vmatpush1.bf16.msra.mxu0 0
    %4006 = vmatprep.subr.bf16.mxu0 0
    %4007 = vmatpush1.bf16.msra.mxu0 0
    %4008 = vmatprep.subr.bf16.mxu0 0
    %4009 = vmatpush1.bf16.msra.mxu0 0
    %4010 = vmatprep.subr.bf16.mxu0 0
    %4011 = vmatpush1.bf16.msra.mxu0 0
    %4012 = vmatprep.mubr.bf16.mxu0 0
    %4013 = vmatmul.mubr.bf16.gmra.mrb[0].mxu0 %v3212
    %v4014 = vpop.f32.mrb[0].mxu0
    %v4015 = vadd.f32 %v3348, %v4014
    %v4016 = vpop.f32.mrb[0].mxu0
    %v4017 = vadd.f32 %v3352, %v4016
    %v4018 = vpop.f32.mrb[0].mxu0
    %v4019 = vpop.f32.mrb[0].mxu0
    %4020 = vdwg.mxu0
    %4021 = vmatprep.subr.bf16.mxu0 0
    %4022 = vmatpush1.bf16.msra.mxu0 %v3650
    %4023 = vmatprep.subr.bf16.mxu0 0
    %4024 = vmatpush1.bf16.msra.mxu0 %v3661
    %4025 = vmatprep.subr.bf16.mxu0 0
    %4026 = vmatpush1.bf16.msra.mxu0 %v3672
    %4027 = vmatprep.subr.bf16.mxu0 0
    %4028 = vmatpush1.bf16.msra.mxu0 %v3683
    %4029 = vmatprep.subr.bf16.mxu0 0
    %4030 = vmatpush1.bf16.msra.mxu0 %v3694
    %4031 = vmatprep.subr.bf16.mxu0 0
    %4032 = vmatpush1.bf16.msra.mxu0 %v3705
    %4033 = vmatprep.subr.bf16.mxu0 0
    %4034 = vmatpush1.bf16.msra.mxu0 %v3716
    %4035 = vmatprep.subr.bf16.mxu0 0
    %4036 = vmatpush1.bf16.msra.mxu0 %v3727
    %4037 = vmatprep.subr.bf16.mxu0 0
    %4038 = vmatpush1.bf16.msra.mxu0 0
    %4039 = vmatprep.subr.bf16.mxu0 0
    %4040 = vmatpush1.bf16.msra.mxu0 0
    %4041 = vmatprep.subr.bf16.mxu0 0
    %4042 = vmatpush1.bf16.msra.mxu0 0
    %4043 = vmatprep.subr.bf16.mxu0 0
    %4044 = vmatpush1.bf16.msra.mxu0 0
    %4045 = vmatprep.subr.bf16.mxu0 0
    %4046 = vmatpush1.bf16.msra.mxu0 0
    %4047 = vmatprep.subr.bf16.mxu0 0
    %4048 = vmatpush1.bf16.msra.mxu0 0
    %4049 = vmatprep.subr.bf16.mxu0 0
    %4050 = vmatpush1.bf16.msra.mxu0 0
    %4051 = vmatprep.subr.bf16.mxu0 0
    %4052 = vmatpush1.bf16.msra.mxu0 0
    %4053 = vmatprep.mubr.bf16.mxu0 0
    %4054 = vmatmul.mubr.bf16.gmra.mrb[0].mxu0 %v3212
    %v4055 = vpop.f32.mrb[0].mxu0
    %v4056 = vadd.f32 %v3356, %v4055
    %v4057 = vpop.f32.mrb[0].mxu0
    %v4058 = vpop.f32.mrb[0].mxu0
    %v4059 = vpop.f32.mrb[0].mxu0
    %4060 = vdwg.mxu0
    %v4061 = vmax.f32 %v3851, %v3933
    %v4062 = vmax.f32 %v3853, %v3935
    %v4063 = vmax.f32 %v3892, %v3974
    %v4064 = vmax.f32 %v3894, %v3976
    %v4065 = vmax.f32 %v4061, %v4015
    %v4066 = vmax.f32 %v4062, %v4017
    %v4067 = vmax.f32 %v4063, %v4056
    %v4068 = vmax.f32 %v4065, %v4066
    %v4069 = vmax.f32 %v4067, %v4064
    %v4070 = vmax.f32 %v4068, %v4069
    %4071 = vmax.xlane.f32.xlu0 %v4070
    %v4072 = vpop.xlane.xlu0 %4071
    %v4073 = vsub.f32 %v3851, %v4072
    %v4074 = vsub.f32 %v3853, %v4072
    %v4075 = vsub.f32 %v3892, %v4072
    %v4076 = vsub.f32 %v3894, %v4072
    %v4077 = vsub.f32 %v3933, %v4072
    %v4078 = vsub.f32 %v3935, %v4072
    %v4079 = vsub.f32 %v3974, %v4072
    %v4080 = vsub.f32 %v3976, %v4072
    %v4081 = vsub.f32 %v4015, %v4072
    %v4082 = vsub.f32 %v4017, %v4072
    %v4083 = vsub.f32 %v4056, %v4072
    %v4084 = vmul.f32 %v4073, 1.442695
    %v4085 = vpow.pop %v4084
    %v4086 = vmul.f32 %v4074, 1.442695
    %v4087 = vpow.pop %v4086
    %v4088 = vmul.f32 %v4075, 1.442695
    %v4089 = vpow.pop %v4088
    %v4090 = vmul.f32 %v4076, 1.442695
    %v4091 = vpow.pop %v4090
    %v4092 = vmul.f32 %v4077, 1.442695
    %v4093 = vpow.pop %v4092
    %v4094 = vmul.f32 %v4078, 1.442695
    %v4095 = vpow.pop %v4094
    %v4096 = vmul.f32 %v4079, 1.442695
    %v4097 = vpow.pop %v4096
    %v4098 = vmul.f32 %v4080, 1.442695
    %v4099 = vpow.pop %v4098
    %v4100 = vmul.f32 %v4081, 1.442695
    %v4101 = vpow.pop %v4100
    %v4102 = vmul.f32 %v4082, 1.442695
    %v4103 = vpow.pop %v4102
    %v4104 = vmul.f32 %v4083, 1.442695
    %v4105 = vpow.pop %v4104
    %v4106 = vadd.f32 %v4085, %v4087
    %v4107 = vadd.f32 %v4106, %v4089
    %v4108 = vadd.f32 %v4107, %v4091
    %v4109 = vadd.f32 %v4108, %v4093
    %v4110 = vadd.f32 %v4109, %v4095
    %v4111 = vadd.f32 %v4110, %v4097
    %v4112 = vadd.f32 %v4111, %v4099
    %v4113 = vadd.f32 %v4112, %v4101
    %v4114 = vadd.f32 %v4113, %v4103
    %v4115 = vadd.f32 %v4114, %v4105
    %4116 = vadd.xlane.f32.xlu0 %v4115
    %v4117 = vpop.xlane.xlu0 %4116
    %v4118 = vrcp.pop %v4117
    %v4119 = vmul.f32 %v4085, %v4118
    %v4120 = vmul.f32 %v4087, %v4118
    %v4121 = vmul.f32 %v4089, %v4118
    %v4122 = vmul.f32 %v4091, %v4118
    %v4123 = vmul.f32 %v4093, %v4118
    %v4124 = vmul.f32 %v4095, %v4118
    %v4125 = vmul.f32 %v4097, %v4118
    %v4126 = vmul.f32 %v4099, %v4118
    %v4127 = vmul.f32 %v4101, %v4118
    %v4128 = vmul.f32 %v4103, %v4118
    %v4129 = vmul.f32 %v4105, %v4118
    %4130 = vst [vmem:[#allocation16] sm:$0xff] %v4119
    %4131 = vst [vmem:[#allocation16 + $0x8] sm:$0xff] %v4120
    %4132 = vst [vmem:[#allocation16 + $0x10] sm:$0xff] %v4121
    %4133 = vst [vmem:[#allocation16 + $0x18] sm:$0xff] %v4122
    %4134 = vst [vmem:[#allocation16 + $0x20] sm:$0xff] %v4123
    %4135 = vst [vmem:[#allocation16 + $0x28] sm:$0xff] %v4124
    %4136 = vst [vmem:[#allocation16 + $0x30] sm:$0xff] %v4125
    %4137 = vst [vmem:[#allocation16 + $0x38] sm:$0xff] %v4126
    %4138 = vst [vmem:[#allocation16 + $0x40] sm:$0xff] %v4127
    %4139 = vst [vmem:[#allocation16 + $0x48] sm:$0xff] %v4128
    %4140 = vst [vmem:[#allocation16 + $0x50] sm:$0xff] %v4129
    %v4141 = vmul.f32 %v4119, %v2454
    %v4142 = vmul.f32 %v4120, %v2456
    %v4143 = vmul.f32 %v4121, %v2536
    %v4144 = vmul.f32 %v4122, %v2538
    %v4145 = vmul.f32 %v4123, %v2618
    %v4146 = vmul.f32 %v4124, %v2620
    %v4147 = vmul.f32 %v4125, %v2700
    %v4148 = vmul.f32 %v4126, %v2702
    %v4149 = vmul.f32 %v4127, %v2782
    %v4150 = vmul.f32 %v4128, %v2784
    %v4151 = vmul.f32 %v4129, %v2863
    %v4152 = vpack.c.bf16 %v4141, %v4141
    %v4153 = vpack.c.bf16 %v4142, %v4142
    %v4154 = vpack.c.bf16 %v4143, %v4143
    %v4155 = vpack.c.bf16 %v4144, %v4144
    %v4156 = vpack.c.bf16 %v4145, %v4145
    %v4157 = vpack.c.bf16 %v4146, %v4146
    %v4158 = vpack.c.bf16 %v4147, %v4147
    %v4159 = vpack.c.bf16 %v4148, %v4148
    %v4160 = vpack.c.bf16 %v4149, %v4149
    %v4161 = vpack.c.bf16 %v4150, %v4150
    %v4162 = vpack.c.bf16 %v4151, %v4151
    %v4163 = vld [vmem:[%s7] sm:$0xf]
    %v4164 = vld [vmem:[%s7 + $0x4] sm:$0xf]
    %v4165 = vld [vmem:[%s7 + $0x8] sm:$0xf]
    %v4166 = vld [vmem:[%s7 + $0xc] sm:$0xf]
    %v4167 = vld [vmem:[%s7 + $0x10] sm:$0xf]
    %v4168 = vld [vmem:[%s7 + $0x14] sm:$0xf]
    %v4169 = vld [vmem:[%s7 + $0x18] sm:$0xf]
    %v4170 = vld [vmem:[%s7 + $0x1c] sm:$0xf]
    %v4171 = vld [vmem:[%s7 + $0x20] sm:$0xf]
    %v4172 = vld [vmem:[%s7 + $0x24] sm:$0xf]
    %v4173 = vld [vmem:[%s7 + $0x28] sm:$0xf]
    %v4174 = vld [vmem:[%s7 + $0x2c] sm:$0xf]
    %v4175 = vld [vmem:[%s7 + $0x30] sm:$0xf]
    %v4176 = vld [vmem:[%s7 + $0x34] sm:$0xf]
    %v4177 = vld [vmem:[%s7 + $0x38] sm:$0xf]
    %v4178 = vld [vmem:[%s7 + $0x3c] sm:$0xf]
    %v4179 = vld [vmem:[%s7 + $0x40] sm:$0xf]
    %v4180 = vld [vmem:[%s7 + $0x44] sm:$0xf]
    %v4181 = vld [vmem:[%s7 + $0x48] sm:$0xf]
    %v4182 = vld [vmem:[%s7 + $0x4c] sm:$0xf]
    %v4183 = vld [vmem:[%s7 + $0x50] sm:$0xf]
    %v4184 = vld [vmem:[%s7 + $0x54] sm:$0xf]
    %v4185 = vld [vmem:[%s7 + $0x58] sm:$0xf]
    %v4186 = vld [vmem:[%s7 + $0x5c] sm:$0xf]
    %v4187 = vld [vmem:[%s7 + $0x60] sm:$0xf]
    %v4188 = vld [vmem:[%s7 + $0x64] sm:$0xf]
    %v4189 = vld [vmem:[%s7 + $0x68] sm:$0xf]
    %v4190 = vld [vmem:[%s7 + $0x6c] sm:$0xf]
    %v4191 = vld [vmem:[%s7 + $0x70] sm:$0xf]
    %v4192 = vld [vmem:[%s7 + $0x74] sm:$0xf]
    %v4193 = vld [vmem:[%s7 + $0x78] sm:$0xf]
    %v4194 = vld [vmem:[%s7 + $0x7c] sm:$0xf]
    %v4195 = vld [vmem:[%s7 + $0x80] sm:$0xf]
    %v4196 = vld [vmem:[%s7 + $0x84] sm:$0xf]
    %v4197 = vld [vmem:[%s7 + $0x88] sm:$0xf]
    %v4198 = vld [vmem:[%s7 + $0x8c] sm:$0xf]
    %v4199 = vld [vmem:[%s7 + $0x90] sm:$0xf]
    %v4200 = vld [vmem:[%s7 + $0x94] sm:$0xf]
    %v4201 = vld [vmem:[%s7 + $0x98] sm:$0xf]
    %v4202 = vld [vmem:[%s7 + $0x9c] sm:$0xf]
    %v4203 = vld [vmem:[%s7 + $0xa0] sm:$0xf]
    %v4204 = vld [vmem:[%s7 + $0xa4] sm:$0xf]
    %v4205 = vld [vmem:[%s7 + $0xa8] sm:$0xf]
    %v4206 = vld [vmem:[%s7 + $0xac] sm:$0xf]
    %v4207 = vld [vmem:[%s7 + $0xb0] sm:$0xf]
    %v4208 = vld [vmem:[%s7 + $0xb4] sm:$0xf]
    %v4209 = vld [vmem:[%s7 + $0xb8] sm:$0xf]
    %v4210 = vld [vmem:[%s7 + $0xbc] sm:$0xf]
    %v4211 = vld [vmem:[%s7 + $0xc0] sm:$0xf]
    %v4212 = vld [vmem:[%s7 + $0xc4] sm:$0xf]
    %v4213 = vld [vmem:[%s7 + $0xc8] sm:$0xf]
    %v4214 = vld [vmem:[%s7 + $0xcc] sm:$0xf]
    %v4215 = vld [vmem:[%s7 + $0xd0] sm:$0xf]
    %v4216 = vld [vmem:[%s7 + $0xd4] sm:$0xf]
    %v4217 = vld [vmem:[%s7 + $0xd8] sm:$0xf]
    %v4218 = vld [vmem:[%s7 + $0xdc] sm:$0xf]
    %v4219 = vld [vmem:[%s7 + $0xe0] sm:$0xf]
    %v4220 = vld [vmem:[%s7 + $0xe4] sm:$0xf]
    %v4221 = vld [vmem:[%s7 + $0xe8] sm:$0xf]
    %v4222 = vld [vmem:[%s7 + $0xec] sm:$0xf]
    %v4223 = vld [vmem:[%s7 + $0xf0] sm:$0xf]
    %v4224 = vld [vmem:[%s7 + $0xf4] sm:$0xf]
    %v4225 = vld [vmem:[%s7 + $0xf8] sm:$0xf]
    %v4226 = vld [vmem:[%s7 + $0xfc] sm:$0xf]
    %v4227 = vld [vmem:[%s7 + $0x100] sm:$0xf]
    %v4228 = vld [vmem:[%s7 + $0x104] sm:$0xf]
    %v4229 = vld [vmem:[%s7 + $0x108] sm:$0xf]
    %v4230 = vld [vmem:[%s7 + $0x10c] sm:$0xf]
    %v4231 = vld [vmem:[%s7 + $0x110] sm:$0xf]
    %v4232 = vld [vmem:[%s7 + $0x114] sm:$0xf]
    %v4233 = vld [vmem:[%s7 + $0x118] sm:$0xf]
    %v4234 = vld [vmem:[%s7 + $0x11c] sm:$0xf]
    %v4235 = vld [vmem:[%s7 + $0x120] sm:$0xf]
    %v4236 = vld [vmem:[%s7 + $0x124] sm:$0xf]
    %v4237 = vld [vmem:[%s7 + $0x128] sm:$0xf]
    %v4238 = vld [vmem:[%s7 + $0x12c] sm:$0xf]
    %v4239 = vld [vmem:[%s7 + $0x130] sm:$0xf]
    %v4240 = vld [vmem:[%s7 + $0x134] sm:$0xf]
    %v4241 = vld [vmem:[%s7 + $0x138] sm:$0xf]
    %v4242 = vld [vmem:[%s7 + $0x13c] sm:$0xf]
    %v4243 = vld [vmem:[%s7 + $0x140] sm:$0xf]
    %v4244 = vld [vmem:[%s7 + $0x144] sm:$0xf]
    %v4245 = vld [vmem:[%s7 + $0x148] sm:$0xf]
    %v4246 = vld [vmem:[%s7 + $0x14c] sm:$0xf]
    %v4247 = vld [vmem:[%s7 + $0x150] sm:$0xf]
    %v4248 = vld [vmem:[%s7 + $0x154] sm:$0xf]
    %v4249 = vld [vmem:[%s7 + $0x158] sm:$0xf]
    %v4250 = vld [vmem:[%s7 + $0x15c] sm:$0xf]
    %v4251 = vld [vmem:[%s7 + $0x160] sm:$0xf]
    %v4252 = vld [vmem:[%s7 + $0x164] sm:$0xf]
    %v4253 = vld [vmem:[%s7 + $0x168] sm:$0xf]
    %v4254 = vld [vmem:[%s7 + $0x16c] sm:$0xf]
    %v4255 = vld [vmem:[%s7 + $0x170] sm:$0xf]
    %v4256 = vld [vmem:[%s7 + $0x174] sm:$0xf]
    %v4257 = vld [vmem:[%s7 + $0x178] sm:$0xf]
    %v4258 = vld [vmem:[%s7 + $0x17c] sm:$0xf]
    %v4259 = vld [vmem:[%s7 + $0x180] sm:$0xf]
    %v4260 = vld [vmem:[%s7 + $0x184] sm:$0xf]
    %v4261 = vld [vmem:[%s7 + $0x188] sm:$0xf]
    %v4262 = vld [vmem:[%s7 + $0x18c] sm:$0xf]
    %v4263 = vld [vmem:[%s7 + $0x190] sm:$0xf]
    %v4264 = vld [vmem:[%s7 + $0x194] sm:$0xf]
    %v4265 = vld [vmem:[%s7 + $0x198] sm:$0xf]
    %v4266 = vld [vmem:[%s7 + $0x19c] sm:$0xf]
    %v4267 = vld [vmem:[%s7 + $0x1a0] sm:$0xf]
    %v4268 = vld [vmem:[%s7 + $0x1a4] sm:$0xf]
    %v4269 = vld [vmem:[%s7 + $0x1a8] sm:$0xf]
    %v4270 = vld [vmem:[%s7 + $0x1ac] sm:$0xf]
    %v4271 = vld [vmem:[%s7 + $0x1b0] sm:$0xf]
    %v4272 = vld [vmem:[%s7 + $0x1b4] sm:$0xf]
    %v4273 = vld [vmem:[%s7 + $0x1b8] sm:$0xf]
    %v4274 = vld [vmem:[%s7 + $0x1bc] sm:$0xf]
    %v4275 = vld [vmem:[%s7 + $0x1c0] sm:$0xf]
    %v4276 = vld [vmem:[%s7 + $0x1c4] sm:$0xf]
    %v4277 = vld [vmem:[%s7 + $0x1c8] sm:$0xf]
    %v4278 = vld [vmem:[%s7 + $0x1cc] sm:$0xf]
    %v4279 = vld [vmem:[%s7 + $0x1d0] sm:$0xf]
    %v4280 = vld [vmem:[%s7 + $0x1d4] sm:$0xf]
    %v4281 = vld [vmem:[%s7 + $0x1d8] sm:$0xf]
    %v4282 = vld [vmem:[%s7 + $0x1dc] sm:$0xf]
    %v4283 = vld [vmem:[%s7 + $0x1e0] sm:$0xf]
    %v4284 = vld [vmem:[%s7 + $0x1e4] sm:$0xf]
    %v4285 = vld [vmem:[%s7 + $0x1e8] sm:$0xf]
    %v4286 = vld [vmem:[%s7 + $0x1ec] sm:$0xf]
    %v4287 = vld [vmem:[%s7 + $0x1f0] sm:$0xf]
    %v4288 = vld [vmem:[%s7 + $0x1f4] sm:$0xf]
    %v4289 = vld [vmem:[%s7 + $0x1f8] sm:$0xf]
    %v4290 = vld [vmem:[%s7 + $0x1fc] sm:$0xf]
    %v4291 = vld [vmem:[%s7 + $0x200] sm:$0xf]
    %v4292 = vld [vmem:[%s7 + $0x204] sm:$0xf]
    %v4293 = vld [vmem:[%s7 + $0x208] sm:$0xf]
    %v4294 = vld [vmem:[%s7 + $0x20c] sm:$0xf]
    %v4295 = vld [vmem:[%s7 + $0x210] sm:$0xf]
    %v4296 = vld [vmem:[%s7 + $0x214] sm:$0xf]
    %v4297 = vld [vmem:[%s7 + $0x218] sm:$0xf]
    %v4298 = vld [vmem:[%s7 + $0x21c] sm:$0xf]
    %v4299 = vld [vmem:[%s7 + $0x220] sm:$0xf]
    %v4300 = vld [vmem:[%s7 + $0x224] sm:$0xf]
    %v4301 = vld [vmem:[%s7 + $0x228] sm:$0xf]
    %v4302 = vld [vmem:[%s7 + $0x22c] sm:$0xf]
    %v4303 = vld [vmem:[%s7 + $0x230] sm:$0xf]
    %v4304 = vld [vmem:[%s7 + $0x234] sm:$0xf]
    %v4305 = vld [vmem:[%s7 + $0x238] sm:$0xf]
    %v4306 = vld [vmem:[%s7 + $0x23c] sm:$0xf]
    %v4307 = vld [vmem:[%s7 + $0x240] sm:$0xf]
    %v4308 = vld [vmem:[%s7 + $0x244] sm:$0xf]
    %v4309 = vld [vmem:[%s7 + $0x248] sm:$0xf]
    %v4310 = vld [vmem:[%s7 + $0x24c] sm:$0xf]
    %v4311 = vld [vmem:[%s7 + $0x250] sm:$0xf]
    %v4312 = vld [vmem:[%s7 + $0x254] sm:$0xf]
    %v4313 = vld [vmem:[%s7 + $0x258] sm:$0xf]
    %v4314 = vld [vmem:[%s7 + $0x25c] sm:$0xf]
    %v4315 = vld [vmem:[%s7 + $0x260] sm:$0xf]
    %v4316 = vld [vmem:[%s7 + $0x264] sm:$0xf]
    %v4317 = vld [vmem:[%s7 + $0x268] sm:$0xf]
    %v4318 = vld [vmem:[%s7 + $0x26c] sm:$0xf]
    %v4319 = vld [vmem:[%s7 + $0x270] sm:$0xf]
    %v4320 = vld [vmem:[%s7 + $0x274] sm:$0xf]
    %v4321 = vld [vmem:[%s7 + $0x278] sm:$0xf]
    %v4322 = vld [vmem:[%s7 + $0x27c] sm:$0xf]
    %v4323 = vld [vmem:[%s7 + $0x280] sm:$0xf]
    %v4324 = vld [vmem:[%s7 + $0x284] sm:$0xf]
    %v4325 = vld [vmem:[%s7 + $0x288] sm:$0xf]
    %v4326 = vld [vmem:[%s7 + $0x28c] sm:$0xf]
    %v4327 = vld [vmem:[%s7 + $0x290] sm:$0xf]
    %v4328 = vld [vmem:[%s7 + $0x294] sm:$0xf]
    %v4329 = vld [vmem:[%s7 + $0x298] sm:$0xf]
    %v4330 = vld [vmem:[%s7 + $0x29c] sm:$0xf]
    %v4331 = vld [vmem:[%s7 + $0x2a0] sm:$0xf]
    %v4332 = vld [vmem:[%s7 + $0x2a4] sm:$0xf]
    %v4333 = vld [vmem:[%s7 + $0x2a8] sm:$0xf]
    %v4334 = vld [vmem:[%s7 + $0x2ac] sm:$0xf]
    %v4335 = vld [vmem:[%s7 + $0x2b0] sm:$0xf]
    %v4336 = vld [vmem:[%s7 + $0x2b4] sm:$0xf]
    %v4337 = vld [vmem:[%s7 + $0x2b8] sm:$0xf]
    %v4338 = vld [vmem:[%s7 + $0x2bc] sm:$0xf]
    %v4339 = vld [vmem:[#allocation14] sm:$0x1]
    %v4341 = vlaneseq
    %v4342 = vshrl.u32 %v4341, 7
    %v4343 = vsub.s32 0, %v4342
    %v4344 = vrot.slane %v4339, %v4343
    %v4522 = vunpack.c.l.b16 %v4163
    %v4523 = vunpack.c.l.b16 %v4164
    %v4524 = vunpack.c.l.b16 %v4165
    %v4525 = vunpack.c.l.b16 %v4166
    %v4526 = vunpack.c.l.b16 %v4167
    %v4527 = vunpack.c.l.b16 %v4168
    %v4528 = vunpack.c.l.b16 %v4169
    %v4529 = vunpack.c.l.b16 %v4170
    %v4530 = vunpack.c.l.b16 %v4171
    %v4531 = vunpack.c.l.b16 %v4172
    %v4532 = vunpack.c.l.b16 %v4173
    %v4533 = vunpack.c.l.b16 %v4174
    %v4534 = vunpack.c.l.b16 %v4175
    %v4535 = vunpack.c.l.b16 %v4176
    %v4536 = vunpack.c.l.b16 %v4177
    %v4537 = vunpack.c.l.b16 %v4178
    %v4538 = vunpack.c.l.b16 %v4179
    %v4539 = vunpack.c.l.b16 %v4180
    %v4540 = vunpack.c.l.b16 %v4181
    %v4541 = vunpack.c.l.b16 %v4182
    %v4542 = vunpack.c.l.b16 %v4183
    %v4543 = vunpack.c.l.b16 %v4184
    %v4544 = vunpack.c.l.b16 %v4185
    %v4545 = vunpack.c.l.b16 %v4186
    %v4546 = vunpack.c.l.b16 %v4187
    %v4547 = vunpack.c.l.b16 %v4188
    %v4548 = vunpack.c.l.b16 %v4189
    %v4549 = vunpack.c.l.b16 %v4190
    %v4550 = vunpack.c.l.b16 %v4191
    %v4551 = vunpack.c.l.b16 %v4192
    %v4552 = vunpack.c.l.b16 %v4193
    %v4553 = vunpack.c.l.b16 %v4194
    %v4554 = vunpack.c.l.b16 %v4195
    %v4555 = vunpack.c.l.b16 %v4196
    %v4556 = vunpack.c.l.b16 %v4197
    %v4557 = vunpack.c.l.b16 %v4198
    %v4558 = vunpack.c.l.b16 %v4199
    %v4559 = vunpack.c.l.b16 %v4200
    %v4560 = vunpack.c.l.b16 %v4201
    %v4561 = vunpack.c.l.b16 %v4202
    %v4562 = vunpack.c.l.b16 %v4203
    %v4563 = vunpack.c.l.b16 %v4204
    %v4564 = vunpack.c.l.b16 %v4205
    %v4565 = vunpack.c.l.b16 %v4206
    %v4566 = vunpack.c.l.b16 %v4207
    %v4567 = vunpack.c.l.b16 %v4208
    %v4568 = vunpack.c.l.b16 %v4209
    %v4569 = vunpack.c.l.b16 %v4210
    %v4570 = vunpack.c.l.b16 %v4211
    %v4571 = vunpack.c.l.b16 %v4212
    %v4572 = vunpack.c.l.b16 %v4213
    %v4573 = vunpack.c.l.b16 %v4214
    %v4574 = vunpack.c.l.b16 %v4215
    %v4575 = vunpack.c.l.b16 %v4216
    %v4576 = vunpack.c.l.b16 %v4217
    %v4577 = vunpack.c.l.b16 %v4218
    %v4578 = vunpack.c.l.b16 %v4219
    %v4579 = vunpack.c.l.b16 %v4220
    %v4580 = vunpack.c.l.b16 %v4221
    %v4581 = vunpack.c.l.b16 %v4222
    %v4582 = vunpack.c.l.b16 %v4223
    %v4583 = vunpack.c.l.b16 %v4224
    %v4584 = vunpack.c.l.b16 %v4225
    %v4585 = vunpack.c.l.b16 %v4226
    %v4586 = vunpack.c.l.b16 %v4227
    %v4587 = vunpack.c.l.b16 %v4228
    %v4588 = vunpack.c.l.b16 %v4229
    %v4589 = vunpack.c.l.b16 %v4230
    %v4590 = vunpack.c.l.b16 %v4231
    %v4591 = vunpack.c.l.b16 %v4232
    %v4592 = vunpack.c.l.b16 %v4233
    %v4593 = vunpack.c.l.b16 %v4234
    %v4594 = vunpack.c.l.b16 %v4235
    %v4595 = vunpack.c.l.b16 %v4236
    %v4596 = vunpack.c.l.b16 %v4237
    %v4597 = vunpack.c.l.b16 %v4238
    %v4598 = vunpack.c.l.b16 %v4239
    %v4599 = vunpack.c.l.b16 %v4240
    %v4600 = vunpack.c.l.b16 %v4241
    %v4601 = vunpack.c.l.b16 %v4242
    %v4602 = vunpack.c.l.b16 %v4243
    %v4603 = vunpack.c.l.b16 %v4244
    %v4604 = vunpack.c.l.b16 %v4245
    %v4605 = vunpack.c.l.b16 %v4246
    %v4606 = vunpack.c.l.b16 %v4247
    %v4607 = vunpack.c.l.b16 %v4248
    %v4608 = vunpack.c.l.b16 %v4249
    %v4609 = vunpack.c.l.b16 %v4250
    %v4610 = vunpack.c.l.b16 %v4251
    %v4611 = vunpack.c.l.b16 %v4252
    %v4612 = vunpack.c.l.b16 %v4253
    %v4613 = vunpack.c.l.b16 %v4254
    %v4614 = vunpack.c.l.b16 %v4255
    %v4615 = vunpack.c.l.b16 %v4256
    %v4616 = vunpack.c.l.b16 %v4257
    %v4617 = vunpack.c.l.b16 %v4258
    %v4618 = vunpack.c.l.b16 %v4259
    %v4619 = vunpack.c.l.b16 %v4260
    %v4620 = vunpack.c.l.b16 %v4261
    %v4621 = vunpack.c.l.b16 %v4262
    %v4622 = vunpack.c.l.b16 %v4263
    %v4623 = vunpack.c.l.b16 %v4264
    %v4624 = vunpack.c.l.b16 %v4265
    %v4625 = vunpack.c.l.b16 %v4266
    %v4626 = vunpack.c.l.b16 %v4267
    %v4627 = vunpack.c.l.b16 %v4268
    %v4628 = vunpack.c.l.b16 %v4269
    %v4629 = vunpack.c.l.b16 %v4270
    %v4630 = vunpack.c.l.b16 %v4271
    %v4631 = vunpack.c.l.b16 %v4272
    %v4632 = vunpack.c.l.b16 %v4273
    %v4633 = vunpack.c.l.b16 %v4274
    %v4634 = vunpack.c.l.b16 %v4275
    %v4635 = vunpack.c.l.b16 %v4276
    %v4636 = vunpack.c.l.b16 %v4277
    %v4637 = vunpack.c.l.b16 %v4278
    %v4638 = vunpack.c.l.b16 %v4279
    %v4639 = vunpack.c.l.b16 %v4280
    %v4640 = vunpack.c.l.b16 %v4281
    %v4641 = vunpack.c.l.b16 %v4282
    %v4642 = vunpack.c.l.b16 %v4283
    %v4643 = vunpack.c.l.b16 %v4284
    %v4644 = vunpack.c.l.b16 %v4285
    %v4645 = vunpack.c.l.b16 %v4286
    %v4646 = vunpack.c.l.b16 %v4287
    %v4647 = vunpack.c.l.b16 %v4288
    %v4648 = vunpack.c.l.b16 %v4289
    %v4649 = vunpack.c.l.b16 %v4290
    %v4650 = vunpack.c.l.b16 %v4291
    %v4651 = vunpack.c.l.b16 %v4292
    %v4652 = vunpack.c.l.b16 %v4293
    %v4653 = vunpack.c.l.b16 %v4294
    %v4654 = vunpack.c.l.b16 %v4295
    %v4655 = vunpack.c.l.b16 %v4296
    %v4656 = vunpack.c.l.b16 %v4297
    %v4657 = vunpack.c.l.b16 %v4298
    %v4658 = vunpack.c.l.b16 %v4299
    %v4659 = vunpack.c.l.b16 %v4300
    %v4660 = vunpack.c.l.b16 %v4301
    %v4661 = vunpack.c.l.b16 %v4302
    %v4662 = vunpack.c.l.b16 %v4303
    %v4663 = vunpack.c.l.b16 %v4304
    %v4664 = vunpack.c.l.b16 %v4305
    %v4665 = vunpack.c.l.b16 %v4306
    %v4666 = vunpack.c.l.b16 %v4307
    %v4667 = vunpack.c.l.b16 %v4308
    %v4668 = vunpack.c.l.b16 %v4309
    %v4669 = vunpack.c.l.b16 %v4310
    %v4670 = vunpack.c.l.b16 %v4311
    %v4671 = vunpack.c.l.b16 %v4312
    %v4672 = vunpack.c.l.b16 %v4313
    %v4673 = vunpack.c.l.b16 %v4314
    %v4674 = vunpack.c.l.b16 %v4315
    %v4675 = vunpack.c.l.b16 %v4316
    %v4676 = vunpack.c.l.b16 %v4317
    %v4677 = vunpack.c.l.b16 %v4318
    %v4678 = vunpack.c.l.b16 %v4319
    %v4679 = vunpack.c.l.b16 %v4320
    %v4680 = vunpack.c.l.b16 %v4321
    %v4681 = vunpack.c.l.b16 %v4322
    %v4682 = vunpack.c.l.b16 %v4323
    %v4683 = vunpack.c.l.b16 %v4324
    %v4684 = vunpack.c.l.b16 %v4325
    %v4685 = vunpack.c.l.b16 %v4326
    %v4686 = vunpack.c.l.b16 %v4327
    %v4687 = vunpack.c.l.b16 %v4328
    %v4688 = vunpack.c.l.b16 %v4329
    %v4689 = vunpack.c.l.b16 %v4330
    %v4690 = vunpack.c.l.b16 %v4331
    %v4691 = vunpack.c.l.b16 %v4332
    %v4692 = vunpack.c.l.b16 %v4333
    %v4693 = vunpack.c.l.b16 %v4334
    %v4694 = vunpack.c.l.b16 %v4335
    %v4695 = vunpack.c.l.b16 %v4336
    %v4696 = vunpack.c.l.b16 %v4337
    %v4697 = vunpack.c.l.b16 %v4338
    %v4698 = vpack.c.b16 %v4523, %v4522
    %v4699 = vpack.c.b16 %v4525, %v4524
    %v4700 = vpack.c.b16 %v4527, %v4526
    %v4701 = vpack.c.b16 %v4529, %v4528
    %v4702 = vpack.c.b16 %v4531, %v4530
    %v4703 = vpack.c.b16 %v4533, %v4532
    %v4704 = vpack.c.b16 %v4535, %v4534
    %v4705 = vpack.c.b16 %v4537, %v4536
    %v4706 = vpack.c.b16 %v4539, %v4538
    %v4707 = vpack.c.b16 %v4541, %v4540
    %v4708 = vpack.c.b16 %v4543, %v4542
    %v4709 = vpack.c.b16 %v4545, %v4544
    %v4710 = vpack.c.b16 %v4547, %v4546
    %v4711 = vpack.c.b16 %v4549, %v4548
    %v4712 = vpack.c.b16 %v4551, %v4550
    %v4713 = vpack.c.b16 %v4553, %v4552
    %v4714 = vpack.c.b16 %v4555, %v4554
    %v4715 = vpack.c.b16 %v4557, %v4556
    %v4716 = vpack.c.b16 %v4559, %v4558
    %v4717 = vpack.c.b16 %v4561, %v4560
    %v4718 = vpack.c.b16 %v4563, %v4562
    %v4719 = vpack.c.b16 %v4565, %v4564
    %v4720 = vpack.c.b16 %v4567, %v4566
    %v4721 = vpack.c.b16 %v4569, %v4568
    %v4722 = vpack.c.b16 %v4571, %v4570
    %v4723 = vpack.c.b16 %v4573, %v4572
    %v4724 = vpack.c.b16 %v4575, %v4574
    %v4725 = vpack.c.b16 %v4577, %v4576
    %v4726 = vpack.c.b16 %v4579, %v4578
    %v4727 = vpack.c.b16 %v4581, %v4580
    %v4728 = vpack.c.b16 %v4583, %v4582
    %v4729 = vpack.c.b16 %v4585, %v4584
    %v4730 = vpack.c.b16 %v4587, %v4586
    %v4731 = vpack.c.b16 %v4589, %v4588
    %v4732 = vpack.c.b16 %v4591, %v4590
    %v4733 = vpack.c.b16 %v4593, %v4592
    %v4734 = vpack.c.b16 %v4595, %v4594
    %v4735 = vpack.c.b16 %v4597, %v4596
    %v4736 = vpack.c.b16 %v4599, %v4598
    %v4737 = vpack.c.b16 %v4601, %v4600
    %v4738 = vpack.c.b16 %v4603, %v4602
    %v4739 = vpack.c.b16 %v4605, %v4604
    %v4740 = vpack.c.b16 %v4607, %v4606
    %v4741 = vpack.c.b16 %v4609, %v4608
    %v4742 = vpack.c.b16 %v4611, %v4610
    %v4743 = vpack.c.b16 %v4613, %v4612
    %v4744 = vpack.c.b16 %v4615, %v4614
    %v4745 = vpack.c.b16 %v4617, %v4616
    %v4746 = vpack.c.b16 %v4619, %v4618
    %v4747 = vpack.c.b16 %v4621, %v4620
    %v4748 = vpack.c.b16 %v4623, %v4622
    %v4749 = vpack.c.b16 %v4625, %v4624
    %v4750 = vpack.c.b16 %v4627, %v4626
    %v4751 = vpack.c.b16 %v4629, %v4628
    %v4752 = vpack.c.b16 %v4631, %v4630
    %v4753 = vpack.c.b16 %v4633, %v4632
    %v4754 = vpack.c.b16 %v4635, %v4634
    %v4755 = vpack.c.b16 %v4637, %v4636
    %v4756 = vpack.c.b16 %v4639, %v4638
    %v4757 = vpack.c.b16 %v4641, %v4640
    %v4758 = vpack.c.b16 %v4643, %v4642
    %v4759 = vpack.c.b16 %v4645, %v4644
    %v4760 = vpack.c.b16 %v4647, %v4646
    %v4761 = vpack.c.b16 %v4649, %v4648
    %v4762 = vpack.c.b16 %v4651, %v4650
    %v4763 = vpack.c.b16 %v4653, %v4652
    %v4764 = vpack.c.b16 %v4655, %v4654
    %v4765 = vpack.c.b16 %v4657, %v4656
    %v4766 = vpack.c.b16 %v4659, %v4658
    %v4767 = vpack.c.b16 %v4661, %v4660
    %v4768 = vpack.c.b16 %v4663, %v4662
    %v4769 = vpack.c.b16 %v4665, %v4664
    %v4770 = vpack.c.b16 %v4667, %v4666
    %v4771 = vpack.c.b16 %v4669, %v4668
    %v4772 = vpack.c.b16 %v4671, %v4670
    %v4773 = vpack.c.b16 %v4673, %v4672
    %v4774 = vpack.c.b16 %v4675, %v4674
    %v4775 = vpack.c.b16 %v4677, %v4676
    %v4776 = vpack.c.b16 %v4679, %v4678
    %v4777 = vpack.c.b16 %v4681, %v4680
    %v4778 = vpack.c.b16 %v4683, %v4682
    %v4779 = vpack.c.b16 %v4685, %v4684
    %v4780 = vpack.c.b16 %v4687, %v4686
    %v4781 = vpack.c.b16 %v4689, %v4688
    %v4782 = vpack.c.b16 %v4691, %v4690
    %v4783 = vpack.c.b16 %v4693, %v4692
    %v4784 = vpack.c.b16 %v4695, %v4694
    %v4785 = vpack.c.b16 %v4697, %v4696
    %4874 = vmatprep.subr.bf16.mxu0 0
    %4875 = vmatpush1.bf16.msra.mxu0 %v4698
    %4876 = vmatprep.subr.bf16.mxu0 0
    %4877 = vmatpush1.bf16.msra.mxu0 %v4699
    %4878 = vmatprep.subr.bf16.mxu0 0
    %4879 = vmatpush1.bf16.msra.mxu0 %v4700
    %4880 = vmatprep.subr.bf16.mxu0 0
    %4881 = vmatpush1.bf16.msra.mxu0 %v4701
    %4882 = vmatprep.subr.bf16.mxu0 0
    %4883 = vmatpush1.bf16.msra.mxu0 %v4702
    %4884 = vmatprep.subr.bf16.mxu0 0
    %4885 = vmatpush1.bf16.msra.mxu0 %v4703
    %4886 = vmatprep.subr.bf16.mxu0 0
    %4887 = vmatpush1.bf16.msra.mxu0 %v4704
    %4888 = vmatprep.subr.bf16.mxu0 0
    %4889 = vmatpush1.bf16.msra.mxu0 %v4705
    %4890 = vmatprep.subr.bf16.mxu0 0
    %4891 = vmatpush1.bf16.msra.mxu0 %v4706
    %4892 = vmatprep.subr.bf16.mxu0 0
    %4893 = vmatpush1.bf16.msra.mxu0 %v4707
    %4894 = vmatprep.subr.bf16.mxu0 0
    %4895 = vmatpush1.bf16.msra.mxu0 %v4708
    %4896 = vmatprep.subr.bf16.mxu0 0
    %4897 = vmatpush1.bf16.msra.mxu0 %v4709
    %4898 = vmatprep.subr.bf16.mxu0 0
    %4899 = vmatpush1.bf16.msra.mxu0 %v4710
    %4900 = vmatprep.subr.bf16.mxu0 0
    %4901 = vmatpush1.bf16.msra.mxu0 %v4711
    %4902 = vmatprep.subr.bf16.mxu0 0
    %4903 = vmatpush1.bf16.msra.mxu0 %v4712
    %4904 = vmatprep.subr.bf16.mxu0 0
    %4905 = vmatpush1.bf16.msra.mxu0 %v4713
    %4906 = vmatprep.mubr.bf16.mxu0 %v4153
    %4907 = vmatmul.mubr.bf16.gmra.mrb[0].mxu0 %v4152
    %v4908 = vpop.f32.mrb[0].mxu0
    %v4909 = vadd.f32 %v4344, %v4908
    %v4910 = vpop.f32.mrb[0].mxu0
    %v4911 = vpop.f32.mrb[0].mxu0
    %v4912 = vpop.f32.mrb[0].mxu0
    %4913 = vdwg.mxu0
    %4914 = vmatprep.subr.bf16.mxu0 0
    %4915 = vmatpush1.bf16.msra.mxu0 %v4714
    %4916 = vmatprep.subr.bf16.mxu0 0
    %4917 = vmatpush1.bf16.msra.mxu0 %v4715
    %4918 = vmatprep.subr.bf16.mxu0 0
    %4919 = vmatpush1.bf16.msra.mxu0 %v4716
    %4920 = vmatprep.subr.bf16.mxu0 0
    %4921 = vmatpush1.bf16.msra.mxu0 %v4717
    %4922 = vmatprep.subr.bf16.mxu0 0
    %4923 = vmatpush1.bf16.msra.mxu0 %v4718
    %4924 = vmatprep.subr.bf16.mxu0 0
    %4925 = vmatpush1.bf16.msra.mxu0 %v4719
    %4926 = vmatprep.subr.bf16.mxu0 0
    %4927 = vmatpush1.bf16.msra.mxu0 %v4720
    %4928 = vmatprep.subr.bf16.mxu0 0
    %4929 = vmatpush1.bf16.msra.mxu0 %v4721
    %4930 = vmatprep.subr.bf16.mxu0 0
    %4931 = vmatpush1.bf16.msra.mxu0 %v4722
    %4932 = vmatprep.subr.bf16.mxu0 0
    %4933 = vmatpush1.bf16.msra.mxu0 %v4723
    %4934 = vmatprep.subr.bf16.mxu0 0
    %4935 = vmatpush1.bf16.msra.mxu0 %v4724
    %4936 = vmatprep.subr.bf16.mxu0 0
    %4937 = vmatpush1.bf16.msra.mxu0 %v4725
    %4938 = vmatprep.subr.bf16.mxu0 0
    %4939 = vmatpush1.bf16.msra.mxu0 %v4726
    %4940 = vmatprep.subr.bf16.mxu0 0
    %4941 = vmatpush1.bf16.msra.mxu0 %v4727
    %4942 = vmatprep.subr.bf16.mxu0 0
    %4943 = vmatpush1.bf16.msra.mxu0 %v4728
    %4944 = vmatprep.subr.bf16.mxu0 0
    %4945 = vmatpush1.bf16.msra.mxu0 %v4729
    %4946 = vmatprep.mubr.bf16.mxu0 %v4155
    %4947 = vmatmul.mubr.bf16.gmra.mrb[0].mxu0 %v4154
    %v4948 = vpop.f32.mrb[0].mxu0
    %v4949 = vadd.f32 %v4909, %v4948
    %v4950 = vpop.f32.mrb[0].mxu0
    %v4951 = vpop.f32.mrb[0].mxu0
    %v4952 = vpop.f32.mrb[0].mxu0
    %4953 = vdwg.mxu0
    %4954 = vmatprep.subr.bf16.mxu0 0
    %4955 = vmatpush1.bf16.msra.mxu0 %v4730
    %4956 = vmatprep.subr.bf16.mxu0 0
    %4957 = vmatpush1.bf16.msra.mxu0 %v4731
    %4958 = vmatprep.subr.bf16.mxu0 0
    %4959 = vmatpush1.bf16.msra.mxu0 %v4732
    %4960 = vmatprep.subr.bf16.mxu0 0
    %4961 = vmatpush1.bf16.msra.mxu0 %v4733
    %4962 = vmatprep.subr.bf16.mxu0 0
    %4963 = vmatpush1.bf16.msra.mxu0 %v4734
    %4964 = vmatprep.subr.bf16.mxu0 0
    %4965 = vmatpush1.bf16.msra.mxu0 %v4735
    %4966 = vmatprep.subr.bf16.mxu0 0
    %4967 = vmatpush1.bf16.msra.mxu0 %v4736
    %4968 = vmatprep.subr.bf16.mxu0 0
    %4969 = vmatpush1.bf16.msra.mxu0 %v4737
    %4970 = vmatprep.subr.bf16.mxu0 0
    %4971 = vmatpush1.bf16.msra.mxu0 %v4738
    %4972 = vmatprep.subr.bf16.mxu0 0
    %4973 = vmatpush1.bf16.msra.mxu0 %v4739
    %4974 = vmatprep.subr.bf16.mxu0 0
    %4975 = vmatpush1.bf16.msra.mxu0 %v4740
    %4976 = vmatprep.subr.bf16.mxu0 0
    %4977 = vmatpush1.bf16.msra.mxu0 %v4741
    %4978 = vmatprep.subr.bf16.mxu0 0
    %4979 = vmatpush1.bf16.msra.mxu0 %v4742
    %4980 = vmatprep.subr.bf16.mxu0 0
    %4981 = vmatpush1.bf16.msra.mxu0 %v4743
    %4982 = vmatprep.subr.bf16.mxu0 0
    %4983 = vmatpush1.bf16.msra.mxu0 %v4744
    %4984 = vmatprep.subr.bf16.mxu0 0
    %4985 = vmatpush1.bf16.msra.mxu0 %v4745
    %4986 = vmatprep.mubr.bf16.mxu0 %v4157
    %4987 = vmatmul.mubr.bf16.gmra.mrb[0].mxu0 %v4156
    %v4988 = vpop.f32.mrb[0].mxu0
    %v4989 = vadd.f32 %v4949, %v4988
    %v4990 = vpop.f32.mrb[0].mxu0
    %v4991 = vpop.f32.mrb[0].mxu0
    %v4992 = vpop.f32.mrb[0].mxu0
    %4993 = vdwg.mxu0
    %4994 = vmatprep.subr.bf16.mxu0 0
    %4995 = vmatpush1.bf16.msra.mxu0 %v4746
    %4996 = vmatprep.subr.bf16.mxu0 0
    %4997 = vmatpush1.bf16.msra.mxu0 %v4747
    %4998 = vmatprep.subr.bf16.mxu0 0
    %4999 = vmatpush1.bf16.msra.mxu0 %v4748
    %5000 = vmatprep.subr.bf16.mxu0 0
    %5001 = vmatpush1.bf16.msra.mxu0 %v4749
    %5002 = vmatprep.subr.bf16.mxu0 0
    %5003 = vmatpush1.bf16.msra.mxu0 %v4750
    %5004 = vmatprep.subr.bf16.mxu0 0
    %5005 = vmatpush1.bf16.msra.mxu0 %v4751
    %5006 = vmatprep.subr.bf16.mxu0 0
    %5007 = vmatpush1.bf16.msra.mxu0 %v4752
    %5008 = vmatprep.subr.bf16.mxu0 0
    %5009 = vmatpush1.bf16.msra.mxu0 %v4753
    %5010 = vmatprep.subr.bf16.mxu0 0
    %5011 = vmatpush1.bf16.msra.mxu0 %v4754
    %5012 = vmatprep.subr.bf16.mxu0 0
    %5013 = vmatpush1.bf16.msra.mxu0 %v4755
    %5014 = vmatprep.subr.bf16.mxu0 0
    %5015 = vmatpush1.bf16.msra.mxu0 %v4756
    %5016 = vmatprep.subr.bf16.mxu0 0
    %5017 = vmatpush1.bf16.msra.mxu0 %v4757
    %5018 = vmatprep.subr.bf16.mxu0 0
    %5019 = vmatpush1.bf16.msra.mxu0 %v4758
    %5020 = vmatprep.subr.bf16.mxu0 0
    %5021 = vmatpush1.bf16.msra.mxu0 %v4759
    %5022 = vmatprep.subr.bf16.mxu0 0
    %5023 = vmatpush1.bf16.msra.mxu0 %v4760
    %5024 = vmatprep.subr.bf16.mxu0 0
    %5025 = vmatpush1.bf16.msra.mxu0 %v4761
    %5026 = vmatprep.mubr.bf16.mxu0 %v4159
    %5027 = vmatmul.mubr.bf16.gmra.mrb[0].mxu0 %v4158
    %v5028 = vpop.f32.mrb[0].mxu0
    %v5029 = vadd.f32 %v4989, %v5028
    %v5030 = vpop.f32.mrb[0].mxu0
    %v5031 = vpop.f32.mrb[0].mxu0
    %v5032 = vpop.f32.mrb[0].mxu0
    %5033 = vdwg.mxu0
    %5034 = vmatprep.subr.bf16.mxu0 0
    %5035 = vmatpush1.bf16.msra.mxu0 %v4762
    %5036 = vmatprep.subr.bf16.mxu0 0
    %5037 = vmatpush1.bf16.msra.mxu0 %v4763
    %5038 = vmatprep.subr.bf16.mxu0 0
    %5039 = vmatpush1.bf16.msra.mxu0 %v4764
    %5040 = vmatprep.subr.bf16.mxu0 0
    %5041 = vmatpush1.bf16.msra.mxu0 %v4765
    %5042 = vmatprep.subr.bf16.mxu0 0
    %5043 = vmatpush1.bf16.msra.mxu0 %v4766
    %5044 = vmatprep.subr.bf16.mxu0 0
    %5045 = vmatpush1.bf16.msra.mxu0 %v4767
    %5046 = vmatprep.subr.bf16.mxu0 0
    %5047 = vmatpush1.bf16.msra.mxu0 %v4768
    %5048 = vmatprep.subr.bf16.mxu0 0
    %5049 = vmatpush1.bf16.msra.mxu0 %v4769
    %5050 = vmatprep.subr.bf16.mxu0 0
    %5051 = vmatpush1.bf16.msra.mxu0 %v4770
    %5052 = vmatprep.subr.bf16.mxu0 0
    %5053 = vmatpush1.bf16.msra.mxu0 %v4771
    %5054 = vmatprep.subr.bf16.mxu0 0
    %5055 = vmatpush1.bf16.msra.mxu0 %v4772
    %5056 = vmatprep.subr.bf16.mxu0 0
    %5057 = vmatpush1.bf16.msra.mxu0 %v4773
    %5058 = vmatprep.subr.bf16.mxu0 0
    %5059 = vmatpush1.bf16.msra.mxu0 %v4774
    %5060 = vmatprep.subr.bf16.mxu0 0
    %5061 = vmatpush1.bf16.msra.mxu0 %v4775
    %5062 = vmatprep.subr.bf16.mxu0 0
    %5063 = vmatpush1.bf16.msra.mxu0 %v4776
    %5064 = vmatprep.subr.bf16.mxu0 0
    %5065 = vmatpush1.bf16.msra.mxu0 %v4777
    %5066 = vmatprep.mubr.bf16.mxu0 %v4161
    %5067 = vmatmul.mubr.bf16.gmra.mrb[0].mxu0 %v4160
    %v5068 = vpop.f32.mrb[0].mxu0
    %v5069 = vadd.f32 %v5029, %v5068
    %v5070 = vpop.f32.mrb[0].mxu0
    %v5071 = vpop.f32.mrb[0].mxu0
    %v5072 = vpop.f32.mrb[0].mxu0
    %5073 = vdwg.mxu0
    %5074 = vmatprep.subr.bf16.mxu0 0
    %5075 = vmatpush1.bf16.msra.mxu0 %v4778
    %5076 = vmatprep.subr.bf16.mxu0 0
    %5077 = vmatpush1.bf16.msra.mxu0 %v4779
    %5078 = vmatprep.subr.bf16.mxu0 0
    %5079 = vmatpush1.bf16.msra.mxu0 %v4780
    %5080 = vmatprep.subr.bf16.mxu0 0
    %5081 = vmatpush1.bf16.msra.mxu0 %v4781
    %5082 = vmatprep.subr.bf16.mxu0 0
    %5083 = vmatpush1.bf16.msra.mxu0 %v4782
    %5084 = vmatprep.subr.bf16.mxu0 0
    %5085 = vmatpush1.bf16.msra.mxu0 %v4783
    %5086 = vmatprep.subr.bf16.mxu0 0
    %5087 = vmatpush1.bf16.msra.mxu0 %v4784
    %5088 = vmatprep.subr.bf16.mxu0 0
    %5089 = vmatpush1.bf16.msra.mxu0 %v4785
    %5090 = vmatprep.subr.bf16.mxu0 0
    %5091 = vmatpush1.bf16.msra.mxu0 0
    %5092 = vmatprep.subr.bf16.mxu0 0
    %5093 = vmatpush1.bf16.msra.mxu0 0
    %5094 = vmatprep.subr.bf16.mxu0 0
    %5095 = vmatpush1.bf16.msra.mxu0 0
    %5096 = vmatprep.subr.bf16.mxu0 0
    %5097 = vmatpush1.bf16.msra.mxu0 0
    %5098 = vmatprep.subr.bf16.mxu0 0
    %5099 = vmatpush1.bf16.msra.mxu0 0
    %5100 = vmatprep.subr.bf16.mxu0 0
    %5101 = vmatpush1.bf16.msra.mxu0 0
    %5102 = vmatprep.subr.bf16.mxu0 0
    %5103 = vmatpush1.bf16.msra.mxu0 0
    %5104 = vmatprep.subr.bf16.mxu0 0
    %5105 = vmatpush1.bf16.msra.mxu0 0
    %5106 = vmatprep.mubr.bf16.mxu0 0
    %5107 = vmatmul.mubr.bf16.gmra.mrb[0].mxu0 %v4162
    %v5108 = vpop.f32.mrb[0].mxu0
    %v5109 = vadd.f32 %v5069, %v5108
    %v5110 = vpop.f32.mrb[0].mxu0
    %v5111 = vpop.f32.mrb[0].mxu0
    %v5112 = vpop.f32.mrb[0].mxu0
    %5113 = vdwg.mxu0
    %vm5114 = vcmask 15360
    %5115 = vst.msk [vmem:[%s9] sm:$0xff] %vm5114, %v5109
    // Predicated region
    $region70: #{tpu_custom_call.1} parent=1 // pred_check
      _
    $region71: #{tpu_custom_call.1} parent=1 // pred_check_branch
      %5117 = sbr.rel (0) target = $region73
    $region72: #{tpu_custom_call.1} parent=1 // pred_region
      _
    $region73: #{tpu_custom_call.1} parent=1 // pred_fallthru
      _
    // Predicated region
    $region74: #{tpu_custom_call.1} parent=1 // pred_check
      _
    $region75: #{tpu_custom_call.1} parent=1 // pred_check_branch
      %5119 = sbr.rel (0) target = $region77
    $region76: #{tpu_custom_call.1} parent=1 // pred_region
      %s5121 = ssub.s32 1408, 1408
      %5122 = vsyncadd [#allocation4], %s5121
      %s5124 = sshll.u32 [#allocation16], 4
      %s5125 = int_to_ptr.vmem [resolvable:$true] %s5124
      %5127 = dma.vmem_to_hbm [thread:$0]  %s5125, 1408, %s10, [#allocation4]
    $region77: #{tpu_custom_call.1} parent=1 // pred_fallthru
      _
    // Predicated region
    $region78: #{tpu_custom_call.1} parent=1 // pred_check
      _
    $region79: #{tpu_custom_call.1} parent=1 // pred_check_branch
      %5129 = sbr.rel (0) target = $region81
    $region80: #{tpu_custom_call.1} parent=1 // pred_region
      _
    $region81: #{tpu_custom_call.1} parent=1 // pred_fallthru
      _
    // Predicated region
    $region82: #{tpu_custom_call.1} parent=1 // pred_check
      _
    $region83: #{tpu_custom_call.1} parent=1 // pred_check_branch
      %5131 = sbr.rel (0) target = $region85
    $region84: #{tpu_custom_call.1} parent=1 // pred_region
      %5132 = dma.done [#allocation4], 1408
    $region85: #{tpu_custom_call.1} parent=1 // pred_fallthru
      _
    %5133 = vsyncpa [#allocation3], 1
    %5134 = vsyncpa [#allocation6], 1
    %5135 = vsyncpa [#allocation9], 1
    %5136 = vsyncpa [#allocation12], 1
    %5137 = vsyncpa [#allocation15], 1
    %5138 = vsyncpa [#allocation4], 1

</llo_original>
